<compile_context>
chip_gen: v7x
topology: tpu7x:2x2x1
jax: 0.10.0
libtpu: 0.0.40
codegen_flags: <defaults>
</compile_context>

<pallas_src>
import math

import jax
import jax.numpy as jnp
from jax import lax
from jax.experimental import pallas as pl
from jax.experimental.pallas import tpu as pltpu


def _round_up(n, m):
    return ((n + m - 1) // m) * m


# ---------------------------------------------------------------------------
# Kernel
# ---------------------------------------------------------------------------
def _critic2_fused_kernel(xu_ref, w1_ref, b1_ref, wgi_ref, bgi_ref,
                          ugh_ref, bnh_ref, h0_ref, w31_ref, w32_ref, b3_ref,
                          out1_ref, out2_ref, gi_ref):
    """Fused twin-Q kernel (one batch block per grid step).

    Shapes (bb = batch block, H2p = 128-padded 2*hid_dim, G3 = 3*H2p):
      xu_ref : (T, bb, Din)        w1_ref : (Din, H2p)    b1_ref : (1, H2p)
      wgi_ref: (H2p, G3)           bgi_ref: (1, G3)
      ugh_ref: (H2p, G3)           bnh_ref: (1, H2p)
      h0_ref : (bb, H2p)           w31/w32_ref : (1, H2p) b3_ref : SMEM (2,)
      out1/out2_ref : (1, T, bb)   gi_ref : VMEM scratch (T, bb, G3)
    """
    T, bb = xu_ref.shape[0], xu_ref.shape[1]
    H2p = h0_ref.shape[1]

    w1 = w1_ref[...]
    b1 = b1_ref[...]
    wgi = wgi_ref[...]
    bgi = bgi_ref[...]

    # ---- Gate-input precompute (off the serial chain) ----------------------
    # fc11/fc21 fused into one matmul + ReLU, then ONE fused matmul for all
    # three gates of both branches (fewer MXU kickoffs, one write stream).
    # Done per timestep with 2-D dots so the only large VMEM temp is gi_ref.
    # TODO(synk): for large T*bb*H2p, chunk this over T (second "arbitrary"
    # grid axis / emit_pipeline) so the slab becomes (Tc, bb, G3) and the
    # precompute overlaps the recurrence (v7x 64 MiB VMEM).
    # TODO(synk): on v6e/v7x run these two matmuls with bf16 inputs
    # (preferred_element_type=f32) for ~2-4x MXU throughput; needs the
    # self-test tolerance loosened to ~1e-3.
    def precompute(t, carry):
        x_t = jnp.maximum(
            jnp.dot(xu_ref[t], w1, preferred_element_type=jnp.float32) + b1,
            0.0)                                                   # (bb, H2p)
        gi_ref[t] = jnp.dot(x_t, wgi,
                            preferred_element_type=jnp.float32) + bgi
        return carry

    lax.fori_loop(0, T, precompute, 0, unroll=(True if T <= 16 else 4))

    # ---- Serial GRU recurrence (both branches via block-diag weights) ------
    u = ugh_ref[...]
    bnh = bnh_ref[...]

    def step(t, h):
        # ONE wide MXU matmul per step: r|z|n of both branches at once.
        gh = jnp.dot(h, u, preferred_element_type=jnp.float32)    # (bb, G3)
        gi = gi_ref[t]                                            # (bb, G3)
        r = jax.nn.sigmoid(gi[:, :H2p] + gh[:, :H2p])
        z = jax.nn.sigmoid(gi[:, H2p:2 * H2p] + gh[:, H2p:2 * H2p])
        n = jnp.tanh(gi[:, 2 * H2p:] + r * (gh[:, 2 * H2p:] + bnh))
        h_new = (1.0 - z) * n + z * h
        # Stash h_t in the (now dead) r-gate lanes of the slab; fc13/fc23 run
        # lane-dense after the loop instead of on the serial chain.
        gi_ref[t, :, :H2p] = h_new
        return h_new

    # Unroll only while per-step live values fit the vreg file (sweep on HW).
    unroll = True if (T <= 32 and bb * H2p <= 128 * 256) else 2
    lax.fori_loop(0, T, step, h0_ref[...], unroll=unroll)

    # ---- fc13/fc23: VPU multiply + lane reduction over all timesteps -------
    hs = gi_ref[:, :, :H2p]                                       # (T, bb, H2p)
    out1_ref[0] = jnp.sum(hs * w31_ref[...], axis=-1) + b3_ref[0]
    out2_ref[0] = jnp.sum(hs * w32_ref[...], axis=-1) + b3_ref[1]


# ---------------------------------------------------------------------------
# Parameter fusion (host side, under jit)
# ---------------------------------------------------------------------------
def _fuse_branch_params(p1, p2, H):
    """Fused (both-branch), 128-lane-padded weights from torch-layout params."""
    (w1a, b1a, wiha, whha, biha, bhha, w3a, b3a) = [
        jnp.asarray(t, jnp.float32) for t in p1]
    (w1b, b1b, wihb, whhb, bihb, bhhb, w3b, b3b) = [
        jnp.asarray(t, jnp.float32) for t in p2]

    H2 = 2 * H
    H2p = _round_up(H2, 128)

    def padlanes(m):
        return jnp.pad(m, ((0, 0), (0, H2p - m.shape[1])))

    def padvec(v):
        return jnp.pad(v, (0, H2p - v.shape[0]))

    # fc11/fc21 column-concatenated and lane-padded: (Din, H2p)
    w1 = padlanes(jnp.concatenate([w1a.T, w1b.T], axis=1))
    b1 = padvec(jnp.concatenate([b1a, b1b]))[None, :]

    def gate(w, g):   # torch (3H, H), rows [r|z|n] -> (H, H) acting on the right
        return w[g * H:(g + 1) * H, :].T

    def bdiag(a, b):  # (H2p, H2p) block-diagonal, zero padded
        m = jnp.zeros((H2p, H2p), jnp.float32)
        m = m.at[:H, :H].set(a)
        return m.at[H:H2, H:H2].set(b)

    # One (H2p, 3*H2p) gate-input weight and one recurrent weight; gate groups
    # are 128-lane aligned so in-kernel slices stay vreg-aligned.
    # TODO(synk): for H >= 128, replace the block-diag precompute with a
    # branch-axis einsum to avoid the 2x zero-FLOP waste.
    wgi = jnp.concatenate([bdiag(gate(wiha, g), gate(wihb, g))
                           for g in range(3)], axis=1)
    ugh = jnp.concatenate([bdiag(gate(whha, g), gate(whhb, g))
                           for g in range(3)], axis=1)

    def bias(g, fold_bh):
        va = biha[g * H:(g + 1) * H]
        vb = bihb[g * H:(g + 1) * H]
        if fold_bh:
            va = va + bhha[g * H:(g + 1) * H]
            vb = vb + bhhb[g * H:(g + 1) * H]
        return padvec(jnp.concatenate([va, vb]))

    # r/z biases fold b_ih + b_hh (off the serial path); the n gate keeps only
    # b_ih here -- b_hh_n stays inside r*(.) (parity with torch GRU).
    bgi = jnp.concatenate([bias(0, True), bias(1, True),
                           bias(2, False)])[None, :]
    bnh = padvec(jnp.concatenate([bhha[2 * H:], bhhb[2 * H:]]))[None, :]

    zH = jnp.zeros((H,), jnp.float32)
    w31 = padvec(jnp.concatenate([w3a[0], zH]))[None, :]   # [w3_q1 | 0 | pad]
    w32 = padvec(jnp.concatenate([zH, w3b[0]]))[None, :]   # [0 | w3_q2 | pad]
    b3 = jnp.stack([b3a[0], b3b[0]])                       # (2,) -> SMEM
    return (w1, b1, wgi, bgi, ugh, bnh, w31, w32, b3), H2p


# ---------------------------------------------------------------------------
# pallas_call wrapper
# ---------------------------------------------------------------------------
def _vmem_estimate_bytes(T, bb, Din, H2p):
    pad8 = lambda n: _round_up(n, 8)
    pad128 = lambda n: _round_up(n, 128)
    f32 = 4
    gi = T * pad8(bb) * 3 * H2p * f32                   # gate / h-state slab
    xu = 2 * T * pad8(bb) * pad128(Din) * f32           # double-buffered input
    h0 = 2 * pad8(bb) * H2p * f32
    wts = (pad8(Din) * H2p + 2 * H2p * 3 * H2p + 8 * H2p) * f32 * 2
    outs = 2 * 2 * pad8(T) * pad128(bb) * f32
    tmp = pad8(bb) * 4 * H2p * f32                      # per-step x_t / gh temps
    tail = T * pad8(bb) * H2p * f32                     # fc3 multiply temp
    return gi + xu + h0 + wts + outs + tmp + tail


def _pick_bb(B, T, Din, H2p):
    """Batch block: a multiple-of-8 divisor of B giving >= 2 'parallel' grid
    steps when possible (v7x dual TensorCore), shrunk if the per-step VMEM
    footprint would crowd v7x's 64 MiB budget."""
    if B < 16 or B % 8 != 0:
        return B
    budget = 40 << 20
    cands = sorted((d for d in range(8, B // 2 + 1, 8) if B % d == 0),
                   reverse=True)
    if not cands:
        return B
    for bb in cands:
        if _vmem_estimate_bytes(T, bb, Din, H2p) <= budget:
            return bb
    return cands[-1]


def _full_spec(shape):
    return pl.BlockSpec(shape, lambda i, _n=len(shape): (0,) * _n)


def _critic2_pallas(xu_tm, fused, h0_cat, H2p):
    """Run the fused twin-Q kernel.  xu_tm: (T, B, Din); h0_cat: (B, H2p).
    Returns two batch-blocked, time-major (nb, T, bb) arrays (nb*bb == B)."""
    T, B, Din = xu_tm.shape
    (w1, b1, wgi, bgi, ugh, bnh, w31, w32, b3) = fused

    bb = _pick_bb(B, T, Din, H2p)
    nb = B // bb
    grid = (nb,)

    in_specs = [
        pl.BlockSpec((T, bb, Din), lambda i: (0, i, 0)),      # xu (time-major)
        _full_spec(w1.shape), _full_spec(b1.shape),
        _full_spec(wgi.shape), _full_spec(bgi.shape),
        _full_spec(ugh.shape), _full_spec(bnh.shape),
        pl.BlockSpec((bb, H2p), lambda i: (i, 0)),            # h0
        _full_spec(w31.shape), _full_spec(w32.shape),
        pl.BlockSpec(memory_space=pltpu.MemorySpace.SMEM),    # b3 scalars
    ]
    out_specs = [pl.BlockSpec((1, T, bb), lambda i: (i, 0, 0)),
                 pl.BlockSpec((1, T, bb), lambda i: (i, 0, 0))]
    out_shape = [jax.ShapeDtypeStruct((nb, T, bb), jnp.float32),
                 jax.ShapeDtypeStruct((nb, T, bb), jnp.float32)]

    # Explicit scoped-VMEM limit sized to the real footprint (default scoped
    # limit is only ~16/32 MiB); capped at 64 MiB so it is valid on v7x too.
    vmem_limit = max(32 << 20,
                     min(int(_vmem_estimate_bytes(T, bb, Din, H2p) * 1.5)
                         + (2 << 20), 64 << 20))

    out1_blk, out2_blk = pl.pallas_call(
        _critic2_fused_kernel,
        grid=grid,
        in_specs=in_specs,
        out_specs=out_specs,
        out_shape=out_shape,
        scratch_shapes=[pltpu.VMEM((T, bb, 3 * H2p), jnp.float32)],
        compiler_params=pltpu.CompilerParams(
            dimension_semantics=("parallel",),
            vmem_limit_bytes=vmem_limit),
    )(xu_tm, w1, b1, wgi, bgi, ugh, bnh, h0_cat, w31, w32, b3)
    return out1_blk, out2_blk


# ---------------------------------------------------------------------------
# Public forward + init
# ---------------------------------------------------------------------------
def init_critic2_params(key, inp_dim, action_dim, hid_dim):
    """Deterministic synthetic init mirroring torch's default Linear/GRU init."""
    d_in = inp_dim + action_dim

    def uni(k, shape, bound):
        return jax.random.uniform(k, shape, jnp.float32, -bound, bound)

    def branch(k):
        ks = jax.random.split(k, 8)
        bl = 1.0 / math.sqrt(d_in)
        bg = 1.0 / math.sqrt(hid_dim)
        w1 = uni(ks[0], (hid_dim, d_in), bl)
        b1 = uni(ks[1], (hid_dim,), bl)
        wih = uni(ks[2], (3 * hid_dim, hid_dim), bg)      # rows [r|z|n]
        whh = uni(ks[3], (3 * hid_dim, hid_dim), bg)
        bih = uni(ks[4], (3 * hid_dim,), bg)
        bhh = uni(ks[5], (3 * hid_dim,), bg)
        bo = 1.0 / math.sqrt(hid_dim)
        w3 = uni(ks[6], (1, hid_dim), bo)
        b3 = uni(ks[7], (1,), bo)
        return (w1, b1, wih, whh, bih, bhh, w3, b3)

    k1, k2 = jax.random.split(key)
    return {'q1': branch(k1), 'q2': branch(k2)}


@jax.jit
def critic2_forward(params, state, action, hn):
    """Equivalent of Critic2.forward(state, action, hn) -> (out1, out2)."""
    state = state.astype(jnp.float32)
    action = action.astype(jnp.float32)
    B, T = state.shape[0], state.shape[1]
    xu = jnp.concatenate([state, action], axis=-1)           # (B, T, Din)
    xu_tm = jnp.transpose(xu, (1, 0, 2))                     # (T, B, Din)
    h0 = hn[0].astype(jnp.float32)                           # (B, H) layer 0
    H = h0.shape[1]

    fused, H2p = _fuse_branch_params(params['q1'], params['q2'], H)
    h0_cat = jnp.pad(jnp.concatenate([h0, h0], axis=1),
                     ((0, 0), (0, H2p - 2 * H)))             # (B, H2p)

    out1_blk, out2_blk = _critic2_pallas(xu_tm, fused, h0_cat, H2p)

    # (nb, T, bb) batch-blocked, time-major -> torch layout (B, T, 1).
    out1 = jnp.transpose(out1_blk, (0, 2, 1)).reshape(B, T)[..., None]
    out2 = jnp.transpose(out2_blk, (0, 2, 1)).reshape(B, T)[..., None]
    return out1, out2


# ---------------------------------------------------------------------------
# Pure-JAX reference (numerical sanity check of the kernel).
# ---------------------------------------------------------------------------
def _ref_branch(xu, params, h0):
    w1, b1, wih, whh, bih, bhh, w3, b3 = params
    H = h0.shape[1]
    x = jax.nn.relu(xu @ w1.T + b1)

    def step(h, x_t):
        gi = x_t @ wih.T + bih
        gh = h @ whh.T + bhh
        r = jax.nn.sigmoid(gi[:, :H] + gh[:, :H])
        z = jax.nn.sigmoid(gi[:, H:2 * H] + gh[:, H:2 * H])
        n = jnp.tanh(gi[:, 2 * H:] + r * gh[:, 2 * H:])
        h_new = (1.0 - z) * n + z * h
        return h_new, h_new

    _, hs = lax.scan(step, h0, jnp.transpose(x, (1, 0, 2)))
    hs = jnp.transpose(hs, (1, 0, 2))
    return hs @ w3.T + b3


def _ref_forward(params, state, action, hn):
    xu = jnp.concatenate([state, action], axis=-1)
    h0 = hn[0]
    return (_ref_branch(xu, params['q1'], h0),
            _ref_branch(xu, params['q2'], h0))


if __name__ == "__main__":
    B, T = 2, 8
    inp_dim, action_dim, hid_dim = 12, 4, 32

    key = jax.random.PRNGKey(0)
    kp, ks, ka, kh = jax.random.split(key, 4)

    params = init_critic2_params(kp, inp_dim, action_dim, hid_dim)
    state = jax.random.normal(ks, (B, T, inp_dim), jnp.float32)
    action = jax.random.normal(ka, (B, T, action_dim), jnp.float32)
    hn = jax.random.normal(kh, (1, B, hid_dim), jnp.float32)

    out1, out2 = critic2_forward(params, state, action, hn)
    out1 = jax.block_until_ready(out1)
    out2 = jax.block_until_ready(out2)

    ref1, ref2 = _ref_forward(params, state, action, hn)
    assert out1.shape == (B, T, 1) and out2.shape == (B, T, 1)
    assert jnp.allclose(out1, ref1, atol=5e-5, rtol=1e-5)
    assert jnp.allclose(out2, ref2, atol=5e-5, rtol=1e-5)

    print("KERNEL_OK")
</pallas_src>

<mosaic_0001>
module attributes {stable_mosaic.version = 11 : i64} {
  func.func @_critic2_fused_kernel(%arg0: i32, %arg1: memref<8x2x16xf32, #tpu.memory_space<vmem>>, %arg2: memref<16x128xf32, #tpu.memory_space<vmem>>, %arg3: memref<1x128xf32, #tpu.memory_space<vmem>>, %arg4: memref<128x384xf32, #tpu.memory_space<vmem>>, %arg5: memref<1x384xf32, #tpu.memory_space<vmem>>, %arg6: memref<128x384xf32, #tpu.memory_space<vmem>>, %arg7: memref<1x128xf32, #tpu.memory_space<vmem>>, %arg8: memref<2x128xf32, #tpu.memory_space<vmem>>, %arg9: memref<1x128xf32, #tpu.memory_space<vmem>>, %arg10: memref<1x128xf32, #tpu.memory_space<vmem>>, %arg11: memref<2xf32, #tpu.memory_space<smem>>, %arg12: memref<1x8x2xf32, #tpu.memory_space<vmem>>, %arg13: memref<1x8x2xf32, #tpu.memory_space<vmem>>, %arg14: memref<8x2x384xf32, #tpu.memory_space<vmem>>) attributes {dimension_semantics = [#tpu.dimension_semantics<parallel>], iteration_bounds = array<i64: 1>, scalar_prefetch = 0 : i64, scratch_operands = 1 : i64, tpu.core_type = #tpu.core_type<tc>, window_params = [{transform_indices = @transform_0, window_bounds = array<i64: 8, 2, 16>}, {pipeline_mode = #tpu.pipeline_mode<synchronous>, transform_indices = @transform_1, window_bounds = array<i64: 16, 128>}, {pipeline_mode = #tpu.pipeline_mode<synchronous>, transform_indices = @transform_2, window_bounds = array<i64: 1, 128>}, {pipeline_mode = #tpu.pipeline_mode<synchronous>, transform_indices = @transform_3, window_bounds = array<i64: 128, 384>}, {pipeline_mode = #tpu.pipeline_mode<synchronous>, transform_indices = @transform_4, window_bounds = array<i64: 1, 384>}, {pipeline_mode = #tpu.pipeline_mode<synchronous>, transform_indices = @transform_5, window_bounds = array<i64: 128, 384>}, {pipeline_mode = #tpu.pipeline_mode<synchronous>, transform_indices = @transform_6, window_bounds = array<i64: 1, 128>}, {transform_indices = @transform_7, window_bounds = array<i64: 2, 128>}, {pipeline_mode = #tpu.pipeline_mode<synchronous>, transform_indices = @transform_8, window_bounds = array<i64: 1, 128>}, {pipeline_mode = #tpu.pipeline_mode<synchronous>, transform_indices = @transform_9, window_bounds = array<i64: 1, 128>}, {transform_indices = @transform_10, window_bounds = array<i64: 2>}, {transform_indices = @transform_11, window_bounds = array<i64: 1, 8, 2>}, {transform_indices = @transform_12, window_bounds = array<i64: 1, 8, 2>}]} {
    %c0 = arith.constant 0 : index
    %c0_0 = arith.constant 0 : index
    %0 = vector.load %arg2[%c0, %c0_0] : memref<16x128xf32, #tpu.memory_space<vmem>>, vector<16x128xf32>
    %c0_1 = arith.constant 0 : index
    %c0_2 = arith.constant 0 : index
    %1 = vector.load %arg3[%c0_1, %c0_2] : memref<1x128xf32, #tpu.memory_space<vmem>>, vector<1x128xf32>
    %c0_3 = arith.constant 0 : index
    %c0_4 = arith.constant 0 : index
    %2 = vector.load %arg4[%c0_3, %c0_4] : memref<128x384xf32, #tpu.memory_space<vmem>>, vector<128x384xf32>
    %c0_5 = arith.constant 0 : index
    %c0_6 = arith.constant 0 : index
    %3 = vector.load %arg5[%c0_5, %c0_6] : memref<1x384xf32, #tpu.memory_space<vmem>>, vector<1x384xf32>
    %c0_i32 = arith.constant 0 : i32
    %4 = arith.index_cast %c0_i32 : i32 to index
    %c0_7 = arith.constant 0 : index
    %c0_8 = arith.constant 0 : index
    %5 = vector.load %arg1[%4, %c0_7, %c0_8] : memref<8x2x16xf32, #tpu.memory_space<vmem>>, vector<1x2x16xf32>
    %6 = vector.shape_cast %5 : vector<1x2x16xf32> to vector<2x16xf32>
    %cst = arith.constant dense<0.000000e+00> : vector<2x128xf32>
    %7 = tpu.matmul %6, %0, %cst {dimension_numbers = #tpu.dot_dimension_numbers<[1], [0], [0], [1], [0, 0, 1, 1], [], []>} : vector<2x16xf32>, vector<16x128xf32>, vector<2x128xf32> -> vector<2x128xf32>
    %8 = vector.broadcast %1 : vector<1x128xf32> to vector<2x128xf32>
    %9 = arith.addf %7, %8 : vector<2x128xf32>
    %cst_9 = arith.constant 0.000000e+00 : f32
    %10 = vector.broadcast %cst_9 : f32 to vector<2x128xf32>
    %11 = arith.maximumf %9, %10 : vector<2x128xf32>
    %cst_10 = arith.constant dense<0.000000e+00> : vector<2x384xf32>
    %12 = tpu.matmul %11, %2, %cst_10 {dimension_numbers = #tpu.dot_dimension_numbers<[1], [0], [0], [1], [0, 0, 1, 1], [], []>} : vector<2x128xf32>, vector<128x384xf32>, vector<2x384xf32> -> vector<2x384xf32>
    %13 = vector.broadcast %3 : vector<1x384xf32> to vector<2x384xf32>
    %14 = arith.addf %12, %13 : vector<2x384xf32>
    %15 = arith.index_cast %c0_i32 : i32 to index
    %c0_11 = arith.constant 0 : index
    %c0_12 = arith.constant 0 : index
    %16 = vector.load %arg14[%15, %c0_11, %c0_12] : memref<8x2x384xf32, #tpu.memory_space<vmem>>, vector<1x2x384xf32>
    %17 = vector.shape_cast %16 : vector<1x2x384xf32> to vector<2x384xf32>
    %18 = vector.shape_cast %14 : vector<2x384xf32> to vector<1x2x384xf32>
    tpu.vector_store %arg14[%15, %c0_11, %c0_12], %18 {strides = array<i32>} : memref<8x2x384xf32, #tpu.memory_space<vmem>>, vector<1x2x384xf32>,
    %c1_i32 = arith.constant 1 : i32
    %19 = arith.index_cast %c1_i32 : i32 to index
    %c0_13 = arith.constant 0 : index
    %c0_14 = arith.constant 0 : index
    %20 = vector.load %arg1[%19, %c0_13, %c0_14] : memref<8x2x16xf32, #tpu.memory_space<vmem>>, vector<1x2x16xf32>
    %21 = vector.shape_cast %20 : vector<1x2x16xf32> to vector<2x16xf32>
    %cst_15 = arith.constant dense<0.000000e+00> : vector<2x128xf32>
    %22 = tpu.matmul %21, %0, %cst_15 {dimension_numbers = #tpu.dot_dimension_numbers<[1], [0], [0], [1], [0, 0, 1, 1], [], []>} : vector<2x16xf32>, vector<16x128xf32>, vector<2x128xf32> -> vector<2x128xf32>
    %23 = vector.broadcast %1 : vector<1x128xf32> to vector<2x128xf32>
    %24 = arith.addf %22, %23 : vector<2x128xf32>
    %cst_16 = arith.constant 0.000000e+00 : f32
    %25 = vector.broadcast %cst_16 : f32 to vector<2x128xf32>
    %26 = arith.maximumf %24, %25 : vector<2x128xf32>
    %cst_17 = arith.constant dense<0.000000e+00> : vector<2x384xf32>
    %27 = tpu.matmul %26, %2, %cst_17 {dimension_numbers = #tpu.dot_dimension_numbers<[1], [0], [0], [1], [0, 0, 1, 1], [], []>} : vector<2x128xf32>, vector<128x384xf32>, vector<2x384xf32> -> vector<2x384xf32>
    %28 = vector.broadcast %3 : vector<1x384xf32> to vector<2x384xf32>
    %29 = arith.addf %27, %28 : vector<2x384xf32>
    %30 = arith.index_cast %c1_i32 : i32 to index
    %c0_18 = arith.constant 0 : index
    %c0_19 = arith.constant 0 : index
    %31 = vector.load %arg14[%30, %c0_18, %c0_19] : memref<8x2x384xf32, #tpu.memory_space<vmem>>, vector<1x2x384xf32>
    %32 = vector.shape_cast %31 : vector<1x2x384xf32> to vector<2x384xf32>
    %33 = vector.shape_cast %29 : vector<2x384xf32> to vector<1x2x384xf32>
    tpu.vector_store %arg14[%30, %c0_18, %c0_19], %33 {strides = array<i32>} : memref<8x2x384xf32, #tpu.memory_space<vmem>>, vector<1x2x384xf32>,
    %c2_i32 = arith.constant 2 : i32
    %34 = arith.index_cast %c2_i32 : i32 to index
    %c0_20 = arith.constant 0 : index
    %c0_21 = arith.constant 0 : index
    %35 = vector.load %arg1[%34, %c0_20, %c0_21] : memref<8x2x16xf32, #tpu.memory_space<vmem>>, vector<1x2x16xf32>
    %36 = vector.shape_cast %35 : vector<1x2x16xf32> to vector<2x16xf32>
    %cst_22 = arith.constant dense<0.000000e+00> : vector<2x128xf32>
    %37 = tpu.matmul %36, %0, %cst_22 {dimension_numbers = #tpu.dot_dimension_numbers<[1], [0], [0], [1], [0, 0, 1, 1], [], []>} : vector<2x16xf32>, vector<16x128xf32>, vector<2x128xf32> -> vector<2x128xf32>
    %38 = vector.broadcast %1 : vector<1x128xf32> to vector<2x128xf32>
    %39 = arith.addf %37, %38 : vector<2x128xf32>
    %cst_23 = arith.constant 0.000000e+00 : f32
    %40 = vector.broadcast %cst_23 : f32 to vector<2x128xf32>
    %41 = arith.maximumf %39, %40 : vector<2x128xf32>
    %cst_24 = arith.constant dense<0.000000e+00> : vector<2x384xf32>
    %42 = tpu.matmul %41, %2, %cst_24 {dimension_numbers = #tpu.dot_dimension_numbers<[1], [0], [0], [1], [0, 0, 1, 1], [], []>} : vector<2x128xf32>, vector<128x384xf32>, vector<2x384xf32> -> vector<2x384xf32>
    %43 = vector.broadcast %3 : vector<1x384xf32> to vector<2x384xf32>
    %44 = arith.addf %42, %43 : vector<2x384xf32>
    %45 = arith.index_cast %c2_i32 : i32 to index
    %c0_25 = arith.constant 0 : index
    %c0_26 = arith.constant 0 : index
    %46 = vector.load %arg14[%45, %c0_25, %c0_26] : memref<8x2x384xf32, #tpu.memory_space<vmem>>, vector<1x2x384xf32>
    %47 = vector.shape_cast %46 : vector<1x2x384xf32> to vector<2x384xf32>
    %48 = vector.shape_cast %44 : vector<2x384xf32> to vector<1x2x384xf32>
    tpu.vector_store %arg14[%45, %c0_25, %c0_26], %48 {strides = array<i32>} : memref<8x2x384xf32, #tpu.memory_space<vmem>>, vector<1x2x384xf32>,
    %c3_i32 = arith.constant 3 : i32
    %49 = arith.index_cast %c3_i32 : i32 to index
    %c0_27 = arith.constant 0 : index
    %c0_28 = arith.constant 0 : index
    %50 = vector.load %arg1[%49, %c0_27, %c0_28] : memref<8x2x16xf32, #tpu.memory_space<vmem>>, vector<1x2x16xf32>
    %51 = vector.shape_cast %50 : vector<1x2x16xf32> to vector<2x16xf32>
    %cst_29 = arith.constant dense<0.000000e+00> : vector<2x128xf32>
    %52 = tpu.matmul %51, %0, %cst_29 {dimension_numbers = #tpu.dot_dimension_numbers<[1], [0], [0], [1], [0, 0, 1, 1], [], []>} : vector<2x16xf32>, vector<16x128xf32>, vector<2x128xf32> -> vector<2x128xf32>
    %53 = vector.broadcast %1 : vector<1x128xf32> to vector<2x128xf32>
    %54 = arith.addf %52, %53 : vector<2x128xf32>
    %cst_30 = arith.constant 0.000000e+00 : f32
    %55 = vector.broadcast %cst_30 : f32 to vector<2x128xf32>
    %56 = arith.maximumf %54, %55 : vector<2x128xf32>
    %cst_31 = arith.constant dense<0.000000e+00> : vector<2x384xf32>
    %57 = tpu.matmul %56, %2, %cst_31 {dimension_numbers = #tpu.dot_dimension_numbers<[1], [0], [0], [1], [0, 0, 1, 1], [], []>} : vector<2x128xf32>, vector<128x384xf32>, vector<2x384xf32> -> vector<2x384xf32>
    %58 = vector.broadcast %3 : vector<1x384xf32> to vector<2x384xf32>
    %59 = arith.addf %57, %58 : vector<2x384xf32>
    %60 = arith.index_cast %c3_i32 : i32 to index
    %c0_32 = arith.constant 0 : index
    %c0_33 = arith.constant 0 : index
    %61 = vector.load %arg14[%60, %c0_32, %c0_33] : memref<8x2x384xf32, #tpu.memory_space<vmem>>, vector<1x2x384xf32>
    %62 = vector.shape_cast %61 : vector<1x2x384xf32> to vector<2x384xf32>
    %63 = vector.shape_cast %59 : vector<2x384xf32> to vector<1x2x384xf32>
    tpu.vector_store %arg14[%60, %c0_32, %c0_33], %63 {strides = array<i32>} : memref<8x2x384xf32, #tpu.memory_space<vmem>>, vector<1x2x384xf32>,
    %c4_i32 = arith.constant 4 : i32
    %64 = arith.index_cast %c4_i32 : i32 to index
    %c0_34 = arith.constant 0 : index
    %c0_35 = arith.constant 0 : index
    %65 = vector.load %arg1[%64, %c0_34, %c0_35] : memref<8x2x16xf32, #tpu.memory_space<vmem>>, vector<1x2x16xf32>
    %66 = vector.shape_cast %65 : vector<1x2x16xf32> to vector<2x16xf32>
    %cst_36 = arith.constant dense<0.000000e+00> : vector<2x128xf32>
    %67 = tpu.matmul %66, %0, %cst_36 {dimension_numbers = #tpu.dot_dimension_numbers<[1], [0], [0], [1], [0, 0, 1, 1], [], []>} : vector<2x16xf32>, vector<16x128xf32>, vector<2x128xf32> -> vector<2x128xf32>
    %68 = vector.broadcast %1 : vector<1x128xf32> to vector<2x128xf32>
    %69 = arith.addf %67, %68 : vector<2x128xf32>
    %cst_37 = arith.constant 0.000000e+00 : f32
    %70 = vector.broadcast %cst_37 : f32 to vector<2x128xf32>
    %71 = arith.maximumf %69, %70 : vector<2x128xf32>
    %cst_38 = arith.constant dense<0.000000e+00> : vector<2x384xf32>
    %72 = tpu.matmul %71, %2, %cst_38 {dimension_numbers = #tpu.dot_dimension_numbers<[1], [0], [0], [1], [0, 0, 1, 1], [], []>} : vector<2x128xf32>, vector<128x384xf32>, vector<2x384xf32> -> vector<2x384xf32>
    %73 = vector.broadcast %3 : vector<1x384xf32> to vector<2x384xf32>
    %74 = arith.addf %72, %73 : vector<2x384xf32>
    %75 = arith.index_cast %c4_i32 : i32 to index
    %c0_39 = arith.constant 0 : index
    %c0_40 = arith.constant 0 : index
    %76 = vector.load %arg14[%75, %c0_39, %c0_40] : memref<8x2x384xf32, #tpu.memory_space<vmem>>, vector<1x2x384xf32>
    %77 = vector.shape_cast %76 : vector<1x2x384xf32> to vector<2x384xf32>
    %78 = vector.shape_cast %74 : vector<2x384xf32> to vector<1x2x384xf32>
    tpu.vector_store %arg14[%75, %c0_39, %c0_40], %78 {strides = array<i32>} : memref<8x2x384xf32, #tpu.memory_space<vmem>>, vector<1x2x384xf32>,
    %c5_i32 = arith.constant 5 : i32
    %79 = arith.index_cast %c5_i32 : i32 to index
    %c0_41 = arith.constant 0 : index
    %c0_42 = arith.constant 0 : index
    %80 = vector.load %arg1[%79, %c0_41, %c0_42] : memref<8x2x16xf32, #tpu.memory_space<vmem>>, vector<1x2x16xf32>
    %81 = vector.shape_cast %80 : vector<1x2x16xf32> to vector<2x16xf32>
    %cst_43 = arith.constant dense<0.000000e+00> : vector<2x128xf32>
    %82 = tpu.matmul %81, %0, %cst_43 {dimension_numbers = #tpu.dot_dimension_numbers<[1], [0], [0], [1], [0, 0, 1, 1], [], []>} : vector<2x16xf32>, vector<16x128xf32>, vector<2x128xf32> -> vector<2x128xf32>
    %83 = vector.broadcast %1 : vector<1x128xf32> to vector<2x128xf32>
    %84 = arith.addf %82, %83 : vector<2x128xf32>
    %cst_44 = arith.constant 0.000000e+00 : f32
    %85 = vector.broadcast %cst_44 : f32 to vector<2x128xf32>
    %86 = arith.maximumf %84, %85 : vector<2x128xf32>
    %cst_45 = arith.constant dense<0.000000e+00> : vector<2x384xf32>
    %87 = tpu.matmul %86, %2, %cst_45 {dimension_numbers = #tpu.dot_dimension_numbers<[1], [0], [0], [1], [0, 0, 1, 1], [], []>} : vector<2x128xf32>, vector<128x384xf32>, vector<2x384xf32> -> vector<2x384xf32>
    %88 = vector.broadcast %3 : vector<1x384xf32> to vector<2x384xf32>
    %89 = arith.addf %87, %88 : vector<2x384xf32>
    %90 = arith.index_cast %c5_i32 : i32 to index
    %c0_46 = arith.constant 0 : index
    %c0_47 = arith.constant 0 : index
    %91 = vector.load %arg14[%90, %c0_46, %c0_47] : memref<8x2x384xf32, #tpu.memory_space<vmem>>, vector<1x2x384xf32>
    %92 = vector.shape_cast %91 : vector<1x2x384xf32> to vector<2x384xf32>
    %93 = vector.shape_cast %89 : vector<2x384xf32> to vector<1x2x384xf32>
    tpu.vector_store %arg14[%90, %c0_46, %c0_47], %93 {strides = array<i32>} : memref<8x2x384xf32, #tpu.memory_space<vmem>>, vector<1x2x384xf32>,
    %c6_i32 = arith.constant 6 : i32
    %94 = arith.index_cast %c6_i32 : i32 to index
    %c0_48 = arith.constant 0 : index
    %c0_49 = arith.constant 0 : index
    %95 = vector.load %arg1[%94, %c0_48, %c0_49] : memref<8x2x16xf32, #tpu.memory_space<vmem>>, vector<1x2x16xf32>
    %96 = vector.shape_cast %95 : vector<1x2x16xf32> to vector<2x16xf32>
    %cst_50 = arith.constant dense<0.000000e+00> : vector<2x128xf32>
    %97 = tpu.matmul %96, %0, %cst_50 {dimension_numbers = #tpu.dot_dimension_numbers<[1], [0], [0], [1], [0, 0, 1, 1], [], []>} : vector<2x16xf32>, vector<16x128xf32>, vector<2x128xf32> -> vector<2x128xf32>
    %98 = vector.broadcast %1 : vector<1x128xf32> to vector<2x128xf32>
    %99 = arith.addf %97, %98 : vector<2x128xf32>
    %cst_51 = arith.constant 0.000000e+00 : f32
    %100 = vector.broadcast %cst_51 : f32 to vector<2x128xf32>
    %101 = arith.maximumf %99, %100 : vector<2x128xf32>
    %cst_52 = arith.constant dense<0.000000e+00> : vector<2x384xf32>
    %102 = tpu.matmul %101, %2, %cst_52 {dimension_numbers = #tpu.dot_dimension_numbers<[1], [0], [0], [1], [0, 0, 1, 1], [], []>} : vector<2x128xf32>, vector<128x384xf32>, vector<2x384xf32> -> vector<2x384xf32>
    %103 = vector.broadcast %3 : vector<1x384xf32> to vector<2x384xf32>
    %104 = arith.addf %102, %103 : vector<2x384xf32>
    %105 = arith.index_cast %c6_i32 : i32 to index
    %c0_53 = arith.constant 0 : index
    %c0_54 = arith.constant 0 : index
    %106 = vector.load %arg14[%105, %c0_53, %c0_54] : memref<8x2x384xf32, #tpu.memory_space<vmem>>, vector<1x2x384xf32>
    %107 = vector.shape_cast %106 : vector<1x2x384xf32> to vector<2x384xf32>
    %108 = vector.shape_cast %104 : vector<2x384xf32> to vector<1x2x384xf32>
    tpu.vector_store %arg14[%105, %c0_53, %c0_54], %108 {strides = array<i32>} : memref<8x2x384xf32, #tpu.memory_space<vmem>>, vector<1x2x384xf32>,
    %c7_i32 = arith.constant 7 : i32
    %109 = arith.index_cast %c7_i32 : i32 to index
    %c0_55 = arith.constant 0 : index
    %c0_56 = arith.constant 0 : index
    %110 = vector.load %arg1[%109, %c0_55, %c0_56] : memref<8x2x16xf32, #tpu.memory_space<vmem>>, vector<1x2x16xf32>
    %111 = vector.shape_cast %110 : vector<1x2x16xf32> to vector<2x16xf32>
    %cst_57 = arith.constant dense<0.000000e+00> : vector<2x128xf32>
    %112 = tpu.matmul %111, %0, %cst_57 {dimension_numbers = #tpu.dot_dimension_numbers<[1], [0], [0], [1], [0, 0, 1, 1], [], []>} : vector<2x16xf32>, vector<16x128xf32>, vector<2x128xf32> -> vector<2x128xf32>
    %113 = vector.broadcast %1 : vector<1x128xf32> to vector<2x128xf32>
    %114 = arith.addf %112, %113 : vector<2x128xf32>
    %cst_58 = arith.constant 0.000000e+00 : f32
    %115 = vector.broadcast %cst_58 : f32 to vector<2x128xf32>
    %116 = arith.maximumf %114, %115 : vector<2x128xf32>
    %cst_59 = arith.constant dense<0.000000e+00> : vector<2x384xf32>
    %117 = tpu.matmul %116, %2, %cst_59 {dimension_numbers = #tpu.dot_dimension_numbers<[1], [0], [0], [1], [0, 0, 1, 1], [], []>} : vector<2x128xf32>, vector<128x384xf32>, vector<2x384xf32> -> vector<2x384xf32>
    %118 = vector.broadcast %3 : vector<1x384xf32> to vector<2x384xf32>
    %119 = arith.addf %117, %118 : vector<2x384xf32>
    %120 = arith.index_cast %c7_i32 : i32 to index
    %c0_60 = arith.constant 0 : index
    %c0_61 = arith.constant 0 : index
    %121 = vector.load %arg14[%120, %c0_60, %c0_61] : memref<8x2x384xf32, #tpu.memory_space<vmem>>, vector<1x2x384xf32>
    %122 = vector.shape_cast %121 : vector<1x2x384xf32> to vector<2x384xf32>
    %123 = vector.shape_cast %119 : vector<2x384xf32> to vector<1x2x384xf32>
    tpu.vector_store %arg14[%120, %c0_60, %c0_61], %123 {strides = array<i32>} : memref<8x2x384xf32, #tpu.memory_space<vmem>>, vector<1x2x384xf32>,
    %c8_i32 = arith.constant 8 : i32
    %c0_62 = arith.constant 0 : index
    %c0_63 = arith.constant 0 : index
    %124 = vector.load %arg6[%c0_62, %c0_63] : memref<128x384xf32, #tpu.memory_space<vmem>>, vector<128x384xf32>
    %c0_64 = arith.constant 0 : index
    %c0_65 = arith.constant 0 : index
    %125 = vector.load %arg7[%c0_64, %c0_65] : memref<1x128xf32, #tpu.memory_space<vmem>>, vector<1x128xf32>
    %c0_66 = arith.constant 0 : index
    %c0_67 = arith.constant 0 : index
    %126 = vector.load %arg8[%c0_66, %c0_67] : memref<2x128xf32, #tpu.memory_space<vmem>>, vector<2x128xf32>
    %c0_i32_68 = arith.constant 0 : i32
    %cst_69 = arith.constant dense<0.000000e+00> : vector<2x384xf32>
    %127 = tpu.matmul %126, %124, %cst_69 {dimension_numbers = #tpu.dot_dimension_numbers<[1], [0], [0], [1], [0, 0, 1, 1], [], []>} : vector<2x128xf32>, vector<128x384xf32>, vector<2x384xf32> -> vector<2x384xf32>
    %128 = arith.index_cast %c0_i32_68 : i32 to index
    %c0_70 = arith.constant 0 : index
    %c0_71 = arith.constant 0 : index
    %129 = vector.load %arg14[%128, %c0_70, %c0_71] : memref<8x2x384xf32, #tpu.memory_space<vmem>>, vector<1x2x384xf32>
    %130 = vector.shape_cast %129 : vector<1x2x384xf32> to vector<2x384xf32>
    %131 = vector.extract_strided_slice %130 {offsets = [0, 0], sizes = [2, 128], strides = [1, 1]} : vector<2x384xf32> to vector<2x128xf32>
    %132 = vector.extract_strided_slice %127 {offsets = [0, 0], sizes = [2, 128], strides = [1, 1]} : vector<2x384xf32> to vector<2x128xf32>
    %133 = arith.addf %131, %132 : vector<2x128xf32>
    %134 = arith.negf %133 : vector<2x128xf32>
    %135 = math.exp %134 : vector<2x128xf32>
    %cst_72 = arith.constant 1.000000e+00 : f32
    %136 = vector.broadcast %cst_72 : f32 to vector<2x128xf32>
    %137 = arith.addf %136, %135 : vector<2x128xf32>
    %138 = arith.divf %136, %137 : vector<2x128xf32>
    %139 = vector.extract_strided_slice %130 {offsets = [0, 128], sizes = [2, 128], strides = [1, 1]} : vector<2x384xf32> to vector<2x128xf32>
    %140 = vector.extract_strided_slice %127 {offsets = [0, 128], sizes = [2, 128], strides = [1, 1]} : vector<2x384xf32> to vector<2x128xf32>
    %141 = arith.addf %139, %140 : vector<2x128xf32>
    %142 = arith.negf %141 : vector<2x128xf32>
    %143 = math.exp %142 : vector<2x128xf32>
    %cst_73 = arith.constant 1.000000e+00 : f32
    %144 = vector.broadcast %cst_73 : f32 to vector<2x128xf32>
    %145 = arith.addf %144, %143 : vector<2x128xf32>
    %146 = arith.divf %144, %145 : vector<2x128xf32>
    %147 = vector.extract_strided_slice %130 {offsets = [0, 256], sizes = [2, 128], strides = [1, 1]} : vector<2x384xf32> to vector<2x128xf32>
    %148 = vector.extract_strided_slice %127 {offsets = [0, 256], sizes = [2, 128], strides = [1, 1]} : vector<2x384xf32> to vector<2x128xf32>
    %149 = vector.broadcast %125 : vector<1x128xf32> to vector<2x128xf32>
    %150 = arith.addf %148, %149 : vector<2x128xf32>
    %151 = arith.mulf %138, %150 : vector<2x128xf32>
    %152 = arith.addf %147, %151 : vector<2x128xf32>
    %153 = math.tanh %152 : vector<2x128xf32>
    %cst_74 = arith.constant 1.000000e+00 : f32
    %154 = vector.broadcast %cst_74 : f32 to vector<2x128xf32>
    %155 = arith.subf %154, %146 : vector<2x128xf32>
    %156 = arith.mulf %155, %153 : vector<2x128xf32>
    %157 = arith.mulf %146, %126 : vector<2x128xf32>
    %158 = arith.addf %156, %157 : vector<2x128xf32>
    %159 = arith.index_cast %c0_i32_68 : i32 to index
    %c0_75 = arith.constant 0 : index
    %c0_76 = arith.constant 0 : index
    %160 = vector.load %arg14[%159, %c0_75, %c0_76] : memref<8x2x384xf32, #tpu.memory_space<vmem>>, vector<1x2x128xf32>
    %161 = vector.shape_cast %160 : vector<1x2x128xf32> to vector<2x128xf32>
    %162 = vector.shape_cast %158 : vector<2x128xf32> to vector<1x2x128xf32>
    tpu.vector_store %arg14[%159, %c0_75, %c0_76], %162 {strides = array<i32>} : memref<8x2x384xf32, #tpu.memory_space<vmem>>, vector<1x2x128xf32>,
    %c1_i32_77 = arith.constant 1 : i32
    %cst_78 = arith.constant dense<0.000000e+00> : vector<2x384xf32>
    %163 = tpu.matmul %158, %124, %cst_78 {dimension_numbers = #tpu.dot_dimension_numbers<[1], [0], [0], [1], [0, 0, 1, 1], [], []>} : vector<2x128xf32>, vector<128x384xf32>, vector<2x384xf32> -> vector<2x384xf32>
    %164 = arith.index_cast %c1_i32_77 : i32 to index
    %c0_79 = arith.constant 0 : index
    %c0_80 = arith.constant 0 : index
    %165 = vector.load %arg14[%164, %c0_79, %c0_80] : memref<8x2x384xf32, #tpu.memory_space<vmem>>, vector<1x2x384xf32>
    %166 = vector.shape_cast %165 : vector<1x2x384xf32> to vector<2x384xf32>
    %167 = vector.extract_strided_slice %166 {offsets = [0, 0], sizes = [2, 128], strides = [1, 1]} : vector<2x384xf32> to vector<2x128xf32>
    %168 = vector.extract_strided_slice %163 {offsets = [0, 0], sizes = [2, 128], strides = [1, 1]} : vector<2x384xf32> to vector<2x128xf32>
    %169 = arith.addf %167, %168 : vector<2x128xf32>
    %170 = arith.negf %169 : vector<2x128xf32>
    %171 = math.exp %170 : vector<2x128xf32>
    %cst_81 = arith.constant 1.000000e+00 : f32
    %172 = vector.broadcast %cst_81 : f32 to vector<2x128xf32>
    %173 = arith.addf %172, %171 : vector<2x128xf32>
    %174 = arith.divf %172, %173 : vector<2x128xf32>
    %175 = vector.extract_strided_slice %166 {offsets = [0, 128], sizes = [2, 128], strides = [1, 1]} : vector<2x384xf32> to vector<2x128xf32>
    %176 = vector.extract_strided_slice %163 {offsets = [0, 128], sizes = [2, 128], strides = [1, 1]} : vector<2x384xf32> to vector<2x128xf32>
    %177 = arith.addf %175, %176 : vector<2x128xf32>
    %178 = arith.negf %177 : vector<2x128xf32>
    %179 = math.exp %178 : vector<2x128xf32>
    %cst_82 = arith.constant 1.000000e+00 : f32
    %180 = vector.broadcast %cst_82 : f32 to vector<2x128xf32>
    %181 = arith.addf %180, %179 : vector<2x128xf32>
    %182 = arith.divf %180, %181 : vector<2x128xf32>
    %183 = vector.extract_strided_slice %166 {offsets = [0, 256], sizes = [2, 128], strides = [1, 1]} : vector<2x384xf32> to vector<2x128xf32>
    %184 = vector.extract_strided_slice %163 {offsets = [0, 256], sizes = [2, 128], strides = [1, 1]} : vector<2x384xf32> to vector<2x128xf32>
    %185 = vector.broadcast %125 : vector<1x128xf32> to vector<2x128xf32>
    %186 = arith.addf %184, %185 : vector<2x128xf32>
    %187 = arith.mulf %174, %186 : vector<2x128xf32>
    %188 = arith.addf %183, %187 : vector<2x128xf32>
    %189 = math.tanh %188 : vector<2x128xf32>
    %cst_83 = arith.constant 1.000000e+00 : f32
    %190 = vector.broadcast %cst_83 : f32 to vector<2x128xf32>
    %191 = arith.subf %190, %182 : vector<2x128xf32>
    %192 = arith.mulf %191, %189 : vector<2x128xf32>
    %193 = arith.mulf %182, %158 : vector<2x128xf32>
    %194 = arith.addf %192, %193 : vector<2x128xf32>
    %195 = arith.index_cast %c1_i32_77 : i32 to index
    %c0_84 = arith.constant 0 : index
    %c0_85 = arith.constant 0 : index
    %196 = vector.load %arg14[%195, %c0_84, %c0_85] : memref<8x2x384xf32, #tpu.memory_space<vmem>>, vector<1x2x128xf32>
    %197 = vector.shape_cast %196 : vector<1x2x128xf32> to vector<2x128xf32>
    %198 = vector.shape_cast %194 : vector<2x128xf32> to vector<1x2x128xf32>
    tpu.vector_store %arg14[%195, %c0_84, %c0_85], %198 {strides = array<i32>} : memref<8x2x384xf32, #tpu.memory_space<vmem>>, vector<1x2x128xf32>,
    %c2_i32_86 = arith.constant 2 : i32
    %cst_87 = arith.constant dense<0.000000e+00> : vector<2x384xf32>
    %199 = tpu.matmul %194, %124, %cst_87 {dimension_numbers = #tpu.dot_dimension_numbers<[1], [0], [0], [1], [0, 0, 1, 1], [], []>} : vector<2x128xf32>, vector<128x384xf32>, vector<2x384xf32> -> vector<2x384xf32>
    %200 = arith.index_cast %c2_i32_86 : i32 to index
    %c0_88 = arith.constant 0 : index
    %c0_89 = arith.constant 0 : index
    %201 = vector.load %arg14[%200, %c0_88, %c0_89] : memref<8x2x384xf32, #tpu.memory_space<vmem>>, vector<1x2x384xf32>
    %202 = vector.shape_cast %201 : vector<1x2x384xf32> to vector<2x384xf32>
    %203 = vector.extract_strided_slice %202 {offsets = [0, 0], sizes = [2, 128], strides = [1, 1]} : vector<2x384xf32> to vector<2x128xf32>
    %204 = vector.extract_strided_slice %199 {offsets = [0, 0], sizes = [2, 128], strides = [1, 1]} : vector<2x384xf32> to vector<2x128xf32>
    %205 = arith.addf %203, %204 : vector<2x128xf32>
    %206 = arith.negf %205 : vector<2x128xf32>
    %207 = math.exp %206 : vector<2x128xf32>
    %cst_90 = arith.constant 1.000000e+00 : f32
    %208 = vector.broadcast %cst_90 : f32 to vector<2x128xf32>
    %209 = arith.addf %208, %207 : vector<2x128xf32>
    %210 = arith.divf %208, %209 : vector<2x128xf32>
    %211 = vector.extract_strided_slice %202 {offsets = [0, 128], sizes = [2, 128], strides = [1, 1]} : vector<2x384xf32> to vector<2x128xf32>
    %212 = vector.extract_strided_slice %199 {offsets = [0, 128], sizes = [2, 128], strides = [1, 1]} : vector<2x384xf32> to vector<2x128xf32>
    %213 = arith.addf %211, %212 : vector<2x128xf32>
    %214 = arith.negf %213 : vector<2x128xf32>
    %215 = math.exp %214 : vector<2x128xf32>
    %cst_91 = arith.constant 1.000000e+00 : f32
    %216 = vector.broadcast %cst_91 : f32 to vector<2x128xf32>
    %217 = arith.addf %216, %215 : vector<2x128xf32>
    %218 = arith.divf %216, %217 : vector<2x128xf32>
    %219 = vector.extract_strided_slice %202 {offsets = [0, 256], sizes = [2, 128], strides = [1, 1]} : vector<2x384xf32> to vector<2x128xf32>
    %220 = vector.extract_strided_slice %199 {offsets = [0, 256], sizes = [2, 128], strides = [1, 1]} : vector<2x384xf32> to vector<2x128xf32>
    %221 = vector.broadcast %125 : vector<1x128xf32> to vector<2x128xf32>
    %222 = arith.addf %220, %221 : vector<2x128xf32>
    %223 = arith.mulf %210, %222 : vector<2x128xf32>
    %224 = arith.addf %219, %223 : vector<2x128xf32>
    %225 = math.tanh %224 : vector<2x128xf32>
    %cst_92 = arith.constant 1.000000e+00 : f32
    %226 = vector.broadcast %cst_92 : f32 to vector<2x128xf32>
    %227 = arith.subf %226, %218 : vector<2x128xf32>
    %228 = arith.mulf %227, %225 : vector<2x128xf32>
    %229 = arith.mulf %218, %194 : vector<2x128xf32>
    %230 = arith.addf %228, %229 : vector<2x128xf32>
    %231 = arith.index_cast %c2_i32_86 : i32 to index
    %c0_93 = arith.constant 0 : index
    %c0_94 = arith.constant 0 : index
    %232 = vector.load %arg14[%231, %c0_93, %c0_94] : memref<8x2x384xf32, #tpu.memory_space<vmem>>, vector<1x2x128xf32>
    %233 = vector.shape_cast %232 : vector<1x2x128xf32> to vector<2x128xf32>
    %234 = vector.shape_cast %230 : vector<2x128xf32> to vector<1x2x128xf32>
    tpu.vector_store %arg14[%231, %c0_93, %c0_94], %234 {strides = array<i32>} : memref<8x2x384xf32, #tpu.memory_space<vmem>>, vector<1x2x128xf32>,
    %c3_i32_95 = arith.constant 3 : i32
    %cst_96 = arith.constant dense<0.000000e+00> : vector<2x384xf32>
    %235 = tpu.matmul %230, %124, %cst_96 {dimension_numbers = #tpu.dot_dimension_numbers<[1], [0], [0], [1], [0, 0, 1, 1], [], []>} : vector<2x128xf32>, vector<128x384xf32>, vector<2x384xf32> -> vector<2x384xf32>
    %236 = arith.index_cast %c3_i32_95 : i32 to index
    %c0_97 = arith.constant 0 : index
    %c0_98 = arith.constant 0 : index
    %237 = vector.load %arg14[%236, %c0_97, %c0_98] : memref<8x2x384xf32, #tpu.memory_space<vmem>>, vector<1x2x384xf32>
    %238 = vector.shape_cast %237 : vector<1x2x384xf32> to vector<2x384xf32>
    %239 = vector.extract_strided_slice %238 {offsets = [0, 0], sizes = [2, 128], strides = [1, 1]} : vector<2x384xf32> to vector<2x128xf32>
    %240 = vector.extract_strided_slice %235 {offsets = [0, 0], sizes = [2, 128], strides = [1, 1]} : vector<2x384xf32> to vector<2x128xf32>
    %241 = arith.addf %239, %240 : vector<2x128xf32>
    %242 = arith.negf %241 : vector<2x128xf32>
    %243 = math.exp %242 : vector<2x128xf32>
    %cst_99 = arith.constant 1.000000e+00 : f32
    %244 = vector.broadcast %cst_99 : f32 to vector<2x128xf32>
    %245 = arith.addf %244, %243 : vector<2x128xf32>
    %246 = arith.divf %244, %245 : vector<2x128xf32>
    %247 = vector.extract_strided_slice %238 {offsets = [0, 128], sizes = [2, 128], strides = [1, 1]} : vector<2x384xf32> to vector<2x128xf32>
    %248 = vector.extract_strided_slice %235 {offsets = [0, 128], sizes = [2, 128], strides = [1, 1]} : vector<2x384xf32> to vector<2x128xf32>
    %249 = arith.addf %247, %248 : vector<2x128xf32>
    %250 = arith.negf %249 : vector<2x128xf32>
    %251 = math.exp %250 : vector<2x128xf32>
    %cst_100 = arith.constant 1.000000e+00 : f32
    %252 = vector.broadcast %cst_100 : f32 to vector<2x128xf32>
    %253 = arith.addf %252, %251 : vector<2x128xf32>
    %254 = arith.divf %252, %253 : vector<2x128xf32>
    %255 = vector.extract_strided_slice %238 {offsets = [0, 256], sizes = [2, 128], strides = [1, 1]} : vector<2x384xf32> to vector<2x128xf32>
    %256 = vector.extract_strided_slice %235 {offsets = [0, 256], sizes = [2, 128], strides = [1, 1]} : vector<2x384xf32> to vector<2x128xf32>
    %257 = vector.broadcast %125 : vector<1x128xf32> to vector<2x128xf32>
    %258 = arith.addf %256, %257 : vector<2x128xf32>
    %259 = arith.mulf %246, %258 : vector<2x128xf32>
    %260 = arith.addf %255, %259 : vector<2x128xf32>
    %261 = math.tanh %260 : vector<2x128xf32>
    %cst_101 = arith.constant 1.000000e+00 : f32
    %262 = vector.broadcast %cst_101 : f32 to vector<2x128xf32>
    %263 = arith.subf %262, %254 : vector<2x128xf32>
    %264 = arith.mulf %263, %261 : vector<2x128xf32>
    %265 = arith.mulf %254, %230 : vector<2x128xf32>
    %266 = arith.addf %264, %265 : vector<2x128xf32>
    %267 = arith.index_cast %c3_i32_95 : i32 to index
    %c0_102 = arith.constant 0 : index
    %c0_103 = arith.constant 0 : index
    %268 = vector.load %arg14[%267, %c0_102, %c0_103] : memref<8x2x384xf32, #tpu.memory_space<vmem>>, vector<1x2x128xf32>
    %269 = vector.shape_cast %268 : vector<1x2x128xf32> to vector<2x128xf32>
    %270 = vector.shape_cast %266 : vector<2x128xf32> to vector<1x2x128xf32>
    tpu.vector_store %arg14[%267, %c0_102, %c0_103], %270 {strides = array<i32>} : memref<8x2x384xf32, #tpu.memory_space<vmem>>, vector<1x2x128xf32>,
    %c4_i32_104 = arith.constant 4 : i32
    %cst_105 = arith.constant dense<0.000000e+00> : vector<2x384xf32>
    %271 = tpu.matmul %266, %124, %cst_105 {dimension_numbers = #tpu.dot_dimension_numbers<[1], [0], [0], [1], [0, 0, 1, 1], [], []>} : vector<2x128xf32>, vector<128x384xf32>, vector<2x384xf32> -> vector<2x384xf32>
    %272 = arith.index_cast %c4_i32_104 : i32 to index
    %c0_106 = arith.constant 0 : index
    %c0_107 = arith.constant 0 : index
    %273 = vector.load %arg14[%272, %c0_106, %c0_107] : memref<8x2x384xf32, #tpu.memory_space<vmem>>, vector<1x2x384xf32>
    %274 = vector.shape_cast %273 : vector<1x2x384xf32> to vector<2x384xf32>
    %275 = vector.extract_strided_slice %274 {offsets = [0, 0], sizes = [2, 128], strides = [1, 1]} : vector<2x384xf32> to vector<2x128xf32>
    %276 = vector.extract_strided_slice %271 {offsets = [0, 0], sizes = [2, 128], strides = [1, 1]} : vector<2x384xf32> to vector<2x128xf32>
    %277 = arith.addf %275, %276 : vector<2x128xf32>
    %278 = arith.negf %277 : vector<2x128xf32>
    %279 = math.exp %278 : vector<2x128xf32>
    %cst_108 = arith.constant 1.000000e+00 : f32
    %280 = vector.broadcast %cst_108 : f32 to vector<2x128xf32>
    %281 = arith.addf %280, %279 : vector<2x128xf32>
    %282 = arith.divf %280, %281 : vector<2x128xf32>
    %283 = vector.extract_strided_slice %274 {offsets = [0, 128], sizes = [2, 128], strides = [1, 1]} : vector<2x384xf32> to vector<2x128xf32>
    %284 = vector.extract_strided_slice %271 {offsets = [0, 128], sizes = [2, 128], strides = [1, 1]} : vector<2x384xf32> to vector<2x128xf32>
    %285 = arith.addf %283, %284 : vector<2x128xf32>
    %286 = arith.negf %285 : vector<2x128xf32>
    %287 = math.exp %286 : vector<2x128xf32>
    %cst_109 = arith.constant 1.000000e+00 : f32
    %288 = vector.broadcast %cst_109 : f32 to vector<2x128xf32>
    %289 = arith.addf %288, %287 : vector<2x128xf32>
    %290 = arith.divf %288, %289 : vector<2x128xf32>
    %291 = vector.extract_strided_slice %274 {offsets = [0, 256], sizes = [2, 128], strides = [1, 1]} : vector<2x384xf32> to vector<2x128xf32>
    %292 = vector.extract_strided_slice %271 {offsets = [0, 256], sizes = [2, 128], strides = [1, 1]} : vector<2x384xf32> to vector<2x128xf32>
    %293 = vector.broadcast %125 : vector<1x128xf32> to vector<2x128xf32>
    %294 = arith.addf %292, %293 : vector<2x128xf32>
    %295 = arith.mulf %282, %294 : vector<2x128xf32>
    %296 = arith.addf %291, %295 : vector<2x128xf32>
    %297 = math.tanh %296 : vector<2x128xf32>
    %cst_110 = arith.constant 1.000000e+00 : f32
    %298 = vector.broadcast %cst_110 : f32 to vector<2x128xf32>
    %299 = arith.subf %298, %290 : vector<2x128xf32>
    %300 = arith.mulf %299, %297 : vector<2x128xf32>
    %301 = arith.mulf %290, %266 : vector<2x128xf32>
    %302 = arith.addf %300, %301 : vector<2x128xf32>
    %303 = arith.index_cast %c4_i32_104 : i32 to index
    %c0_111 = arith.constant 0 : index
    %c0_112 = arith.constant 0 : index
    %304 = vector.load %arg14[%303, %c0_111, %c0_112] : memref<8x2x384xf32, #tpu.memory_space<vmem>>, vector<1x2x128xf32>
    %305 = vector.shape_cast %304 : vector<1x2x128xf32> to vector<2x128xf32>
    %306 = vector.shape_cast %302 : vector<2x128xf32> to vector<1x2x128xf32>
    tpu.vector_store %arg14[%303, %c0_111, %c0_112], %306 {strides = array<i32>} : memref<8x2x384xf32, #tpu.memory_space<vmem>>, vector<1x2x128xf32>,
    %c5_i32_113 = arith.constant 5 : i32
    %cst_114 = arith.constant dense<0.000000e+00> : vector<2x384xf32>
    %307 = tpu.matmul %302, %124, %cst_114 {dimension_numbers = #tpu.dot_dimension_numbers<[1], [0], [0], [1], [0, 0, 1, 1], [], []>} : vector<2x128xf32>, vector<128x384xf32>, vector<2x384xf32> -> vector<2x384xf32>
    %308 = arith.index_cast %c5_i32_113 : i32 to index
    %c0_115 = arith.constant 0 : index
    %c0_116 = arith.constant 0 : index
    %309 = vector.load %arg14[%308, %c0_115, %c0_116] : memref<8x2x384xf32, #tpu.memory_space<vmem>>, vector<1x2x384xf32>
    %310 = vector.shape_cast %309 : vector<1x2x384xf32> to vector<2x384xf32>
    %311 = vector.extract_strided_slice %310 {offsets = [0, 0], sizes = [2, 128], strides = [1, 1]} : vector<2x384xf32> to vector<2x128xf32>
    %312 = vector.extract_strided_slice %307 {offsets = [0, 0], sizes = [2, 128], strides = [1, 1]} : vector<2x384xf32> to vector<2x128xf32>
    %313 = arith.addf %311, %312 : vector<2x128xf32>
    %314 = arith.negf %313 : vector<2x128xf32>
    %315 = math.exp %314 : vector<2x128xf32>
    %cst_117 = arith.constant 1.000000e+00 : f32
    %316 = vector.broadcast %cst_117 : f32 to vector<2x128xf32>
    %317 = arith.addf %316, %315 : vector<2x128xf32>
    %318 = arith.divf %316, %317 : vector<2x128xf32>
    %319 = vector.extract_strided_slice %310 {offsets = [0, 128], sizes = [2, 128], strides = [1, 1]} : vector<2x384xf32> to vector<2x128xf32>
    %320 = vector.extract_strided_slice %307 {offsets = [0, 128], sizes = [2, 128], strides = [1, 1]} : vector<2x384xf32> to vector<2x128xf32>
    %321 = arith.addf %319, %320 : vector<2x128xf32>
    %322 = arith.negf %321 : vector<2x128xf32>
    %323 = math.exp %322 : vector<2x128xf32>
    %cst_118 = arith.constant 1.000000e+00 : f32
    %324 = vector.broadcast %cst_118 : f32 to vector<2x128xf32>
    %325 = arith.addf %324, %323 : vector<2x128xf32>
    %326 = arith.divf %324, %325 : vector<2x128xf32>
    %327 = vector.extract_strided_slice %310 {offsets = [0, 256], sizes = [2, 128], strides = [1, 1]} : vector<2x384xf32> to vector<2x128xf32>
    %328 = vector.extract_strided_slice %307 {offsets = [0, 256], sizes = [2, 128], strides = [1, 1]} : vector<2x384xf32> to vector<2x128xf32>
    %329 = vector.broadcast %125 : vector<1x128xf32> to vector<2x128xf32>
    %330 = arith.addf %328, %329 : vector<2x128xf32>
    %331 = arith.mulf %318, %330 : vector<2x128xf32>
    %332 = arith.addf %327, %331 : vector<2x128xf32>
    %333 = math.tanh %332 : vector<2x128xf32>
    %cst_119 = arith.constant 1.000000e+00 : f32
    %334 = vector.broadcast %cst_119 : f32 to vector<2x128xf32>
    %335 = arith.subf %334, %326 : vector<2x128xf32>
    %336 = arith.mulf %335, %333 : vector<2x128xf32>
    %337 = arith.mulf %326, %302 : vector<2x128xf32>
    %338 = arith.addf %336, %337 : vector<2x128xf32>
    %339 = arith.index_cast %c5_i32_113 : i32 to index
    %c0_120 = arith.constant 0 : index
    %c0_121 = arith.constant 0 : index
    %340 = vector.load %arg14[%339, %c0_120, %c0_121] : memref<8x2x384xf32, #tpu.memory_space<vmem>>, vector<1x2x128xf32>
    %341 = vector.shape_cast %340 : vector<1x2x128xf32> to vector<2x128xf32>
    %342 = vector.shape_cast %338 : vector<2x128xf32> to vector<1x2x128xf32>
    tpu.vector_store %arg14[%339, %c0_120, %c0_121], %342 {strides = array<i32>} : memref<8x2x384xf32, #tpu.memory_space<vmem>>, vector<1x2x128xf32>,
    %c6_i32_122 = arith.constant 6 : i32
    %cst_123 = arith.constant dense<0.000000e+00> : vector<2x384xf32>
    %343 = tpu.matmul %338, %124, %cst_123 {dimension_numbers = #tpu.dot_dimension_numbers<[1], [0], [0], [1], [0, 0, 1, 1], [], []>} : vector<2x128xf32>, vector<128x384xf32>, vector<2x384xf32> -> vector<2x384xf32>
    %344 = arith.index_cast %c6_i32_122 : i32 to index
    %c0_124 = arith.constant 0 : index
    %c0_125 = arith.constant 0 : index
    %345 = vector.load %arg14[%344, %c0_124, %c0_125] : memref<8x2x384xf32, #tpu.memory_space<vmem>>, vector<1x2x384xf32>
    %346 = vector.shape_cast %345 : vector<1x2x384xf32> to vector<2x384xf32>
    %347 = vector.extract_strided_slice %346 {offsets = [0, 0], sizes = [2, 128], strides = [1, 1]} : vector<2x384xf32> to vector<2x128xf32>
    %348 = vector.extract_strided_slice %343 {offsets = [0, 0], sizes = [2, 128], strides = [1, 1]} : vector<2x384xf32> to vector<2x128xf32>
    %349 = arith.addf %347, %348 : vector<2x128xf32>
    %350 = arith.negf %349 : vector<2x128xf32>
    %351 = math.exp %350 : vector<2x128xf32>
    %cst_126 = arith.constant 1.000000e+00 : f32
    %352 = vector.broadcast %cst_126 : f32 to vector<2x128xf32>
    %353 = arith.addf %352, %351 : vector<2x128xf32>
    %354 = arith.divf %352, %353 : vector<2x128xf32>
    %355 = vector.extract_strided_slice %346 {offsets = [0, 128], sizes = [2, 128], strides = [1, 1]} : vector<2x384xf32> to vector<2x128xf32>
    %356 = vector.extract_strided_slice %343 {offsets = [0, 128], sizes = [2, 128], strides = [1, 1]} : vector<2x384xf32> to vector<2x128xf32>
    %357 = arith.addf %355, %356 : vector<2x128xf32>
    %358 = arith.negf %357 : vector<2x128xf32>
    %359 = math.exp %358 : vector<2x128xf32>
    %cst_127 = arith.constant 1.000000e+00 : f32
    %360 = vector.broadcast %cst_127 : f32 to vector<2x128xf32>
    %361 = arith.addf %360, %359 : vector<2x128xf32>
    %362 = arith.divf %360, %361 : vector<2x128xf32>
    %363 = vector.extract_strided_slice %346 {offsets = [0, 256], sizes = [2, 128], strides = [1, 1]} : vector<2x384xf32> to vector<2x128xf32>
    %364 = vector.extract_strided_slice %343 {offsets = [0, 256], sizes = [2, 128], strides = [1, 1]} : vector<2x384xf32> to vector<2x128xf32>
    %365 = vector.broadcast %125 : vector<1x128xf32> to vector<2x128xf32>
    %366 = arith.addf %364, %365 : vector<2x128xf32>
    %367 = arith.mulf %354, %366 : vector<2x128xf32>
    %368 = arith.addf %363, %367 : vector<2x128xf32>
    %369 = math.tanh %368 : vector<2x128xf32>
    %cst_128 = arith.constant 1.000000e+00 : f32
    %370 = vector.broadcast %cst_128 : f32 to vector<2x128xf32>
    %371 = arith.subf %370, %362 : vector<2x128xf32>
    %372 = arith.mulf %371, %369 : vector<2x128xf32>
    %373 = arith.mulf %362, %338 : vector<2x128xf32>
    %374 = arith.addf %372, %373 : vector<2x128xf32>
    %375 = arith.index_cast %c6_i32_122 : i32 to index
    %c0_129 = arith.constant 0 : index
    %c0_130 = arith.constant 0 : index
    %376 = vector.load %arg14[%375, %c0_129, %c0_130] : memref<8x2x384xf32, #tpu.memory_space<vmem>>, vector<1x2x128xf32>
    %377 = vector.shape_cast %376 : vector<1x2x128xf32> to vector<2x128xf32>
    %378 = vector.shape_cast %374 : vector<2x128xf32> to vector<1x2x128xf32>
    tpu.vector_store %arg14[%375, %c0_129, %c0_130], %378 {strides = array<i32>} : memref<8x2x384xf32, #tpu.memory_space<vmem>>, vector<1x2x128xf32>,
    %c7_i32_131 = arith.constant 7 : i32
    %cst_132 = arith.constant dense<0.000000e+00> : vector<2x384xf32>
    %379 = tpu.matmul %374, %124, %cst_132 {dimension_numbers = #tpu.dot_dimension_numbers<[1], [0], [0], [1], [0, 0, 1, 1], [], []>} : vector<2x128xf32>, vector<128x384xf32>, vector<2x384xf32> -> vector<2x384xf32>
    %380 = arith.index_cast %c7_i32_131 : i32 to index
    %c0_133 = arith.constant 0 : index
    %c0_134 = arith.constant 0 : index
    %381 = vector.load %arg14[%380, %c0_133, %c0_134] : memref<8x2x384xf32, #tpu.memory_space<vmem>>, vector<1x2x384xf32>
    %382 = vector.shape_cast %381 : vector<1x2x384xf32> to vector<2x384xf32>
    %383 = vector.extract_strided_slice %382 {offsets = [0, 0], sizes = [2, 128], strides = [1, 1]} : vector<2x384xf32> to vector<2x128xf32>
    %384 = vector.extract_strided_slice %379 {offsets = [0, 0], sizes = [2, 128], strides = [1, 1]} : vector<2x384xf32> to vector<2x128xf32>
    %385 = arith.addf %383, %384 : vector<2x128xf32>
    %386 = arith.negf %385 : vector<2x128xf32>
    %387 = math.exp %386 : vector<2x128xf32>
    %cst_135 = arith.constant 1.000000e+00 : f32
    %388 = vector.broadcast %cst_135 : f32 to vector<2x128xf32>
    %389 = arith.addf %388, %387 : vector<2x128xf32>
    %390 = arith.divf %388, %389 : vector<2x128xf32>
    %391 = vector.extract_strided_slice %382 {offsets = [0, 128], sizes = [2, 128], strides = [1, 1]} : vector<2x384xf32> to vector<2x128xf32>
    %392 = vector.extract_strided_slice %379 {offsets = [0, 128], sizes = [2, 128], strides = [1, 1]} : vector<2x384xf32> to vector<2x128xf32>
    %393 = arith.addf %391, %392 : vector<2x128xf32>
    %394 = arith.negf %393 : vector<2x128xf32>
    %395 = math.exp %394 : vector<2x128xf32>
    %cst_136 = arith.constant 1.000000e+00 : f32
    %396 = vector.broadcast %cst_136 : f32 to vector<2x128xf32>
    %397 = arith.addf %396, %395 : vector<2x128xf32>
    %398 = arith.divf %396, %397 : vector<2x128xf32>
    %399 = vector.extract_strided_slice %382 {offsets = [0, 256], sizes = [2, 128], strides = [1, 1]} : vector<2x384xf32> to vector<2x128xf32>
    %400 = vector.extract_strided_slice %379 {offsets = [0, 256], sizes = [2, 128], strides = [1, 1]} : vector<2x384xf32> to vector<2x128xf32>
    %401 = vector.broadcast %125 : vector<1x128xf32> to vector<2x128xf32>
    %402 = arith.addf %400, %401 : vector<2x128xf32>
    %403 = arith.mulf %390, %402 : vector<2x128xf32>
    %404 = arith.addf %399, %403 : vector<2x128xf32>
    %405 = math.tanh %404 : vector<2x128xf32>
    %cst_137 = arith.constant 1.000000e+00 : f32
    %406 = vector.broadcast %cst_137 : f32 to vector<2x128xf32>
    %407 = arith.subf %406, %398 : vector<2x128xf32>
    %408 = arith.mulf %407, %405 : vector<2x128xf32>
    %409 = arith.mulf %398, %374 : vector<2x128xf32>
    %410 = arith.addf %408, %409 : vector<2x128xf32>
    %411 = arith.index_cast %c7_i32_131 : i32 to index
    %c0_138 = arith.constant 0 : index
    %c0_139 = arith.constant 0 : index
    %412 = vector.load %arg14[%411, %c0_138, %c0_139] : memref<8x2x384xf32, #tpu.memory_space<vmem>>, vector<1x2x128xf32>
    %413 = vector.shape_cast %412 : vector<1x2x128xf32> to vector<2x128xf32>
    %414 = vector.shape_cast %410 : vector<2x128xf32> to vector<1x2x128xf32>
    tpu.vector_store %arg14[%411, %c0_138, %c0_139], %414 {strides = array<i32>} : memref<8x2x384xf32, #tpu.memory_space<vmem>>, vector<1x2x128xf32>,
    %c8_i32_140 = arith.constant 8 : i32
    %c0_141 = arith.constant 0 : index
    %c0_142 = arith.constant 0 : index
    %c0_143 = arith.constant 0 : index
    %415 = vector.load %arg14[%c0_141, %c0_142, %c0_143] : memref<8x2x384xf32, #tpu.memory_space<vmem>>, vector<8x2x128xf32>
    %c0_144 = arith.constant 0 : index
    %c0_145 = arith.constant 0 : index
    %416 = vector.load %arg9[%c0_144, %c0_145] : memref<1x128xf32, #tpu.memory_space<vmem>>, vector<1x128xf32>
    %417 = vector.shape_cast %416 : vector<1x128xf32> to vector<1x1x128xf32>
    %418 = vector.broadcast %417 : vector<1x1x128xf32> to vector<8x2x128xf32>
    %419 = arith.mulf %415, %418 : vector<8x2x128xf32>
    %cst_146 = arith.constant dense<0.000000e+00> : vector<8x2xf32>
    %420 = vector.multi_reduction <add>, %419, %cst_146 [2] : vector<8x2x128xf32> to vector<8x2xf32>
    %c0_147 = arith.constant 0 : index
    %421 = memref.load %arg11[%c0_147] : memref<2xf32, #tpu.memory_space<smem>>
    %422 = vector.broadcast %421 : f32 to vector<8x2xf32>
    %423 = arith.addf %420, %422 : vector<8x2xf32>
    %c0_148 = arith.constant 0 : index
    %c0_149 = arith.constant 0 : index
    %c0_150 = arith.constant 0 : index
    %424 = vector.load %arg12[%c0_148, %c0_149, %c0_150] : memref<1x8x2xf32, #tpu.memory_space<vmem>>, vector<1x8x2xf32>
    %425 = vector.shape_cast %424 : vector<1x8x2xf32> to vector<8x2xf32>
    %426 = vector.shape_cast %423 : vector<8x2xf32> to vector<1x8x2xf32>
    tpu.vector_store %arg12[%c0_148, %c0_149, %c0_150], %426 {strides = array<i32>} : memref<1x8x2xf32, #tpu.memory_space<vmem>>, vector<1x8x2xf32>,
    %c0_151 = arith.constant 0 : index
    %c0_152 = arith.constant 0 : index
    %427 = vector.load %arg10[%c0_151, %c0_152] : memref<1x128xf32, #tpu.memory_space<vmem>>, vector<1x128xf32>
    %428 = vector.shape_cast %427 : vector<1x128xf32> to vector<1x1x128xf32>
    %429 = vector.broadcast %428 : vector<1x1x128xf32> to vector<8x2x128xf32>
    %430 = arith.mulf %415, %429 : vector<8x2x128xf32>
    %cst_153 = arith.constant dense<0.000000e+00> : vector<8x2xf32>
    %431 = vector.multi_reduction <add>, %430, %cst_153 [2] : vector<8x2x128xf32> to vector<8x2xf32>
    %c1 = arith.constant 1 : index
    %432 = memref.load %arg11[%c1] : memref<2xf32, #tpu.memory_space<smem>>
    %433 = vector.broadcast %432 : f32 to vector<8x2xf32>
    %434 = arith.addf %431, %433 : vector<8x2xf32>
    %c0_154 = arith.constant 0 : index
    %c0_155 = arith.constant 0 : index
    %c0_156 = arith.constant 0 : index
    %435 = vector.load %arg13[%c0_154, %c0_155, %c0_156] : memref<1x8x2xf32, #tpu.memory_space<vmem>>, vector<1x8x2xf32>
    %436 = vector.shape_cast %435 : vector<1x8x2xf32> to vector<8x2xf32>
    %437 = vector.shape_cast %434 : vector<8x2xf32> to vector<1x8x2xf32>
    tpu.vector_store %arg13[%c0_154, %c0_155, %c0_156], %437 {strides = array<i32>} : memref<1x8x2xf32, #tpu.memory_space<vmem>>, vector<1x8x2xf32>,
    return
  }
  func.func @transform_0(%arg0: i32) -> (i32, i32, i32) {
    %c0_i32 = arith.constant 0 : i32
    %c0_i32_0 = arith.constant 0 : i32
    %c0_i32_1 = arith.constant 0 : i32
    return %c0_i32, %arg0, %c0_i32_0 : i32, i32, i32
  }
  func.func @transform_1(%arg0: i32) -> (i32, i32) {
    %c0_i32 = arith.constant 0 : i32
    %c0_i32_0 = arith.constant 0 : i32
    %c0_i32_1 = arith.constant 0 : i32
    return %c0_i32, %c0_i32_0 : i32, i32
  }
  func.func @transform_2(%arg0: i32) -> (i32, i32) {
    %c0_i32 = arith.constant 0 : i32
    %c0_i32_0 = arith.constant 0 : i32
    %c0_i32_1 = arith.constant 0 : i32
    return %c0_i32, %c0_i32_0 : i32, i32
  }
  func.func @transform_3(%arg0: i32) -> (i32, i32) {
    %c0_i32 = arith.constant 0 : i32
    %c0_i32_0 = arith.constant 0 : i32
    %c0_i32_1 = arith.constant 0 : i32
    return %c0_i32, %c0_i32_0 : i32, i32
  }
  func.func @transform_4(%arg0: i32) -> (i32, i32) {
    %c0_i32 = arith.constant 0 : i32
    %c0_i32_0 = arith.constant 0 : i32
    %c0_i32_1 = arith.constant 0 : i32
    return %c0_i32, %c0_i32_0 : i32, i32
  }
  func.func @transform_5(%arg0: i32) -> (i32, i32) {
    %c0_i32 = arith.constant 0 : i32
    %c0_i32_0 = arith.constant 0 : i32
    %c0_i32_1 = arith.constant 0 : i32
    return %c0_i32, %c0_i32_0 : i32, i32
  }
  func.func @transform_6(%arg0: i32) -> (i32, i32) {
    %c0_i32 = arith.constant 0 : i32
    %c0_i32_0 = arith.constant 0 : i32
    %c0_i32_1 = arith.constant 0 : i32
    return %c0_i32, %c0_i32_0 : i32, i32
  }
  func.func @transform_7(%arg0: i32) -> (i32, i32) {
    %c0_i32 = arith.constant 0 : i32
    %c0_i32_0 = arith.constant 0 : i32
    return %arg0, %c0_i32 : i32, i32
  }
  func.func @transform_8(%arg0: i32) -> (i32, i32) {
    %c0_i32 = arith.constant 0 : i32
    %c0_i32_0 = arith.constant 0 : i32
    %c0_i32_1 = arith.constant 0 : i32
    return %c0_i32, %c0_i32_0 : i32, i32
  }
  func.func @transform_9(%arg0: i32) -> (i32, i32) {
    %c0_i32 = arith.constant 0 : i32
    %c0_i32_0 = arith.constant 0 : i32
    %c0_i32_1 = arith.constant 0 : i32
    return %c0_i32, %c0_i32_0 : i32, i32
  }
  func.func @transform_10(%arg0: i32) -> i32 {
    %c0_i32 = arith.constant 0 : i32
    %c0_i32_0 = arith.constant 0 : i32
    return %c0_i32 : i32
  }
  func.func @transform_11(%arg0: i32) -> (i32, i32, i32) {
    %c0_i32 = arith.constant 0 : i32
    %c0_i32_0 = arith.constant 0 : i32
    %c0_i32_1 = arith.constant 0 : i32
    return %arg0, %c0_i32, %c0_i32_0 : i32, i32, i32
  }
  func.func @transform_12(%arg0: i32) -> (i32, i32, i32) {
    %c0_i32 = arith.constant 0 : i32
    %c0_i32_0 = arith.constant 0 : i32
    %c0_i32_1 = arith.constant 0 : i32
    return %arg0, %c0_i32, %c0_i32_0 : i32, i32, i32
  }
}

</mosaic_0001>

<llo_original>
// kernel: critic2_forward.1
$region0: #{critic2_forward.1}
  #allocation0 [shape = 'u32[]', space=smem, size = 0x4, offset = 0x4, fixed_abs, tag = 'smem constant byte address 0x4 - core index']
  #allocation1 [shape = 'u32[144,128]{1,0:T(1,128)}', space=vmem, size = 0x12000, scoped, tag = 'internal scratch']
  #allocation2 [shape = 'f32[8,2,384]{2,1,0:T(2,128)}', space=vmem, size = 0x6000, scoped, tag = 'scratch operand']
  %s0 = inlined_call_operand.vmem [shape: f32[8,2,16], index: 0, kind: input, shape index: {}]
  %s1 = inlined_call_operand.vmem [shape: f32[16,128], index: 1, kind: input, shape index: {}]
  %s2 = inlined_call_operand.vmem [shape: f32[1,128], index: 2, kind: input, shape index: {}]
  %s3 = inlined_call_operand.vmem [shape: f32[128,384], index: 3, kind: input, shape index: {}]
  %s4 = inlined_call_operand.vmem [shape: f32[1,384], index: 4, kind: input, shape index: {}]
  %s5 = inlined_call_operand.vmem [shape: f32[128,384], index: 5, kind: input, shape index: {}]
  %s6 = inlined_call_operand.vmem [shape: f32[1,128], index: 6, kind: input, shape index: {}]
  %s7 = inlined_call_operand.vmem [shape: f32[2,128], index: 7, kind: input, shape index: {}]
  %s8 = inlined_call_operand.vmem [shape: f32[1,128], index: 8, kind: input, shape index: {}]
  %s9 = inlined_call_operand.vmem [shape: f32[1,128], index: 9, kind: input, shape index: {}]
  %s10 = inlined_call_operand.vmem [shape: f32[2], index: 10, kind: input, shape index: {}]
  %s11 = inlined_call_operand.vmem [shape: f32[1,8,2], index: 11, kind: output, shape index: {0}]
  %s12 = inlined_call_operand.vmem [shape: f32[1,8,2], index: 12, kind: output, shape index: {1}]
  %13 = xla_tuple %s11, %s12
  %s14 = sld [smem:[#allocation0]]
  $region66: #{critic2_forward.1} parent=0
    _
  %s16 = ssub.s32 1, %s14
  %s17 = scalar_select 0, %s16, %s14
  $region1: #{critic2_forward.1} parent=0
    #allocation3 [shape = 'u8[512]{0}', space=smem, size = 0x200, scoped, tag = 'input window, operand 10, single buffered']
    #allocation4 [shape = 's32[1]{0}', space=sflag, size = 0x4, scoped, tag = 'scoped memory for critic2_forward.1']
    %18 = vsyncpa [#allocation4], 0
    // Predicated region
    $region2: #{critic2_forward.1} parent=1 // pred_check
      _
    $region3: #{critic2_forward.1} parent=1 // pred_check_branch
      %20 = sbr.rel (0) target = $region5
    $region4: #{critic2_forward.1} parent=1 // pred_region
      _
    $region5: #{critic2_forward.1} parent=1 // pred_fallthru
      _
    // Predicated region
    $region6: #{critic2_forward.1} parent=1 // pred_check
      _
    $region7: #{critic2_forward.1} parent=1 // pred_check_branch
      %22 = sbr.rel (0) target = $region9
    $region8: #{critic2_forward.1} parent=1 // pred_region
      _
    $region9: #{critic2_forward.1} parent=1 // pred_fallthru
      _
    // Predicated region
    $region10: #{critic2_forward.1} parent=1 // pred_check
      _
    $region11: #{critic2_forward.1} parent=1 // pred_check_branch
      %24 = sbr.rel (0) target = $region13
    $region12: #{critic2_forward.1} parent=1 // pred_region
      _
    $region13: #{critic2_forward.1} parent=1 // pred_fallthru
      _
    // Predicated region
    $region14: #{critic2_forward.1} parent=1 // pred_check
      _
    $region15: #{critic2_forward.1} parent=1 // pred_check_branch
      %26 = sbr.rel (0) target = $region17
    $region16: #{critic2_forward.1} parent=1 // pred_region
      _
    $region17: #{critic2_forward.1} parent=1 // pred_fallthru
      _
    // Predicated region
    $region18: #{critic2_forward.1} parent=1 // pred_check
      _
    $region19: #{critic2_forward.1} parent=1 // pred_check_branch
      %28 = sbr.rel (0) target = $region21
    $region20: #{critic2_forward.1} parent=1 // pred_region
      _
    $region21: #{critic2_forward.1} parent=1 // pred_fallthru
      _
    // Predicated region
    $region22: #{critic2_forward.1} parent=1 // pred_check
      _
    $region23: #{critic2_forward.1} parent=1 // pred_check_branch
      %30 = sbr.rel (0) target = $region25
    $region24: #{critic2_forward.1} parent=1 // pred_region
      _
    $region25: #{critic2_forward.1} parent=1 // pred_fallthru
      _
    // Predicated region
    $region26: #{critic2_forward.1} parent=1 // pred_check
      _
    $region27: #{critic2_forward.1} parent=1 // pred_check_branch
      %32 = sbr.rel (0) target = $region29
    $region28: #{critic2_forward.1} parent=1 // pred_region
      _
    $region29: #{critic2_forward.1} parent=1 // pred_fallthru
      _
    // Predicated region
    $region30: #{critic2_forward.1} parent=1 // pred_check
      _
    $region31: #{critic2_forward.1} parent=1 // pred_check_branch
      %34 = sbr.rel (0) target = $region33
    $region32: #{critic2_forward.1} parent=1 // pred_region
      _
    $region33: #{critic2_forward.1} parent=1 // pred_fallthru
      _
    // Predicated region
    $region34: #{critic2_forward.1} parent=1 // pred_check
      _
    $region35: #{critic2_forward.1} parent=1 // pred_check_branch
      %36 = sbr.rel (0) target = $region37
    $region36: #{critic2_forward.1} parent=1 // pred_region
      _
    $region37: #{critic2_forward.1} parent=1 // pred_fallthru
      _
    // Predicated region
    $region38: #{critic2_forward.1} parent=1 // pred_check
      _
    $region39: #{critic2_forward.1} parent=1 // pred_check_branch
      %38 = sbr.rel (0) target = $region41
    $region40: #{critic2_forward.1} parent=1 // pred_region
      _
    $region41: #{critic2_forward.1} parent=1 // pred_fallthru
      _
    // Predicated region
    $region42: #{critic2_forward.1} parent=1 // pred_check
      _
    $region43: #{critic2_forward.1} parent=1 // pred_check_branch
      %40 = sbr.rel (0) target = $region45
    $region44: #{critic2_forward.1} parent=1 // pred_region
      %s42 = ssub.s32 16, 16
      %43 = vsyncadd [#allocation4], %s42
      %s45 = sshll.u32 %s10, 4
      %s46 = int_to_ptr.vmem [resolvable:$true] %s45
      %48 = dma.vmem_to_smem %s46, 16, [#allocation3], [#allocation4]
    $region45: #{critic2_forward.1} parent=1 // pred_fallthru
      _
    // Predicated region
    $region46: #{critic2_forward.1} parent=1 // pred_check
      _
    $region47: #{critic2_forward.1} parent=1 // pred_check_branch
      %50 = sbr.rel (0) target = $region49
    $region48: #{critic2_forward.1} parent=1 // pred_region
      %51 = dma.done [#allocation4], 16
    $region49: #{critic2_forward.1} parent=1 // pred_fallthru
      _
    %52 = sfence
    %v53 = vld [vmem:[%s1] sm:$0xff]
    %v54 = vld [vmem:[%s1 + $0x8] sm:$0xff]
    %v55 = vld [vmem:[%s2] sm:$0x1]
    %v56 = vld [vmem:[%s3] sm:$0xff]
    %v57 = vld [vmem:[%s3 + $0x8] sm:$0xff]
    %v58 = vld [vmem:[%s3 + $0x10] sm:$0xff]
    %v59 = vld [vmem:[%s3 + $0x18] sm:$0xff]
    %v60 = vld [vmem:[%s3 + $0x20] sm:$0xff]
    %v61 = vld [vmem:[%s3 + $0x28] sm:$0xff]
    %v62 = vld [vmem:[%s3 + $0x30] sm:$0xff]
    %v63 = vld [vmem:[%s3 + $0x38] sm:$0xff]
    %v64 = vld [vmem:[%s3 + $0x40] sm:$0xff]
    %v65 = vld [vmem:[%s3 + $0x48] sm:$0xff]
    %v66 = vld [vmem:[%s3 + $0x50] sm:$0xff]
    %v67 = vld [vmem:[%s3 + $0x58] sm:$0xff]
    %v68 = vld [vmem:[%s3 + $0x60] sm:$0xff]
    %v69 = vld [vmem:[%s3 + $0x68] sm:$0xff]
    %v70 = vld [vmem:[%s3 + $0x70] sm:$0xff]
    %v71 = vld [vmem:[%s3 + $0x78] sm:$0xff]
    %v72 = vld [vmem:[%s3 + $0x80] sm:$0xff]
    %v73 = vld [vmem:[%s3 + $0x88] sm:$0xff]
    %v74 = vld [vmem:[%s3 + $0x90] sm:$0xff]
    %v75 = vld [vmem:[%s3 + $0x98] sm:$0xff]
    %v76 = vld [vmem:[%s3 + $0xa0] sm:$0xff]
    %v77 = vld [vmem:[%s3 + $0xa8] sm:$0xff]
    %v78 = vld [vmem:[%s3 + $0xb0] sm:$0xff]
    %v79 = vld [vmem:[%s3 + $0xb8] sm:$0xff]
    %v80 = vld [vmem:[%s3 + $0xc0] sm:$0xff]
    %v81 = vld [vmem:[%s3 + $0xc8] sm:$0xff]
    %v82 = vld [vmem:[%s3 + $0xd0] sm:$0xff]
    %v83 = vld [vmem:[%s3 + $0xd8] sm:$0xff]
    %v84 = vld [vmem:[%s3 + $0xe0] sm:$0xff]
    %v85 = vld [vmem:[%s3 + $0xe8] sm:$0xff]
    %v86 = vld [vmem:[%s3 + $0xf0] sm:$0xff]
    %v87 = vld [vmem:[%s3 + $0xf8] sm:$0xff]
    %v88 = vld [vmem:[%s3 + $0x100] sm:$0xff]
    %v89 = vld [vmem:[%s3 + $0x108] sm:$0xff]
    %v90 = vld [vmem:[%s3 + $0x110] sm:$0xff]
    %v91 = vld [vmem:[%s3 + $0x118] sm:$0xff]
    %v92 = vld [vmem:[%s3 + $0x120] sm:$0xff]
    %v93 = vld [vmem:[%s3 + $0x128] sm:$0xff]
    %v94 = vld [vmem:[%s3 + $0x130] sm:$0xff]
    %v95 = vld [vmem:[%s3 + $0x138] sm:$0xff]
    %v96 = vld [vmem:[%s3 + $0x140] sm:$0xff]
    %v97 = vld [vmem:[%s3 + $0x148] sm:$0xff]
    %v98 = vld [vmem:[%s3 + $0x150] sm:$0xff]
    %v99 = vld [vmem:[%s3 + $0x158] sm:$0xff]
    %v100 = vld [vmem:[%s3 + $0x160] sm:$0xff]
    %v101 = vld [vmem:[%s3 + $0x168] sm:$0xff]
    %v102 = vld [vmem:[%s3 + $0x170] sm:$0xff]
    %v103 = vld [vmem:[%s3 + $0x178] sm:$0xff]
    %v104 = vld [vmem:[%s4] sm:$0x7]
    %v105 = vld [vmem:[%s0] sm:$0x3]
    %v107 = vlaneseq
    %v108 = vshrl.u32 %v107, 7
    %v109 = vsub.s32 0, %v108
    %v110 = vrot.slane %v55, %v109
    %vm112 = vcmask 130048
    %v114 = vsel %vm112, %v105, 0
    %116 = vmatprep.subr.mxu0 0.0
    %117 = vmatpush1.msra.mxu0 %v53
    %118 = vmatprep.subr.mxu0 0.0
    %119 = vmatpush1.msra.mxu0 %v54
    %120 = vmatprep.subr.mxu0 0.0
    %121 = vmatpush1.msra.mxu0 0.0
    %122 = vmatprep.subr.mxu0 0.0
    %123 = vmatpush1.msra.mxu0 0.0
    %124 = vmatprep.subr.mxu0 0.0
    %125 = vmatpush1.msra.mxu0 0.0
    %126 = vmatprep.subr.mxu0 0.0
    %127 = vmatpush1.msra.mxu0 0.0
    %128 = vmatprep.subr.mxu0 0.0
    %129 = vmatpush1.msra.mxu0 0.0
    %130 = vmatprep.subr.mxu0 0.0
    %131 = vmatpush1.msra.mxu0 0.0
    %132 = vmatprep.subr.mxu0 0.0
    %133 = vmatpush1.msra.mxu0 0.0
    %134 = vmatprep.subr.mxu0 0.0
    %135 = vmatpush1.msra.mxu0 0.0
    %136 = vmatprep.subr.mxu0 0.0
    %137 = vmatpush1.msra.mxu0 0.0
    %138 = vmatprep.subr.mxu0 0.0
    %139 = vmatpush1.msra.mxu0 0.0
    %140 = vmatprep.subr.mxu0 0.0
    %141 = vmatpush1.msra.mxu0 0.0
    %142 = vmatprep.subr.mxu0 0.0
    %143 = vmatpush1.msra.mxu0 0.0
    %144 = vmatprep.subr.mxu0 0.0
    %145 = vmatpush1.msra.mxu0 0.0
    %146 = vmatprep.subr.mxu0 0.0
    %147 = vmatpush1.msra.mxu0 0.0
    %148 = vmatprep.subr.mxu0 0.0
    %149 = vmatpush1.msra.mxu0 0.0
    %150 = vmatprep.subr.mxu0 0.0
    %151 = vmatpush1.msra.mxu0 0.0
    %152 = vmatprep.subr.mxu0 0.0
    %153 = vmatpush1.msra.mxu0 0.0
    %154 = vmatprep.subr.mxu0 0.0
    %155 = vmatpush1.msra.mxu0 0.0
    %156 = vmatprep.subr.mxu0 0.0
    %157 = vmatpush1.msra.mxu0 0.0
    %158 = vmatprep.subr.mxu0 0.0
    %159 = vmatpush1.msra.mxu0 0.0
    %160 = vmatprep.subr.mxu0 0.0
    %161 = vmatpush1.msra.mxu0 0.0
    %162 = vmatprep.subr.mxu0 0.0
    %163 = vmatpush1.msra.mxu0 0.0
    %164 = vmatprep.subr.mxu0 0.0
    %165 = vmatpush1.msra.mxu0 0.0
    %166 = vmatprep.subr.mxu0 0.0
    %167 = vmatpush1.msra.mxu0 0.0
    %168 = vmatprep.subr.mxu0 0.0
    %169 = vmatpush1.msra.mxu0 0.0
    %170 = vmatprep.subr.mxu0 0.0
    %171 = vmatpush1.msra.mxu0 0.0
    %172 = vmatprep.subr.mxu0 0.0
    %173 = vmatpush1.msra.mxu0 0.0
    %174 = vmatprep.subr.mxu0 0.0
    %175 = vmatpush1.msra.mxu0 0.0
    %176 = vmatprep.subr.mxu0 0.0
    %177 = vmatpush1.msra.mxu0 0.0
    %178 = vmatprep.subr.mxu0 0.0
    %179 = vmatpush1.msra.mxu0 0.0
    %180 = vmatprep.mubr.f32.mxu0 0.0
    %181 = vmatmul.mubr.f32.gmra.mrb[0].mxu0 %v114
    %v182 = vpop.f32.mrb[0].mxu0
    %v183 = vadd.f32 %v110, %v182
    %v184 = vpop.f32.mrb[0].mxu0
    %185 = vdwg.mxu0
    %v186 = vmax.f32 %v183, 0.0
    %v188 = vlaneseq
    %v189 = vshrl.u32 %v188, 7
    %v190 = vsub.s32 0, %v189
    %v191 = vrot.slane %v104, %v190
    %v192 = vlaneseq
    %v193 = vshrl.u32 %v192, 7
    %v194 = vsub.s32 1, %v193
    %v195 = vrot.slane %v104, %v194
    %v196 = vlaneseq
    %v197 = vshrl.u32 %v196, 7
    %v198 = vsub.s32 2, %v197
    %v199 = vrot.slane %v104, %v198
    %203 = vmatprep.subr.mxu0 %v57
    %204 = vmatpush1.msra.mxu0 %v56
    %205 = vmatprep.subr.mxu0 %v60
    %206 = vmatpush1.msra.mxu0 %v59
    %207 = vmatprep.subr.mxu0 %v63
    %208 = vmatpush1.msra.mxu0 %v62
    %209 = vmatprep.subr.mxu0 %v66
    %210 = vmatpush1.msra.mxu0 %v65
    %211 = vmatprep.subr.mxu0 %v69
    %212 = vmatpush1.msra.mxu0 %v68
    %213 = vmatprep.subr.mxu0 %v72
    %214 = vmatpush1.msra.mxu0 %v71
    %215 = vmatprep.subr.mxu0 %v75
    %216 = vmatpush1.msra.mxu0 %v74
    %217 = vmatprep.subr.mxu0 %v78
    %218 = vmatpush1.msra.mxu0 %v77
    %219 = vmatprep.subr.mxu0 %v81
    %220 = vmatpush1.msra.mxu0 %v80
    %221 = vmatprep.subr.mxu0 %v84
    %222 = vmatpush1.msra.mxu0 %v83
    %223 = vmatprep.subr.mxu0 %v87
    %224 = vmatpush1.msra.mxu0 %v86
    %225 = vmatprep.subr.mxu0 %v90
    %226 = vmatpush1.msra.mxu0 %v89
    %227 = vmatprep.subr.mxu0 %v93
    %228 = vmatpush1.msra.mxu0 %v92
    %229 = vmatprep.subr.mxu0 %v96
    %230 = vmatpush1.msra.mxu0 %v95
    %231 = vmatprep.subr.mxu0 %v99
    %232 = vmatpush1.msra.mxu0 %v98
    %233 = vmatprep.subr.mxu0 %v102
    %234 = vmatpush1.msra.mxu0 %v101
    %235 = vmatprep.subr.mxu0 0.0
    %236 = vmatpush1.msra.mxu0 0.0
    %237 = vmatprep.subr.mxu0 0.0
    %238 = vmatpush1.msra.mxu0 0.0
    %239 = vmatprep.subr.mxu0 0.0
    %240 = vmatpush1.msra.mxu0 0.0
    %241 = vmatprep.subr.mxu0 0.0
    %242 = vmatpush1.msra.mxu0 0.0
    %243 = vmatprep.subr.mxu0 0.0
    %244 = vmatpush1.msra.mxu0 0.0
    %245 = vmatprep.subr.mxu0 0.0
    %246 = vmatpush1.msra.mxu0 0.0
    %247 = vmatprep.subr.mxu0 0.0
    %248 = vmatpush1.msra.mxu0 0.0
    %249 = vmatprep.subr.mxu0 0.0
    %250 = vmatpush1.msra.mxu0 0.0
    %251 = vmatprep.subr.mxu0 0.0
    %252 = vmatpush1.msra.mxu0 0.0
    %253 = vmatprep.subr.mxu0 0.0
    %254 = vmatpush1.msra.mxu0 0.0
    %255 = vmatprep.subr.mxu0 0.0
    %256 = vmatpush1.msra.mxu0 0.0
    %257 = vmatprep.subr.mxu0 0.0
    %258 = vmatpush1.msra.mxu0 0.0
    %259 = vmatprep.subr.mxu0 0.0
    %260 = vmatpush1.msra.mxu0 0.0
    %261 = vmatprep.subr.mxu0 0.0
    %262 = vmatpush1.msra.mxu0 0.0
    %263 = vmatprep.subr.mxu0 0.0
    %264 = vmatpush1.msra.mxu0 0.0
    %265 = vmatprep.subr.mxu0 0.0
    %266 = vmatpush1.msra.mxu0 0.0
    %267 = vmatprep.mubr.f32.mxu0 0.0
    %268 = vmatmul.mubr.f32.gmra.mrb[0].mxu0 %v186
    %v269 = vpop.f32.mrb[0].mxu0
    %v270 = vadd.f32 %v191, %v269
    %v271 = vpop.f32.mrb[0].mxu0
    %v272 = vadd.f32 %v195, %v271
    %273 = vdwg.mxu0
    %274 = vmatprep.subr.mxu0 0.0
    %275 = vmatpush1.msra.mxu0 %v58
    %276 = vmatprep.subr.mxu0 0.0
    %277 = vmatpush1.msra.mxu0 %v61
    %278 = vmatprep.subr.mxu0 0.0
    %279 = vmatpush1.msra.mxu0 %v64
    %280 = vmatprep.subr.mxu0 0.0
    %281 = vmatpush1.msra.mxu0 %v67
    %282 = vmatprep.subr.mxu0 0.0
    %283 = vmatpush1.msra.mxu0 %v70
    %284 = vmatprep.subr.mxu0 0.0
    %285 = vmatpush1.msra.mxu0 %v73
    %286 = vmatprep.subr.mxu0 0.0
    %287 = vmatpush1.msra.mxu0 %v76
    %288 = vmatprep.subr.mxu0 0.0
    %289 = vmatpush1.msra.mxu0 %v79
    %290 = vmatprep.subr.mxu0 0.0
    %291 = vmatpush1.msra.mxu0 %v82
    %292 = vmatprep.subr.mxu0 0.0
    %293 = vmatpush1.msra.mxu0 %v85
    %294 = vmatprep.subr.mxu0 0.0
    %295 = vmatpush1.msra.mxu0 %v88
    %296 = vmatprep.subr.mxu0 0.0
    %297 = vmatpush1.msra.mxu0 %v91
    %298 = vmatprep.subr.mxu0 0.0
    %299 = vmatpush1.msra.mxu0 %v94
    %300 = vmatprep.subr.mxu0 0.0
    %301 = vmatpush1.msra.mxu0 %v97
    %302 = vmatprep.subr.mxu0 0.0
    %303 = vmatpush1.msra.mxu0 %v100
    %304 = vmatprep.subr.mxu0 0.0
    %305 = vmatpush1.msra.mxu0 %v103
    %306 = vmatprep.subr.mxu0 0.0
    %307 = vmatpush1.msra.mxu0 0.0
    %308 = vmatprep.subr.mxu0 0.0
    %309 = vmatpush1.msra.mxu0 0.0
    %310 = vmatprep.subr.mxu0 0.0
    %311 = vmatpush1.msra.mxu0 0.0
    %312 = vmatprep.subr.mxu0 0.0
    %313 = vmatpush1.msra.mxu0 0.0
    %314 = vmatprep.subr.mxu0 0.0
    %315 = vmatpush1.msra.mxu0 0.0
    %316 = vmatprep.subr.mxu0 0.0
    %317 = vmatpush1.msra.mxu0 0.0
    %318 = vmatprep.subr.mxu0 0.0
    %319 = vmatpush1.msra.mxu0 0.0
    %320 = vmatprep.subr.mxu0 0.0
    %321 = vmatpush1.msra.mxu0 0.0
    %322 = vmatprep.subr.mxu0 0.0
    %323 = vmatpush1.msra.mxu0 0.0
    %324 = vmatprep.subr.mxu0 0.0
    %325 = vmatpush1.msra.mxu0 0.0
    %326 = vmatprep.subr.mxu0 0.0
    %327 = vmatpush1.msra.mxu0 0.0
    %328 = vmatprep.subr.mxu0 0.0
    %329 = vmatpush1.msra.mxu0 0.0
    %330 = vmatprep.subr.mxu0 0.0
    %331 = vmatpush1.msra.mxu0 0.0
    %332 = vmatprep.subr.mxu0 0.0
    %333 = vmatpush1.msra.mxu0 0.0
    %334 = vmatprep.subr.mxu0 0.0
    %335 = vmatpush1.msra.mxu0 0.0
    %336 = vmatprep.subr.mxu0 0.0
    %337 = vmatpush1.msra.mxu0 0.0
    %338 = vmatprep.mubr.f32.mxu0 0.0
    %339 = vmatmul.mubr.f32.gmra.mrb[0].mxu0 %v186
    %v340 = vpop.f32.mrb[0].mxu0
    %v341 = vadd.f32 %v199, %v340
    %v342 = vpop.f32.mrb[0].mxu0
    %343 = vdwg.mxu0
    %v347 = vcombine.low %v270, %v272
    %v349 = vunpack.c.l.s4 1983009808
    %v350 = vunpack.c.0.s8 %v349
    %v351 = vlaneseq
    %v352 = vshrl.u32 %v351, 7
    %v353 = vsub.s32 %v350, %v352
    %v354 = vrot.slane %v347, %v353
    %v356 = vunpack.c.l.s4 1983009808
    %v357 = vunpack.c.0.s8 %v356
    %v358 = vlaneseq
    %v359 = vshrl.u32 %v358, 7
    %v360 = vsub.s32 %v357, %v359
    %v361 = vrot.slane %v341, %v360
    %v362 = vcombine.low %v354, %v361
    %364 = vst [vmem:[#allocation2] sm:$0x3f] %v362
    %s365 = scalar_lea.vmem %s0, 2
    %v366 = vld [vmem:[%s365] sm:$0x3]
    %v368 = vsel %vm112, %v366, 0
    %370 = vmatprep.subr.mxu0 0.0
    %371 = vmatpush1.msra.mxu0 %v53
    %372 = vmatprep.subr.mxu0 0.0
    %373 = vmatpush1.msra.mxu0 %v54
    %374 = vmatprep.subr.mxu0 0.0
    %375 = vmatpush1.msra.mxu0 0.0
    %376 = vmatprep.subr.mxu0 0.0
    %377 = vmatpush1.msra.mxu0 0.0
    %378 = vmatprep.subr.mxu0 0.0
    %379 = vmatpush1.msra.mxu0 0.0
    %380 = vmatprep.subr.mxu0 0.0
    %381 = vmatpush1.msra.mxu0 0.0
    %382 = vmatprep.subr.mxu0 0.0
    %383 = vmatpush1.msra.mxu0 0.0
    %384 = vmatprep.subr.mxu0 0.0
    %385 = vmatpush1.msra.mxu0 0.0
    %386 = vmatprep.subr.mxu0 0.0
    %387 = vmatpush1.msra.mxu0 0.0
    %388 = vmatprep.subr.mxu0 0.0
    %389 = vmatpush1.msra.mxu0 0.0
    %390 = vmatprep.subr.mxu0 0.0
    %391 = vmatpush1.msra.mxu0 0.0
    %392 = vmatprep.subr.mxu0 0.0
    %393 = vmatpush1.msra.mxu0 0.0
    %394 = vmatprep.subr.mxu0 0.0
    %395 = vmatpush1.msra.mxu0 0.0
    %396 = vmatprep.subr.mxu0 0.0
    %397 = vmatpush1.msra.mxu0 0.0
    %398 = vmatprep.subr.mxu0 0.0
    %399 = vmatpush1.msra.mxu0 0.0
    %400 = vmatprep.subr.mxu0 0.0
    %401 = vmatpush1.msra.mxu0 0.0
    %402 = vmatprep.subr.mxu0 0.0
    %403 = vmatpush1.msra.mxu0 0.0
    %404 = vmatprep.subr.mxu0 0.0
    %405 = vmatpush1.msra.mxu0 0.0
    %406 = vmatprep.subr.mxu0 0.0
    %407 = vmatpush1.msra.mxu0 0.0
    %408 = vmatprep.subr.mxu0 0.0
    %409 = vmatpush1.msra.mxu0 0.0
    %410 = vmatprep.subr.mxu0 0.0
    %411 = vmatpush1.msra.mxu0 0.0
    %412 = vmatprep.subr.mxu0 0.0
    %413 = vmatpush1.msra.mxu0 0.0
    %414 = vmatprep.subr.mxu0 0.0
    %415 = vmatpush1.msra.mxu0 0.0
    %416 = vmatprep.subr.mxu0 0.0
    %417 = vmatpush1.msra.mxu0 0.0
    %418 = vmatprep.subr.mxu0 0.0
    %419 = vmatpush1.msra.mxu0 0.0
    %420 = vmatprep.subr.mxu0 0.0
    %421 = vmatpush1.msra.mxu0 0.0
    %422 = vmatprep.subr.mxu0 0.0
    %423 = vmatpush1.msra.mxu0 0.0
    %424 = vmatprep.subr.mxu0 0.0
    %425 = vmatpush1.msra.mxu0 0.0
    %426 = vmatprep.subr.mxu0 0.0
    %427 = vmatpush1.msra.mxu0 0.0
    %428 = vmatprep.subr.mxu0 0.0
    %429 = vmatpush1.msra.mxu0 0.0
    %430 = vmatprep.subr.mxu0 0.0
    %431 = vmatpush1.msra.mxu0 0.0
    %432 = vmatprep.subr.mxu0 0.0
    %433 = vmatpush1.msra.mxu0 0.0
    %434 = vmatprep.mubr.f32.mxu0 0.0
    %435 = vmatmul.mubr.f32.gmra.mrb[0].mxu0 %v368
    %v436 = vpop.f32.mrb[0].mxu0
    %v437 = vadd.f32 %v110, %v436
    %v438 = vpop.f32.mrb[0].mxu0
    %439 = vdwg.mxu0
    %v440 = vmax.f32 %v437, 0.0
    %441 = vmatprep.subr.mxu0 %v57
    %442 = vmatpush1.msra.mxu0 %v56
    %443 = vmatprep.subr.mxu0 %v60
    %444 = vmatpush1.msra.mxu0 %v59
    %445 = vmatprep.subr.mxu0 %v63
    %446 = vmatpush1.msra.mxu0 %v62
    %447 = vmatprep.subr.mxu0 %v66
    %448 = vmatpush1.msra.mxu0 %v65
    %449 = vmatprep.subr.mxu0 %v69
    %450 = vmatpush1.msra.mxu0 %v68
    %451 = vmatprep.subr.mxu0 %v72
    %452 = vmatpush1.msra.mxu0 %v71
    %453 = vmatprep.subr.mxu0 %v75
    %454 = vmatpush1.msra.mxu0 %v74
    %455 = vmatprep.subr.mxu0 %v78
    %456 = vmatpush1.msra.mxu0 %v77
    %457 = vmatprep.subr.mxu0 %v81
    %458 = vmatpush1.msra.mxu0 %v80
    %459 = vmatprep.subr.mxu0 %v84
    %460 = vmatpush1.msra.mxu0 %v83
    %461 = vmatprep.subr.mxu0 %v87
    %462 = vmatpush1.msra.mxu0 %v86
    %463 = vmatprep.subr.mxu0 %v90
    %464 = vmatpush1.msra.mxu0 %v89
    %465 = vmatprep.subr.mxu0 %v93
    %466 = vmatpush1.msra.mxu0 %v92
    %467 = vmatprep.subr.mxu0 %v96
    %468 = vmatpush1.msra.mxu0 %v95
    %469 = vmatprep.subr.mxu0 %v99
    %470 = vmatpush1.msra.mxu0 %v98
    %471 = vmatprep.subr.mxu0 %v102
    %472 = vmatpush1.msra.mxu0 %v101
    %473 = vmatprep.subr.mxu0 0.0
    %474 = vmatpush1.msra.mxu0 0.0
    %475 = vmatprep.subr.mxu0 0.0
    %476 = vmatpush1.msra.mxu0 0.0
    %477 = vmatprep.subr.mxu0 0.0
    %478 = vmatpush1.msra.mxu0 0.0
    %479 = vmatprep.subr.mxu0 0.0
    %480 = vmatpush1.msra.mxu0 0.0
    %481 = vmatprep.subr.mxu0 0.0
    %482 = vmatpush1.msra.mxu0 0.0
    %483 = vmatprep.subr.mxu0 0.0
    %484 = vmatpush1.msra.mxu0 0.0
    %485 = vmatprep.subr.mxu0 0.0
    %486 = vmatpush1.msra.mxu0 0.0
    %487 = vmatprep.subr.mxu0 0.0
    %488 = vmatpush1.msra.mxu0 0.0
    %489 = vmatprep.subr.mxu0 0.0
    %490 = vmatpush1.msra.mxu0 0.0
    %491 = vmatprep.subr.mxu0 0.0
    %492 = vmatpush1.msra.mxu0 0.0
    %493 = vmatprep.subr.mxu0 0.0
    %494 = vmatpush1.msra.mxu0 0.0
    %495 = vmatprep.subr.mxu0 0.0
    %496 = vmatpush1.msra.mxu0 0.0
    %497 = vmatprep.subr.mxu0 0.0
    %498 = vmatpush1.msra.mxu0 0.0
    %499 = vmatprep.subr.mxu0 0.0
    %500 = vmatpush1.msra.mxu0 0.0
    %501 = vmatprep.subr.mxu0 0.0
    %502 = vmatpush1.msra.mxu0 0.0
    %503 = vmatprep.subr.mxu0 0.0
    %504 = vmatpush1.msra.mxu0 0.0
    %505 = vmatprep.mubr.f32.mxu0 0.0
    %506 = vmatmul.mubr.f32.gmra.mrb[0].mxu0 %v440
    %v507 = vpop.f32.mrb[0].mxu0
    %v508 = vadd.f32 %v191, %v507
    %v509 = vpop.f32.mrb[0].mxu0
    %v510 = vadd.f32 %v195, %v509
    %511 = vdwg.mxu0
    %512 = vmatprep.subr.mxu0 0.0
    %513 = vmatpush1.msra.mxu0 %v58
    %514 = vmatprep.subr.mxu0 0.0
    %515 = vmatpush1.msra.mxu0 %v61
    %516 = vmatprep.subr.mxu0 0.0
    %517 = vmatpush1.msra.mxu0 %v64
    %518 = vmatprep.subr.mxu0 0.0
    %519 = vmatpush1.msra.mxu0 %v67
    %520 = vmatprep.subr.mxu0 0.0
    %521 = vmatpush1.msra.mxu0 %v70
    %522 = vmatprep.subr.mxu0 0.0
    %523 = vmatpush1.msra.mxu0 %v73
    %524 = vmatprep.subr.mxu0 0.0
    %525 = vmatpush1.msra.mxu0 %v76
    %526 = vmatprep.subr.mxu0 0.0
    %527 = vmatpush1.msra.mxu0 %v79
    %528 = vmatprep.subr.mxu0 0.0
    %529 = vmatpush1.msra.mxu0 %v82
    %530 = vmatprep.subr.mxu0 0.0
    %531 = vmatpush1.msra.mxu0 %v85
    %532 = vmatprep.subr.mxu0 0.0
    %533 = vmatpush1.msra.mxu0 %v88
    %534 = vmatprep.subr.mxu0 0.0
    %535 = vmatpush1.msra.mxu0 %v91
    %536 = vmatprep.subr.mxu0 0.0
    %537 = vmatpush1.msra.mxu0 %v94
    %538 = vmatprep.subr.mxu0 0.0
    %539 = vmatpush1.msra.mxu0 %v97
    %540 = vmatprep.subr.mxu0 0.0
    %541 = vmatpush1.msra.mxu0 %v100
    %542 = vmatprep.subr.mxu0 0.0
    %543 = vmatpush1.msra.mxu0 %v103
    %544 = vmatprep.subr.mxu0 0.0
    %545 = vmatpush1.msra.mxu0 0.0
    %546 = vmatprep.subr.mxu0 0.0
    %547 = vmatpush1.msra.mxu0 0.0
    %548 = vmatprep.subr.mxu0 0.0
    %549 = vmatpush1.msra.mxu0 0.0
    %550 = vmatprep.subr.mxu0 0.0
    %551 = vmatpush1.msra.mxu0 0.0
    %552 = vmatprep.subr.mxu0 0.0
    %553 = vmatpush1.msra.mxu0 0.0
    %554 = vmatprep.subr.mxu0 0.0
    %555 = vmatpush1.msra.mxu0 0.0
    %556 = vmatprep.subr.mxu0 0.0
    %557 = vmatpush1.msra.mxu0 0.0
    %558 = vmatprep.subr.mxu0 0.0
    %559 = vmatpush1.msra.mxu0 0.0
    %560 = vmatprep.subr.mxu0 0.0
    %561 = vmatpush1.msra.mxu0 0.0
    %562 = vmatprep.subr.mxu0 0.0
    %563 = vmatpush1.msra.mxu0 0.0
    %564 = vmatprep.subr.mxu0 0.0
    %565 = vmatpush1.msra.mxu0 0.0
    %566 = vmatprep.subr.mxu0 0.0
    %567 = vmatpush1.msra.mxu0 0.0
    %568 = vmatprep.subr.mxu0 0.0
    %569 = vmatpush1.msra.mxu0 0.0
    %570 = vmatprep.subr.mxu0 0.0
    %571 = vmatpush1.msra.mxu0 0.0
    %572 = vmatprep.subr.mxu0 0.0
    %573 = vmatpush1.msra.mxu0 0.0
    %574 = vmatprep.subr.mxu0 0.0
    %575 = vmatpush1.msra.mxu0 0.0
    %576 = vmatprep.mubr.f32.mxu0 0.0
    %577 = vmatmul.mubr.f32.gmra.mrb[0].mxu0 %v440
    %v578 = vpop.f32.mrb[0].mxu0
    %v579 = vadd.f32 %v199, %v578
    %v580 = vpop.f32.mrb[0].mxu0
    %581 = vdwg.mxu0
    %v585 = vcombine.low %v508, %v510
    %v587 = vunpack.c.l.s4 1983009808
    %v588 = vunpack.c.0.s8 %v587
    %v589 = vlaneseq
    %v590 = vshrl.u32 %v589, 7
    %v591 = vsub.s32 %v588, %v590
    %v592 = vrot.slane %v585, %v591
    %v594 = vunpack.c.l.s4 1983009808
    %v595 = vunpack.c.0.s8 %v594
    %v596 = vlaneseq
    %v597 = vshrl.u32 %v596, 7
    %v598 = vsub.s32 %v595, %v597
    %v599 = vrot.slane %v579, %v598
    %v600 = vcombine.low %v592, %v599
    %s602 = scalar_lea.vmem [#allocation2], 6
    %603 = vst [vmem:[%s602] sm:$0x3f] %v600
    %s604 = scalar_lea.vmem %s0, 4
    %v605 = vld [vmem:[%s604] sm:$0x3]
    %v607 = vsel %vm112, %v605, 0
    %609 = vmatprep.subr.mxu0 0.0
    %610 = vmatpush1.msra.mxu0 %v53
    %611 = vmatprep.subr.mxu0 0.0
    %612 = vmatpush1.msra.mxu0 %v54
    %613 = vmatprep.subr.mxu0 0.0
    %614 = vmatpush1.msra.mxu0 0.0
    %615 = vmatprep.subr.mxu0 0.0
    %616 = vmatpush1.msra.mxu0 0.0
    %617 = vmatprep.subr.mxu0 0.0
    %618 = vmatpush1.msra.mxu0 0.0
    %619 = vmatprep.subr.mxu0 0.0
    %620 = vmatpush1.msra.mxu0 0.0
    %621 = vmatprep.subr.mxu0 0.0
    %622 = vmatpush1.msra.mxu0 0.0
    %623 = vmatprep.subr.mxu0 0.0
    %624 = vmatpush1.msra.mxu0 0.0
    %625 = vmatprep.subr.mxu0 0.0
    %626 = vmatpush1.msra.mxu0 0.0
    %627 = vmatprep.subr.mxu0 0.0
    %628 = vmatpush1.msra.mxu0 0.0
    %629 = vmatprep.subr.mxu0 0.0
    %630 = vmatpush1.msra.mxu0 0.0
    %631 = vmatprep.subr.mxu0 0.0
    %632 = vmatpush1.msra.mxu0 0.0
    %633 = vmatprep.subr.mxu0 0.0
    %634 = vmatpush1.msra.mxu0 0.0
    %635 = vmatprep.subr.mxu0 0.0
    %636 = vmatpush1.msra.mxu0 0.0
    %637 = vmatprep.subr.mxu0 0.0
    %638 = vmatpush1.msra.mxu0 0.0
    %639 = vmatprep.subr.mxu0 0.0
    %640 = vmatpush1.msra.mxu0 0.0
    %641 = vmatprep.subr.mxu0 0.0
    %642 = vmatpush1.msra.mxu0 0.0
    %643 = vmatprep.subr.mxu0 0.0
    %644 = vmatpush1.msra.mxu0 0.0
    %645 = vmatprep.subr.mxu0 0.0
    %646 = vmatpush1.msra.mxu0 0.0
    %647 = vmatprep.subr.mxu0 0.0
    %648 = vmatpush1.msra.mxu0 0.0
    %649 = vmatprep.subr.mxu0 0.0
    %650 = vmatpush1.msra.mxu0 0.0
    %651 = vmatprep.subr.mxu0 0.0
    %652 = vmatpush1.msra.mxu0 0.0
    %653 = vmatprep.subr.mxu0 0.0
    %654 = vmatpush1.msra.mxu0 0.0
    %655 = vmatprep.subr.mxu0 0.0
    %656 = vmatpush1.msra.mxu0 0.0
    %657 = vmatprep.subr.mxu0 0.0
    %658 = vmatpush1.msra.mxu0 0.0
    %659 = vmatprep.subr.mxu0 0.0
    %660 = vmatpush1.msra.mxu0 0.0
    %661 = vmatprep.subr.mxu0 0.0
    %662 = vmatpush1.msra.mxu0 0.0
    %663 = vmatprep.subr.mxu0 0.0
    %664 = vmatpush1.msra.mxu0 0.0
    %665 = vmatprep.subr.mxu0 0.0
    %666 = vmatpush1.msra.mxu0 0.0
    %667 = vmatprep.subr.mxu0 0.0
    %668 = vmatpush1.msra.mxu0 0.0
    %669 = vmatprep.subr.mxu0 0.0
    %670 = vmatpush1.msra.mxu0 0.0
    %671 = vmatprep.subr.mxu0 0.0
    %672 = vmatpush1.msra.mxu0 0.0
    %673 = vmatprep.mubr.f32.mxu0 0.0
    %674 = vmatmul.mubr.f32.gmra.mrb[0].mxu0 %v607
    %v675 = vpop.f32.mrb[0].mxu0
    %v676 = vadd.f32 %v110, %v675
    %v677 = vpop.f32.mrb[0].mxu0
    %678 = vdwg.mxu0
    %v679 = vmax.f32 %v676, 0.0
    %680 = vmatprep.subr.mxu0 %v57
    %681 = vmatpush1.msra.mxu0 %v56
    %682 = vmatprep.subr.mxu0 %v60
    %683 = vmatpush1.msra.mxu0 %v59
    %684 = vmatprep.subr.mxu0 %v63
    %685 = vmatpush1.msra.mxu0 %v62
    %686 = vmatprep.subr.mxu0 %v66
    %687 = vmatpush1.msra.mxu0 %v65
    %688 = vmatprep.subr.mxu0 %v69
    %689 = vmatpush1.msra.mxu0 %v68
    %690 = vmatprep.subr.mxu0 %v72
    %691 = vmatpush1.msra.mxu0 %v71
    %692 = vmatprep.subr.mxu0 %v75
    %693 = vmatpush1.msra.mxu0 %v74
    %694 = vmatprep.subr.mxu0 %v78
    %695 = vmatpush1.msra.mxu0 %v77
    %696 = vmatprep.subr.mxu0 %v81
    %697 = vmatpush1.msra.mxu0 %v80
    %698 = vmatprep.subr.mxu0 %v84
    %699 = vmatpush1.msra.mxu0 %v83
    %700 = vmatprep.subr.mxu0 %v87
    %701 = vmatpush1.msra.mxu0 %v86
    %702 = vmatprep.subr.mxu0 %v90
    %703 = vmatpush1.msra.mxu0 %v89
    %704 = vmatprep.subr.mxu0 %v93
    %705 = vmatpush1.msra.mxu0 %v92
    %706 = vmatprep.subr.mxu0 %v96
    %707 = vmatpush1.msra.mxu0 %v95
    %708 = vmatprep.subr.mxu0 %v99
    %709 = vmatpush1.msra.mxu0 %v98
    %710 = vmatprep.subr.mxu0 %v102
    %711 = vmatpush1.msra.mxu0 %v101
    %712 = vmatprep.subr.mxu0 0.0
    %713 = vmatpush1.msra.mxu0 0.0
    %714 = vmatprep.subr.mxu0 0.0
    %715 = vmatpush1.msra.mxu0 0.0
    %716 = vmatprep.subr.mxu0 0.0
    %717 = vmatpush1.msra.mxu0 0.0
    %718 = vmatprep.subr.mxu0 0.0
    %719 = vmatpush1.msra.mxu0 0.0
    %720 = vmatprep.subr.mxu0 0.0
    %721 = vmatpush1.msra.mxu0 0.0
    %722 = vmatprep.subr.mxu0 0.0
    %723 = vmatpush1.msra.mxu0 0.0
    %724 = vmatprep.subr.mxu0 0.0
    %725 = vmatpush1.msra.mxu0 0.0
    %726 = vmatprep.subr.mxu0 0.0
    %727 = vmatpush1.msra.mxu0 0.0
    %728 = vmatprep.subr.mxu0 0.0
    %729 = vmatpush1.msra.mxu0 0.0
    %730 = vmatprep.subr.mxu0 0.0
    %731 = vmatpush1.msra.mxu0 0.0
    %732 = vmatprep.subr.mxu0 0.0
    %733 = vmatpush1.msra.mxu0 0.0
    %734 = vmatprep.subr.mxu0 0.0
    %735 = vmatpush1.msra.mxu0 0.0
    %736 = vmatprep.subr.mxu0 0.0
    %737 = vmatpush1.msra.mxu0 0.0
    %738 = vmatprep.subr.mxu0 0.0
    %739 = vmatpush1.msra.mxu0 0.0
    %740 = vmatprep.subr.mxu0 0.0
    %741 = vmatpush1.msra.mxu0 0.0
    %742 = vmatprep.subr.mxu0 0.0
    %743 = vmatpush1.msra.mxu0 0.0
    %744 = vmatprep.mubr.f32.mxu0 0.0
    %745 = vmatmul.mubr.f32.gmra.mrb[0].mxu0 %v679
    %v746 = vpop.f32.mrb[0].mxu0
    %v747 = vadd.f32 %v191, %v746
    %v748 = vpop.f32.mrb[0].mxu0
    %v749 = vadd.f32 %v195, %v748
    %750 = vdwg.mxu0
    %751 = vmatprep.subr.mxu0 0.0
    %752 = vmatpush1.msra.mxu0 %v58
    %753 = vmatprep.subr.mxu0 0.0
    %754 = vmatpush1.msra.mxu0 %v61
    %755 = vmatprep.subr.mxu0 0.0
    %756 = vmatpush1.msra.mxu0 %v64
    %757 = vmatprep.subr.mxu0 0.0
    %758 = vmatpush1.msra.mxu0 %v67
    %759 = vmatprep.subr.mxu0 0.0
    %760 = vmatpush1.msra.mxu0 %v70
    %761 = vmatprep.subr.mxu0 0.0
    %762 = vmatpush1.msra.mxu0 %v73
    %763 = vmatprep.subr.mxu0 0.0
    %764 = vmatpush1.msra.mxu0 %v76
    %765 = vmatprep.subr.mxu0 0.0
    %766 = vmatpush1.msra.mxu0 %v79
    %767 = vmatprep.subr.mxu0 0.0
    %768 = vmatpush1.msra.mxu0 %v82
    %769 = vmatprep.subr.mxu0 0.0
    %770 = vmatpush1.msra.mxu0 %v85
    %771 = vmatprep.subr.mxu0 0.0
    %772 = vmatpush1.msra.mxu0 %v88
    %773 = vmatprep.subr.mxu0 0.0
    %774 = vmatpush1.msra.mxu0 %v91
    %775 = vmatprep.subr.mxu0 0.0
    %776 = vmatpush1.msra.mxu0 %v94
    %777 = vmatprep.subr.mxu0 0.0
    %778 = vmatpush1.msra.mxu0 %v97
    %779 = vmatprep.subr.mxu0 0.0
    %780 = vmatpush1.msra.mxu0 %v100
    %781 = vmatprep.subr.mxu0 0.0
    %782 = vmatpush1.msra.mxu0 %v103
    %783 = vmatprep.subr.mxu0 0.0
    %784 = vmatpush1.msra.mxu0 0.0
    %785 = vmatprep.subr.mxu0 0.0
    %786 = vmatpush1.msra.mxu0 0.0
    %787 = vmatprep.subr.mxu0 0.0
    %788 = vmatpush1.msra.mxu0 0.0
    %789 = vmatprep.subr.mxu0 0.0
    %790 = vmatpush1.msra.mxu0 0.0
    %791 = vmatprep.subr.mxu0 0.0
    %792 = vmatpush1.msra.mxu0 0.0
    %793 = vmatprep.subr.mxu0 0.0
    %794 = vmatpush1.msra.mxu0 0.0
    %795 = vmatprep.subr.mxu0 0.0
    %796 = vmatpush1.msra.mxu0 0.0
    %797 = vmatprep.subr.mxu0 0.0
    %798 = vmatpush1.msra.mxu0 0.0
    %799 = vmatprep.subr.mxu0 0.0
    %800 = vmatpush1.msra.mxu0 0.0
    %801 = vmatprep.subr.mxu0 0.0
    %802 = vmatpush1.msra.mxu0 0.0
    %803 = vmatprep.subr.mxu0 0.0
    %804 = vmatpush1.msra.mxu0 0.0
    %805 = vmatprep.subr.mxu0 0.0
    %806 = vmatpush1.msra.mxu0 0.0
    %807 = vmatprep.subr.mxu0 0.0
    %808 = vmatpush1.msra.mxu0 0.0
    %809 = vmatprep.subr.mxu0 0.0
    %810 = vmatpush1.msra.mxu0 0.0
    %811 = vmatprep.subr.mxu0 0.0
    %812 = vmatpush1.msra.mxu0 0.0
    %813 = vmatprep.subr.mxu0 0.0
    %814 = vmatpush1.msra.mxu0 0.0
    %815 = vmatprep.mubr.f32.mxu0 0.0
    %816 = vmatmul.mubr.f32.gmra.mrb[0].mxu0 %v679
    %v817 = vpop.f32.mrb[0].mxu0
    %v818 = vadd.f32 %v199, %v817
    %v819 = vpop.f32.mrb[0].mxu0
    %820 = vdwg.mxu0
    %v824 = vcombine.low %v747, %v749
    %v826 = vunpack.c.l.s4 1983009808
    %v827 = vunpack.c.0.s8 %v826
    %v828 = vlaneseq
    %v829 = vshrl.u32 %v828, 7
    %v830 = vsub.s32 %v827, %v829
    %v831 = vrot.slane %v824, %v830
    %v833 = vunpack.c.l.s4 1983009808
    %v834 = vunpack.c.0.s8 %v833
    %v835 = vlaneseq
    %v836 = vshrl.u32 %v835, 7
    %v837 = vsub.s32 %v834, %v836
    %v838 = vrot.slane %v818, %v837
    %v839 = vcombine.low %v831, %v838
    %s841 = scalar_lea.vmem [#allocation2], 12
    %842 = vst [vmem:[%s841] sm:$0x3f] %v839
    %s843 = scalar_lea.vmem %s0, 6
    %v844 = vld [vmem:[%s843] sm:$0x3]
    %v846 = vsel %vm112, %v844, 0
    %848 = vmatprep.subr.mxu0 0.0
    %849 = vmatpush1.msra.mxu0 %v53
    %850 = vmatprep.subr.mxu0 0.0
    %851 = vmatpush1.msra.mxu0 %v54
    %852 = vmatprep.subr.mxu0 0.0
    %853 = vmatpush1.msra.mxu0 0.0
    %854 = vmatprep.subr.mxu0 0.0
    %855 = vmatpush1.msra.mxu0 0.0
    %856 = vmatprep.subr.mxu0 0.0
    %857 = vmatpush1.msra.mxu0 0.0
    %858 = vmatprep.subr.mxu0 0.0
    %859 = vmatpush1.msra.mxu0 0.0
    %860 = vmatprep.subr.mxu0 0.0
    %861 = vmatpush1.msra.mxu0 0.0
    %862 = vmatprep.subr.mxu0 0.0
    %863 = vmatpush1.msra.mxu0 0.0
    %864 = vmatprep.subr.mxu0 0.0
    %865 = vmatpush1.msra.mxu0 0.0
    %866 = vmatprep.subr.mxu0 0.0
    %867 = vmatpush1.msra.mxu0 0.0
    %868 = vmatprep.subr.mxu0 0.0
    %869 = vmatpush1.msra.mxu0 0.0
    %870 = vmatprep.subr.mxu0 0.0
    %871 = vmatpush1.msra.mxu0 0.0
    %872 = vmatprep.subr.mxu0 0.0
    %873 = vmatpush1.msra.mxu0 0.0
    %874 = vmatprep.subr.mxu0 0.0
    %875 = vmatpush1.msra.mxu0 0.0
    %876 = vmatprep.subr.mxu0 0.0
    %877 = vmatpush1.msra.mxu0 0.0
    %878 = vmatprep.subr.mxu0 0.0
    %879 = vmatpush1.msra.mxu0 0.0
    %880 = vmatprep.subr.mxu0 0.0
    %881 = vmatpush1.msra.mxu0 0.0
    %882 = vmatprep.subr.mxu0 0.0
    %883 = vmatpush1.msra.mxu0 0.0
    %884 = vmatprep.subr.mxu0 0.0
    %885 = vmatpush1.msra.mxu0 0.0
    %886 = vmatprep.subr.mxu0 0.0
    %887 = vmatpush1.msra.mxu0 0.0
    %888 = vmatprep.subr.mxu0 0.0
    %889 = vmatpush1.msra.mxu0 0.0
    %890 = vmatprep.subr.mxu0 0.0
    %891 = vmatpush1.msra.mxu0 0.0
    %892 = vmatprep.subr.mxu0 0.0
    %893 = vmatpush1.msra.mxu0 0.0
    %894 = vmatprep.subr.mxu0 0.0
    %895 = vmatpush1.msra.mxu0 0.0
    %896 = vmatprep.subr.mxu0 0.0
    %897 = vmatpush1.msra.mxu0 0.0
    %898 = vmatprep.subr.mxu0 0.0
    %899 = vmatpush1.msra.mxu0 0.0
    %900 = vmatprep.subr.mxu0 0.0
    %901 = vmatpush1.msra.mxu0 0.0
    %902 = vmatprep.subr.mxu0 0.0
    %903 = vmatpush1.msra.mxu0 0.0
    %904 = vmatprep.subr.mxu0 0.0
    %905 = vmatpush1.msra.mxu0 0.0
    %906 = vmatprep.subr.mxu0 0.0
    %907 = vmatpush1.msra.mxu0 0.0
    %908 = vmatprep.subr.mxu0 0.0
    %909 = vmatpush1.msra.mxu0 0.0
    %910 = vmatprep.subr.mxu0 0.0
    %911 = vmatpush1.msra.mxu0 0.0
    %912 = vmatprep.mubr.f32.mxu0 0.0
    %913 = vmatmul.mubr.f32.gmra.mrb[0].mxu0 %v846
    %v914 = vpop.f32.mrb[0].mxu0
    %v915 = vadd.f32 %v110, %v914
    %v916 = vpop.f32.mrb[0].mxu0
    %917 = vdwg.mxu0
    %v918 = vmax.f32 %v915, 0.0
    %919 = vmatprep.subr.mxu0 %v57
    %920 = vmatpush1.msra.mxu0 %v56
    %921 = vmatprep.subr.mxu0 %v60
    %922 = vmatpush1.msra.mxu0 %v59
    %923 = vmatprep.subr.mxu0 %v63
    %924 = vmatpush1.msra.mxu0 %v62
    %925 = vmatprep.subr.mxu0 %v66
    %926 = vmatpush1.msra.mxu0 %v65
    %927 = vmatprep.subr.mxu0 %v69
    %928 = vmatpush1.msra.mxu0 %v68
    %929 = vmatprep.subr.mxu0 %v72
    %930 = vmatpush1.msra.mxu0 %v71
    %931 = vmatprep.subr.mxu0 %v75
    %932 = vmatpush1.msra.mxu0 %v74
    %933 = vmatprep.subr.mxu0 %v78
    %934 = vmatpush1.msra.mxu0 %v77
    %935 = vmatprep.subr.mxu0 %v81
    %936 = vmatpush1.msra.mxu0 %v80
    %937 = vmatprep.subr.mxu0 %v84
    %938 = vmatpush1.msra.mxu0 %v83
    %939 = vmatprep.subr.mxu0 %v87
    %940 = vmatpush1.msra.mxu0 %v86
    %941 = vmatprep.subr.mxu0 %v90
    %942 = vmatpush1.msra.mxu0 %v89
    %943 = vmatprep.subr.mxu0 %v93
    %944 = vmatpush1.msra.mxu0 %v92
    %945 = vmatprep.subr.mxu0 %v96
    %946 = vmatpush1.msra.mxu0 %v95
    %947 = vmatprep.subr.mxu0 %v99
    %948 = vmatpush1.msra.mxu0 %v98
    %949 = vmatprep.subr.mxu0 %v102
    %950 = vmatpush1.msra.mxu0 %v101
    %951 = vmatprep.subr.mxu0 0.0
    %952 = vmatpush1.msra.mxu0 0.0
    %953 = vmatprep.subr.mxu0 0.0
    %954 = vmatpush1.msra.mxu0 0.0
    %955 = vmatprep.subr.mxu0 0.0
    %956 = vmatpush1.msra.mxu0 0.0
    %957 = vmatprep.subr.mxu0 0.0
    %958 = vmatpush1.msra.mxu0 0.0
    %959 = vmatprep.subr.mxu0 0.0
    %960 = vmatpush1.msra.mxu0 0.0
    %961 = vmatprep.subr.mxu0 0.0
    %962 = vmatpush1.msra.mxu0 0.0
    %963 = vmatprep.subr.mxu0 0.0
    %964 = vmatpush1.msra.mxu0 0.0
    %965 = vmatprep.subr.mxu0 0.0
    %966 = vmatpush1.msra.mxu0 0.0
    %967 = vmatprep.subr.mxu0 0.0
    %968 = vmatpush1.msra.mxu0 0.0
    %969 = vmatprep.subr.mxu0 0.0
    %970 = vmatpush1.msra.mxu0 0.0
    %971 = vmatprep.subr.mxu0 0.0
    %972 = vmatpush1.msra.mxu0 0.0
    %973 = vmatprep.subr.mxu0 0.0
    %974 = vmatpush1.msra.mxu0 0.0
    %975 = vmatprep.subr.mxu0 0.0
    %976 = vmatpush1.msra.mxu0 0.0
    %977 = vmatprep.subr.mxu0 0.0
    %978 = vmatpush1.msra.mxu0 0.0
    %979 = vmatprep.subr.mxu0 0.0
    %980 = vmatpush1.msra.mxu0 0.0
    %981 = vmatprep.subr.mxu0 0.0
    %982 = vmatpush1.msra.mxu0 0.0
    %983 = vmatprep.mubr.f32.mxu0 0.0
    %984 = vmatmul.mubr.f32.gmra.mrb[0].mxu0 %v918
    %v985 = vpop.f32.mrb[0].mxu0
    %v986 = vadd.f32 %v191, %v985
    %v987 = vpop.f32.mrb[0].mxu0
    %v988 = vadd.f32 %v195, %v987
    %989 = vdwg.mxu0
    %990 = vmatprep.subr.mxu0 0.0
    %991 = vmatpush1.msra.mxu0 %v58
    %992 = vmatprep.subr.mxu0 0.0
    %993 = vmatpush1.msra.mxu0 %v61
    %994 = vmatprep.subr.mxu0 0.0
    %995 = vmatpush1.msra.mxu0 %v64
    %996 = vmatprep.subr.mxu0 0.0
    %997 = vmatpush1.msra.mxu0 %v67
    %998 = vmatprep.subr.mxu0 0.0
    %999 = vmatpush1.msra.mxu0 %v70
    %1000 = vmatprep.subr.mxu0 0.0
    %1001 = vmatpush1.msra.mxu0 %v73
    %1002 = vmatprep.subr.mxu0 0.0
    %1003 = vmatpush1.msra.mxu0 %v76
    %1004 = vmatprep.subr.mxu0 0.0
    %1005 = vmatpush1.msra.mxu0 %v79
    %1006 = vmatprep.subr.mxu0 0.0
    %1007 = vmatpush1.msra.mxu0 %v82
    %1008 = vmatprep.subr.mxu0 0.0
    %1009 = vmatpush1.msra.mxu0 %v85
    %1010 = vmatprep.subr.mxu0 0.0
    %1011 = vmatpush1.msra.mxu0 %v88
    %1012 = vmatprep.subr.mxu0 0.0
    %1013 = vmatpush1.msra.mxu0 %v91
    %1014 = vmatprep.subr.mxu0 0.0
    %1015 = vmatpush1.msra.mxu0 %v94
    %1016 = vmatprep.subr.mxu0 0.0
    %1017 = vmatpush1.msra.mxu0 %v97
    %1018 = vmatprep.subr.mxu0 0.0
    %1019 = vmatpush1.msra.mxu0 %v100
    %1020 = vmatprep.subr.mxu0 0.0
    %1021 = vmatpush1.msra.mxu0 %v103
    %1022 = vmatprep.subr.mxu0 0.0
    %1023 = vmatpush1.msra.mxu0 0.0
    %1024 = vmatprep.subr.mxu0 0.0
    %1025 = vmatpush1.msra.mxu0 0.0
    %1026 = vmatprep.subr.mxu0 0.0
    %1027 = vmatpush1.msra.mxu0 0.0
    %1028 = vmatprep.subr.mxu0 0.0
    %1029 = vmatpush1.msra.mxu0 0.0
    %1030 = vmatprep.subr.mxu0 0.0
    %1031 = vmatpush1.msra.mxu0 0.0
    %1032 = vmatprep.subr.mxu0 0.0
    %1033 = vmatpush1.msra.mxu0 0.0
    %1034 = vmatprep.subr.mxu0 0.0
    %1035 = vmatpush1.msra.mxu0 0.0
    %1036 = vmatprep.subr.mxu0 0.0
    %1037 = vmatpush1.msra.mxu0 0.0
    %1038 = vmatprep.subr.mxu0 0.0
    %1039 = vmatpush1.msra.mxu0 0.0
    %1040 = vmatprep.subr.mxu0 0.0
    %1041 = vmatpush1.msra.mxu0 0.0
    %1042 = vmatprep.subr.mxu0 0.0
    %1043 = vmatpush1.msra.mxu0 0.0
    %1044 = vmatprep.subr.mxu0 0.0
    %1045 = vmatpush1.msra.mxu0 0.0
    %1046 = vmatprep.subr.mxu0 0.0
    %1047 = vmatpush1.msra.mxu0 0.0
    %1048 = vmatprep.subr.mxu0 0.0
    %1049 = vmatpush1.msra.mxu0 0.0
    %1050 = vmatprep.subr.mxu0 0.0
    %1051 = vmatpush1.msra.mxu0 0.0
    %1052 = vmatprep.subr.mxu0 0.0
    %1053 = vmatpush1.msra.mxu0 0.0
    %1054 = vmatprep.mubr.f32.mxu0 0.0
    %1055 = vmatmul.mubr.f32.gmra.mrb[0].mxu0 %v918
    %v1056 = vpop.f32.mrb[0].mxu0
    %v1057 = vadd.f32 %v199, %v1056
    %v1058 = vpop.f32.mrb[0].mxu0
    %1059 = vdwg.mxu0
    %v1063 = vcombine.low %v986, %v988
    %v1065 = vunpack.c.l.s4 1983009808
    %v1066 = vunpack.c.0.s8 %v1065
    %v1067 = vlaneseq
    %v1068 = vshrl.u32 %v1067, 7
    %v1069 = vsub.s32 %v1066, %v1068
    %v1070 = vrot.slane %v1063, %v1069
    %v1072 = vunpack.c.l.s4 1983009808
    %v1073 = vunpack.c.0.s8 %v1072
    %v1074 = vlaneseq
    %v1075 = vshrl.u32 %v1074, 7
    %v1076 = vsub.s32 %v1073, %v1075
    %v1077 = vrot.slane %v1057, %v1076
    %v1078 = vcombine.low %v1070, %v1077
    %s1080 = scalar_lea.vmem [#allocation2], 18
    %1081 = vst [vmem:[%s1080] sm:$0x3f] %v1078
    %s1082 = scalar_lea.vmem %s0, 8
    %v1083 = vld [vmem:[%s1082] sm:$0x3]
    %v1085 = vsel %vm112, %v1083, 0
    %1087 = vmatprep.subr.mxu0 0.0
    %1088 = vmatpush1.msra.mxu0 %v53
    %1089 = vmatprep.subr.mxu0 0.0
    %1090 = vmatpush1.msra.mxu0 %v54
    %1091 = vmatprep.subr.mxu0 0.0
    %1092 = vmatpush1.msra.mxu0 0.0
    %1093 = vmatprep.subr.mxu0 0.0
    %1094 = vmatpush1.msra.mxu0 0.0
    %1095 = vmatprep.subr.mxu0 0.0
    %1096 = vmatpush1.msra.mxu0 0.0
    %1097 = vmatprep.subr.mxu0 0.0
    %1098 = vmatpush1.msra.mxu0 0.0
    %1099 = vmatprep.subr.mxu0 0.0
    %1100 = vmatpush1.msra.mxu0 0.0
    %1101 = vmatprep.subr.mxu0 0.0
    %1102 = vmatpush1.msra.mxu0 0.0
    %1103 = vmatprep.subr.mxu0 0.0
    %1104 = vmatpush1.msra.mxu0 0.0
    %1105 = vmatprep.subr.mxu0 0.0
    %1106 = vmatpush1.msra.mxu0 0.0
    %1107 = vmatprep.subr.mxu0 0.0
    %1108 = vmatpush1.msra.mxu0 0.0
    %1109 = vmatprep.subr.mxu0 0.0
    %1110 = vmatpush1.msra.mxu0 0.0
    %1111 = vmatprep.subr.mxu0 0.0
    %1112 = vmatpush1.msra.mxu0 0.0
    %1113 = vmatprep.subr.mxu0 0.0
    %1114 = vmatpush1.msra.mxu0 0.0
    %1115 = vmatprep.subr.mxu0 0.0
    %1116 = vmatpush1.msra.mxu0 0.0
    %1117 = vmatprep.subr.mxu0 0.0
    %1118 = vmatpush1.msra.mxu0 0.0
    %1119 = vmatprep.subr.mxu0 0.0
    %1120 = vmatpush1.msra.mxu0 0.0
    %1121 = vmatprep.subr.mxu0 0.0
    %1122 = vmatpush1.msra.mxu0 0.0
    %1123 = vmatprep.subr.mxu0 0.0
    %1124 = vmatpush1.msra.mxu0 0.0
    %1125 = vmatprep.subr.mxu0 0.0
    %1126 = vmatpush1.msra.mxu0 0.0
    %1127 = vmatprep.subr.mxu0 0.0
    %1128 = vmatpush1.msra.mxu0 0.0
    %1129 = vmatprep.subr.mxu0 0.0
    %1130 = vmatpush1.msra.mxu0 0.0
    %1131 = vmatprep.subr.mxu0 0.0
    %1132 = vmatpush1.msra.mxu0 0.0
    %1133 = vmatprep.subr.mxu0 0.0
    %1134 = vmatpush1.msra.mxu0 0.0
    %1135 = vmatprep.subr.mxu0 0.0
    %1136 = vmatpush1.msra.mxu0 0.0
    %1137 = vmatprep.subr.mxu0 0.0
    %1138 = vmatpush1.msra.mxu0 0.0
    %1139 = vmatprep.subr.mxu0 0.0
    %1140 = vmatpush1.msra.mxu0 0.0
    %1141 = vmatprep.subr.mxu0 0.0
    %1142 = vmatpush1.msra.mxu0 0.0
    %1143 = vmatprep.subr.mxu0 0.0
    %1144 = vmatpush1.msra.mxu0 0.0
    %1145 = vmatprep.subr.mxu0 0.0
    %1146 = vmatpush1.msra.mxu0 0.0
    %1147 = vmatprep.subr.mxu0 0.0
    %1148 = vmatpush1.msra.mxu0 0.0
    %1149 = vmatprep.subr.mxu0 0.0
    %1150 = vmatpush1.msra.mxu0 0.0
    %1151 = vmatprep.mubr.f32.mxu0 0.0
    %1152 = vmatmul.mubr.f32.gmra.mrb[0].mxu0 %v1085
    %v1153 = vpop.f32.mrb[0].mxu0
    %v1154 = vadd.f32 %v110, %v1153
    %v1155 = vpop.f32.mrb[0].mxu0
    %1156 = vdwg.mxu0
    %v1157 = vmax.f32 %v1154, 0.0
    %1158 = vmatprep.subr.mxu0 %v57
    %1159 = vmatpush1.msra.mxu0 %v56
    %1160 = vmatprep.subr.mxu0 %v60
    %1161 = vmatpush1.msra.mxu0 %v59
    %1162 = vmatprep.subr.mxu0 %v63
    %1163 = vmatpush1.msra.mxu0 %v62
    %1164 = vmatprep.subr.mxu0 %v66
    %1165 = vmatpush1.msra.mxu0 %v65
    %1166 = vmatprep.subr.mxu0 %v69
    %1167 = vmatpush1.msra.mxu0 %v68
    %1168 = vmatprep.subr.mxu0 %v72
    %1169 = vmatpush1.msra.mxu0 %v71
    %1170 = vmatprep.subr.mxu0 %v75
    %1171 = vmatpush1.msra.mxu0 %v74
    %1172 = vmatprep.subr.mxu0 %v78
    %1173 = vmatpush1.msra.mxu0 %v77
    %1174 = vmatprep.subr.mxu0 %v81
    %1175 = vmatpush1.msra.mxu0 %v80
    %1176 = vmatprep.subr.mxu0 %v84
    %1177 = vmatpush1.msra.mxu0 %v83
    %1178 = vmatprep.subr.mxu0 %v87
    %1179 = vmatpush1.msra.mxu0 %v86
    %1180 = vmatprep.subr.mxu0 %v90
    %1181 = vmatpush1.msra.mxu0 %v89
    %1182 = vmatprep.subr.mxu0 %v93
    %1183 = vmatpush1.msra.mxu0 %v92
    %1184 = vmatprep.subr.mxu0 %v96
    %1185 = vmatpush1.msra.mxu0 %v95
    %1186 = vmatprep.subr.mxu0 %v99
    %1187 = vmatpush1.msra.mxu0 %v98
    %1188 = vmatprep.subr.mxu0 %v102
    %1189 = vmatpush1.msra.mxu0 %v101
    %1190 = vmatprep.subr.mxu0 0.0
    %1191 = vmatpush1.msra.mxu0 0.0
    %1192 = vmatprep.subr.mxu0 0.0
    %1193 = vmatpush1.msra.mxu0 0.0
    %1194 = vmatprep.subr.mxu0 0.0
    %1195 = vmatpush1.msra.mxu0 0.0
    %1196 = vmatprep.subr.mxu0 0.0
    %1197 = vmatpush1.msra.mxu0 0.0
    %1198 = vmatprep.subr.mxu0 0.0
    %1199 = vmatpush1.msra.mxu0 0.0
    %1200 = vmatprep.subr.mxu0 0.0
    %1201 = vmatpush1.msra.mxu0 0.0
    %1202 = vmatprep.subr.mxu0 0.0
    %1203 = vmatpush1.msra.mxu0 0.0
    %1204 = vmatprep.subr.mxu0 0.0
    %1205 = vmatpush1.msra.mxu0 0.0
    %1206 = vmatprep.subr.mxu0 0.0
    %1207 = vmatpush1.msra.mxu0 0.0
    %1208 = vmatprep.subr.mxu0 0.0
    %1209 = vmatpush1.msra.mxu0 0.0
    %1210 = vmatprep.subr.mxu0 0.0
    %1211 = vmatpush1.msra.mxu0 0.0
    %1212 = vmatprep.subr.mxu0 0.0
    %1213 = vmatpush1.msra.mxu0 0.0
    %1214 = vmatprep.subr.mxu0 0.0
    %1215 = vmatpush1.msra.mxu0 0.0
    %1216 = vmatprep.subr.mxu0 0.0
    %1217 = vmatpush1.msra.mxu0 0.0
    %1218 = vmatprep.subr.mxu0 0.0
    %1219 = vmatpush1.msra.mxu0 0.0
    %1220 = vmatprep.subr.mxu0 0.0
    %1221 = vmatpush1.msra.mxu0 0.0
    %1222 = vmatprep.mubr.f32.mxu0 0.0
    %1223 = vmatmul.mubr.f32.gmra.mrb[0].mxu0 %v1157
    %v1224 = vpop.f32.mrb[0].mxu0
    %v1225 = vadd.f32 %v191, %v1224
    %v1226 = vpop.f32.mrb[0].mxu0
    %v1227 = vadd.f32 %v195, %v1226
    %1228 = vdwg.mxu0
    %1229 = vmatprep.subr.mxu0 0.0
    %1230 = vmatpush1.msra.mxu0 %v58
    %1231 = vmatprep.subr.mxu0 0.0
    %1232 = vmatpush1.msra.mxu0 %v61
    %1233 = vmatprep.subr.mxu0 0.0
    %1234 = vmatpush1.msra.mxu0 %v64
    %1235 = vmatprep.subr.mxu0 0.0
    %1236 = vmatpush1.msra.mxu0 %v67
    %1237 = vmatprep.subr.mxu0 0.0
    %1238 = vmatpush1.msra.mxu0 %v70
    %1239 = vmatprep.subr.mxu0 0.0
    %1240 = vmatpush1.msra.mxu0 %v73
    %1241 = vmatprep.subr.mxu0 0.0
    %1242 = vmatpush1.msra.mxu0 %v76
    %1243 = vmatprep.subr.mxu0 0.0
    %1244 = vmatpush1.msra.mxu0 %v79
    %1245 = vmatprep.subr.mxu0 0.0
    %1246 = vmatpush1.msra.mxu0 %v82
    %1247 = vmatprep.subr.mxu0 0.0
    %1248 = vmatpush1.msra.mxu0 %v85
    %1249 = vmatprep.subr.mxu0 0.0
    %1250 = vmatpush1.msra.mxu0 %v88
    %1251 = vmatprep.subr.mxu0 0.0
    %1252 = vmatpush1.msra.mxu0 %v91
    %1253 = vmatprep.subr.mxu0 0.0
    %1254 = vmatpush1.msra.mxu0 %v94
    %1255 = vmatprep.subr.mxu0 0.0
    %1256 = vmatpush1.msra.mxu0 %v97
    %1257 = vmatprep.subr.mxu0 0.0
    %1258 = vmatpush1.msra.mxu0 %v100
    %1259 = vmatprep.subr.mxu0 0.0
    %1260 = vmatpush1.msra.mxu0 %v103
    %1261 = vmatprep.subr.mxu0 0.0
    %1262 = vmatpush1.msra.mxu0 0.0
    %1263 = vmatprep.subr.mxu0 0.0
    %1264 = vmatpush1.msra.mxu0 0.0
    %1265 = vmatprep.subr.mxu0 0.0
    %1266 = vmatpush1.msra.mxu0 0.0
    %1267 = vmatprep.subr.mxu0 0.0
    %1268 = vmatpush1.msra.mxu0 0.0
    %1269 = vmatprep.subr.mxu0 0.0
    %1270 = vmatpush1.msra.mxu0 0.0
    %1271 = vmatprep.subr.mxu0 0.0
    %1272 = vmatpush1.msra.mxu0 0.0
    %1273 = vmatprep.subr.mxu0 0.0
    %1274 = vmatpush1.msra.mxu0 0.0
    %1275 = vmatprep.subr.mxu0 0.0
    %1276 = vmatpush1.msra.mxu0 0.0
    %1277 = vmatprep.subr.mxu0 0.0
    %1278 = vmatpush1.msra.mxu0 0.0
    %1279 = vmatprep.subr.mxu0 0.0
    %1280 = vmatpush1.msra.mxu0 0.0
    %1281 = vmatprep.subr.mxu0 0.0
    %1282 = vmatpush1.msra.mxu0 0.0
    %1283 = vmatprep.subr.mxu0 0.0
    %1284 = vmatpush1.msra.mxu0 0.0
    %1285 = vmatprep.subr.mxu0 0.0
    %1286 = vmatpush1.msra.mxu0 0.0
    %1287 = vmatprep.subr.mxu0 0.0
    %1288 = vmatpush1.msra.mxu0 0.0
    %1289 = vmatprep.subr.mxu0 0.0
    %1290 = vmatpush1.msra.mxu0 0.0
    %1291 = vmatprep.subr.mxu0 0.0
    %1292 = vmatpush1.msra.mxu0 0.0
    %1293 = vmatprep.mubr.f32.mxu0 0.0
    %1294 = vmatmul.mubr.f32.gmra.mrb[0].mxu0 %v1157
    %v1295 = vpop.f32.mrb[0].mxu0
    %v1296 = vadd.f32 %v199, %v1295
    %v1297 = vpop.f32.mrb[0].mxu0
    %1298 = vdwg.mxu0
    %v1302 = vcombine.low %v1225, %v1227
    %v1304 = vunpack.c.l.s4 1983009808
    %v1305 = vunpack.c.0.s8 %v1304
    %v1306 = vlaneseq
    %v1307 = vshrl.u32 %v1306, 7
    %v1308 = vsub.s32 %v1305, %v1307
    %v1309 = vrot.slane %v1302, %v1308
    %v1311 = vunpack.c.l.s4 1983009808
    %v1312 = vunpack.c.0.s8 %v1311
    %v1313 = vlaneseq
    %v1314 = vshrl.u32 %v1313, 7
    %v1315 = vsub.s32 %v1312, %v1314
    %v1316 = vrot.slane %v1296, %v1315
    %v1317 = vcombine.low %v1309, %v1316
    %s1319 = scalar_lea.vmem [#allocation2], 24
    %1320 = vst [vmem:[%s1319] sm:$0x3f] %v1317
    %s1321 = scalar_lea.vmem %s0, 10
    %v1322 = vld [vmem:[%s1321] sm:$0x3]
    %v1324 = vsel %vm112, %v1322, 0
    %1326 = vmatprep.subr.mxu0 0.0
    %1327 = vmatpush1.msra.mxu0 %v53
    %1328 = vmatprep.subr.mxu0 0.0
    %1329 = vmatpush1.msra.mxu0 %v54
    %1330 = vmatprep.subr.mxu0 0.0
    %1331 = vmatpush1.msra.mxu0 0.0
    %1332 = vmatprep.subr.mxu0 0.0
    %1333 = vmatpush1.msra.mxu0 0.0
    %1334 = vmatprep.subr.mxu0 0.0
    %1335 = vmatpush1.msra.mxu0 0.0
    %1336 = vmatprep.subr.mxu0 0.0
    %1337 = vmatpush1.msra.mxu0 0.0
    %1338 = vmatprep.subr.mxu0 0.0
    %1339 = vmatpush1.msra.mxu0 0.0
    %1340 = vmatprep.subr.mxu0 0.0
    %1341 = vmatpush1.msra.mxu0 0.0
    %1342 = vmatprep.subr.mxu0 0.0
    %1343 = vmatpush1.msra.mxu0 0.0
    %1344 = vmatprep.subr.mxu0 0.0
    %1345 = vmatpush1.msra.mxu0 0.0
    %1346 = vmatprep.subr.mxu0 0.0
    %1347 = vmatpush1.msra.mxu0 0.0
    %1348 = vmatprep.subr.mxu0 0.0
    %1349 = vmatpush1.msra.mxu0 0.0
    %1350 = vmatprep.subr.mxu0 0.0
    %1351 = vmatpush1.msra.mxu0 0.0
    %1352 = vmatprep.subr.mxu0 0.0
    %1353 = vmatpush1.msra.mxu0 0.0
    %1354 = vmatprep.subr.mxu0 0.0
    %1355 = vmatpush1.msra.mxu0 0.0
    %1356 = vmatprep.subr.mxu0 0.0
    %1357 = vmatpush1.msra.mxu0 0.0
    %1358 = vmatprep.subr.mxu0 0.0
    %1359 = vmatpush1.msra.mxu0 0.0
    %1360 = vmatprep.subr.mxu0 0.0
    %1361 = vmatpush1.msra.mxu0 0.0
    %1362 = vmatprep.subr.mxu0 0.0
    %1363 = vmatpush1.msra.mxu0 0.0
    %1364 = vmatprep.subr.mxu0 0.0
    %1365 = vmatpush1.msra.mxu0 0.0
    %1366 = vmatprep.subr.mxu0 0.0
    %1367 = vmatpush1.msra.mxu0 0.0
    %1368 = vmatprep.subr.mxu0 0.0
    %1369 = vmatpush1.msra.mxu0 0.0
    %1370 = vmatprep.subr.mxu0 0.0
    %1371 = vmatpush1.msra.mxu0 0.0
    %1372 = vmatprep.subr.mxu0 0.0
    %1373 = vmatpush1.msra.mxu0 0.0
    %1374 = vmatprep.subr.mxu0 0.0
    %1375 = vmatpush1.msra.mxu0 0.0
    %1376 = vmatprep.subr.mxu0 0.0
    %1377 = vmatpush1.msra.mxu0 0.0
    %1378 = vmatprep.subr.mxu0 0.0
    %1379 = vmatpush1.msra.mxu0 0.0
    %1380 = vmatprep.subr.mxu0 0.0
    %1381 = vmatpush1.msra.mxu0 0.0
    %1382 = vmatprep.subr.mxu0 0.0
    %1383 = vmatpush1.msra.mxu0 0.0
    %1384 = vmatprep.subr.mxu0 0.0
    %1385 = vmatpush1.msra.mxu0 0.0
    %1386 = vmatprep.subr.mxu0 0.0
    %1387 = vmatpush1.msra.mxu0 0.0
    %1388 = vmatprep.subr.mxu0 0.0
    %1389 = vmatpush1.msra.mxu0 0.0
    %1390 = vmatprep.mubr.f32.mxu0 0.0
    %1391 = vmatmul.mubr.f32.gmra.mrb[0].mxu0 %v1324
    %v1392 = vpop.f32.mrb[0].mxu0
    %v1393 = vadd.f32 %v110, %v1392
    %v1394 = vpop.f32.mrb[0].mxu0
    %1395 = vdwg.mxu0
    %v1396 = vmax.f32 %v1393, 0.0
    %1397 = vmatprep.subr.mxu0 %v57
    %1398 = vmatpush1.msra.mxu0 %v56
    %1399 = vmatprep.subr.mxu0 %v60
    %1400 = vmatpush1.msra.mxu0 %v59
    %1401 = vmatprep.subr.mxu0 %v63
    %1402 = vmatpush1.msra.mxu0 %v62
    %1403 = vmatprep.subr.mxu0 %v66
    %1404 = vmatpush1.msra.mxu0 %v65
    %1405 = vmatprep.subr.mxu0 %v69
    %1406 = vmatpush1.msra.mxu0 %v68
    %1407 = vmatprep.subr.mxu0 %v72
    %1408 = vmatpush1.msra.mxu0 %v71
    %1409 = vmatprep.subr.mxu0 %v75
    %1410 = vmatpush1.msra.mxu0 %v74
    %1411 = vmatprep.subr.mxu0 %v78
    %1412 = vmatpush1.msra.mxu0 %v77
    %1413 = vmatprep.subr.mxu0 %v81
    %1414 = vmatpush1.msra.mxu0 %v80
    %1415 = vmatprep.subr.mxu0 %v84
    %1416 = vmatpush1.msra.mxu0 %v83
    %1417 = vmatprep.subr.mxu0 %v87
    %1418 = vmatpush1.msra.mxu0 %v86
    %1419 = vmatprep.subr.mxu0 %v90
    %1420 = vmatpush1.msra.mxu0 %v89
    %1421 = vmatprep.subr.mxu0 %v93
    %1422 = vmatpush1.msra.mxu0 %v92
    %1423 = vmatprep.subr.mxu0 %v96
    %1424 = vmatpush1.msra.mxu0 %v95
    %1425 = vmatprep.subr.mxu0 %v99
    %1426 = vmatpush1.msra.mxu0 %v98
    %1427 = vmatprep.subr.mxu0 %v102
    %1428 = vmatpush1.msra.mxu0 %v101
    %1429 = vmatprep.subr.mxu0 0.0
    %1430 = vmatpush1.msra.mxu0 0.0
    %1431 = vmatprep.subr.mxu0 0.0
    %1432 = vmatpush1.msra.mxu0 0.0
    %1433 = vmatprep.subr.mxu0 0.0
    %1434 = vmatpush1.msra.mxu0 0.0
    %1435 = vmatprep.subr.mxu0 0.0
    %1436 = vmatpush1.msra.mxu0 0.0
    %1437 = vmatprep.subr.mxu0 0.0
    %1438 = vmatpush1.msra.mxu0 0.0
    %1439 = vmatprep.subr.mxu0 0.0
    %1440 = vmatpush1.msra.mxu0 0.0
    %1441 = vmatprep.subr.mxu0 0.0
    %1442 = vmatpush1.msra.mxu0 0.0
    %1443 = vmatprep.subr.mxu0 0.0
    %1444 = vmatpush1.msra.mxu0 0.0
    %1445 = vmatprep.subr.mxu0 0.0
    %1446 = vmatpush1.msra.mxu0 0.0
    %1447 = vmatprep.subr.mxu0 0.0
    %1448 = vmatpush1.msra.mxu0 0.0
    %1449 = vmatprep.subr.mxu0 0.0
    %1450 = vmatpush1.msra.mxu0 0.0
    %1451 = vmatprep.subr.mxu0 0.0
    %1452 = vmatpush1.msra.mxu0 0.0
    %1453 = vmatprep.subr.mxu0 0.0
    %1454 = vmatpush1.msra.mxu0 0.0
    %1455 = vmatprep.subr.mxu0 0.0
    %1456 = vmatpush1.msra.mxu0 0.0
    %1457 = vmatprep.subr.mxu0 0.0
    %1458 = vmatpush1.msra.mxu0 0.0
    %1459 = vmatprep.subr.mxu0 0.0
    %1460 = vmatpush1.msra.mxu0 0.0
    %1461 = vmatprep.mubr.f32.mxu0 0.0
    %1462 = vmatmul.mubr.f32.gmra.mrb[0].mxu0 %v1396
    %v1463 = vpop.f32.mrb[0].mxu0
    %v1464 = vadd.f32 %v191, %v1463
    %v1465 = vpop.f32.mrb[0].mxu0
    %v1466 = vadd.f32 %v195, %v1465
    %1467 = vdwg.mxu0
    %1468 = vmatprep.subr.mxu0 0.0
    %1469 = vmatpush1.msra.mxu0 %v58
    %1470 = vmatprep.subr.mxu0 0.0
    %1471 = vmatpush1.msra.mxu0 %v61
    %1472 = vmatprep.subr.mxu0 0.0
    %1473 = vmatpush1.msra.mxu0 %v64
    %1474 = vmatprep.subr.mxu0 0.0
    %1475 = vmatpush1.msra.mxu0 %v67
    %1476 = vmatprep.subr.mxu0 0.0
    %1477 = vmatpush1.msra.mxu0 %v70
    %1478 = vmatprep.subr.mxu0 0.0
    %1479 = vmatpush1.msra.mxu0 %v73
    %1480 = vmatprep.subr.mxu0 0.0
    %1481 = vmatpush1.msra.mxu0 %v76
    %1482 = vmatprep.subr.mxu0 0.0
    %1483 = vmatpush1.msra.mxu0 %v79
    %1484 = vmatprep.subr.mxu0 0.0
    %1485 = vmatpush1.msra.mxu0 %v82
    %1486 = vmatprep.subr.mxu0 0.0
    %1487 = vmatpush1.msra.mxu0 %v85
    %1488 = vmatprep.subr.mxu0 0.0
    %1489 = vmatpush1.msra.mxu0 %v88
    %1490 = vmatprep.subr.mxu0 0.0
    %1491 = vmatpush1.msra.mxu0 %v91
    %1492 = vmatprep.subr.mxu0 0.0
    %1493 = vmatpush1.msra.mxu0 %v94
    %1494 = vmatprep.subr.mxu0 0.0
    %1495 = vmatpush1.msra.mxu0 %v97
    %1496 = vmatprep.subr.mxu0 0.0
    %1497 = vmatpush1.msra.mxu0 %v100
    %1498 = vmatprep.subr.mxu0 0.0
    %1499 = vmatpush1.msra.mxu0 %v103
    %1500 = vmatprep.subr.mxu0 0.0
    %1501 = vmatpush1.msra.mxu0 0.0
    %1502 = vmatprep.subr.mxu0 0.0
    %1503 = vmatpush1.msra.mxu0 0.0
    %1504 = vmatprep.subr.mxu0 0.0
    %1505 = vmatpush1.msra.mxu0 0.0
    %1506 = vmatprep.subr.mxu0 0.0
    %1507 = vmatpush1.msra.mxu0 0.0
    %1508 = vmatprep.subr.mxu0 0.0
    %1509 = vmatpush1.msra.mxu0 0.0
    %1510 = vmatprep.subr.mxu0 0.0
    %1511 = vmatpush1.msra.mxu0 0.0
    %1512 = vmatprep.subr.mxu0 0.0
    %1513 = vmatpush1.msra.mxu0 0.0
    %1514 = vmatprep.subr.mxu0 0.0
    %1515 = vmatpush1.msra.mxu0 0.0
    %1516 = vmatprep.subr.mxu0 0.0
    %1517 = vmatpush1.msra.mxu0 0.0
    %1518 = vmatprep.subr.mxu0 0.0
    %1519 = vmatpush1.msra.mxu0 0.0
    %1520 = vmatprep.subr.mxu0 0.0
    %1521 = vmatpush1.msra.mxu0 0.0
    %1522 = vmatprep.subr.mxu0 0.0
    %1523 = vmatpush1.msra.mxu0 0.0
    %1524 = vmatprep.subr.mxu0 0.0
    %1525 = vmatpush1.msra.mxu0 0.0
    %1526 = vmatprep.subr.mxu0 0.0
    %1527 = vmatpush1.msra.mxu0 0.0
    %1528 = vmatprep.subr.mxu0 0.0
    %1529 = vmatpush1.msra.mxu0 0.0
    %1530 = vmatprep.subr.mxu0 0.0
    %1531 = vmatpush1.msra.mxu0 0.0
    %1532 = vmatprep.mubr.f32.mxu0 0.0
    %1533 = vmatmul.mubr.f32.gmra.mrb[0].mxu0 %v1396
    %v1534 = vpop.f32.mrb[0].mxu0
    %v1535 = vadd.f32 %v199, %v1534
    %v1536 = vpop.f32.mrb[0].mxu0
    %1537 = vdwg.mxu0
    %v1541 = vcombine.low %v1464, %v1466
    %v1543 = vunpack.c.l.s4 1983009808
    %v1544 = vunpack.c.0.s8 %v1543
    %v1545 = vlaneseq
    %v1546 = vshrl.u32 %v1545, 7
    %v1547 = vsub.s32 %v1544, %v1546
    %v1548 = vrot.slane %v1541, %v1547
    %v1550 = vunpack.c.l.s4 1983009808
    %v1551 = vunpack.c.0.s8 %v1550
    %v1552 = vlaneseq
    %v1553 = vshrl.u32 %v1552, 7
    %v1554 = vsub.s32 %v1551, %v1553
    %v1555 = vrot.slane %v1535, %v1554
    %v1556 = vcombine.low %v1548, %v1555
    %s1558 = scalar_lea.vmem [#allocation2], 30
    %1559 = vst [vmem:[%s1558] sm:$0x3f] %v1556
    %s1560 = scalar_lea.vmem %s0, 12
    %v1561 = vld [vmem:[%s1560] sm:$0x3]
    %v1563 = vsel %vm112, %v1561, 0
    %1565 = vmatprep.subr.mxu0 0.0
    %1566 = vmatpush1.msra.mxu0 %v53
    %1567 = vmatprep.subr.mxu0 0.0
    %1568 = vmatpush1.msra.mxu0 %v54
    %1569 = vmatprep.subr.mxu0 0.0
    %1570 = vmatpush1.msra.mxu0 0.0
    %1571 = vmatprep.subr.mxu0 0.0
    %1572 = vmatpush1.msra.mxu0 0.0
    %1573 = vmatprep.subr.mxu0 0.0
    %1574 = vmatpush1.msra.mxu0 0.0
    %1575 = vmatprep.subr.mxu0 0.0
    %1576 = vmatpush1.msra.mxu0 0.0
    %1577 = vmatprep.subr.mxu0 0.0
    %1578 = vmatpush1.msra.mxu0 0.0
    %1579 = vmatprep.subr.mxu0 0.0
    %1580 = vmatpush1.msra.mxu0 0.0
    %1581 = vmatprep.subr.mxu0 0.0
    %1582 = vmatpush1.msra.mxu0 0.0
    %1583 = vmatprep.subr.mxu0 0.0
    %1584 = vmatpush1.msra.mxu0 0.0
    %1585 = vmatprep.subr.mxu0 0.0
    %1586 = vmatpush1.msra.mxu0 0.0
    %1587 = vmatprep.subr.mxu0 0.0
    %1588 = vmatpush1.msra.mxu0 0.0
    %1589 = vmatprep.subr.mxu0 0.0
    %1590 = vmatpush1.msra.mxu0 0.0
    %1591 = vmatprep.subr.mxu0 0.0
    %1592 = vmatpush1.msra.mxu0 0.0
    %1593 = vmatprep.subr.mxu0 0.0
    %1594 = vmatpush1.msra.mxu0 0.0
    %1595 = vmatprep.subr.mxu0 0.0
    %1596 = vmatpush1.msra.mxu0 0.0
    %1597 = vmatprep.subr.mxu0 0.0
    %1598 = vmatpush1.msra.mxu0 0.0
    %1599 = vmatprep.subr.mxu0 0.0
    %1600 = vmatpush1.msra.mxu0 0.0
    %1601 = vmatprep.subr.mxu0 0.0
    %1602 = vmatpush1.msra.mxu0 0.0
    %1603 = vmatprep.subr.mxu0 0.0
    %1604 = vmatpush1.msra.mxu0 0.0
    %1605 = vmatprep.subr.mxu0 0.0
    %1606 = vmatpush1.msra.mxu0 0.0
    %1607 = vmatprep.subr.mxu0 0.0
    %1608 = vmatpush1.msra.mxu0 0.0
    %1609 = vmatprep.subr.mxu0 0.0
    %1610 = vmatpush1.msra.mxu0 0.0
    %1611 = vmatprep.subr.mxu0 0.0
    %1612 = vmatpush1.msra.mxu0 0.0
    %1613 = vmatprep.subr.mxu0 0.0
    %1614 = vmatpush1.msra.mxu0 0.0
    %1615 = vmatprep.subr.mxu0 0.0
    %1616 = vmatpush1.msra.mxu0 0.0
    %1617 = vmatprep.subr.mxu0 0.0
    %1618 = vmatpush1.msra.mxu0 0.0
    %1619 = vmatprep.subr.mxu0 0.0
    %1620 = vmatpush1.msra.mxu0 0.0
    %1621 = vmatprep.subr.mxu0 0.0
    %1622 = vmatpush1.msra.mxu0 0.0
    %1623 = vmatprep.subr.mxu0 0.0
    %1624 = vmatpush1.msra.mxu0 0.0
    %1625 = vmatprep.subr.mxu0 0.0
    %1626 = vmatpush1.msra.mxu0 0.0
    %1627 = vmatprep.subr.mxu0 0.0
    %1628 = vmatpush1.msra.mxu0 0.0
    %1629 = vmatprep.mubr.f32.mxu0 0.0
    %1630 = vmatmul.mubr.f32.gmra.mrb[0].mxu0 %v1563
    %v1631 = vpop.f32.mrb[0].mxu0
    %v1632 = vadd.f32 %v110, %v1631
    %v1633 = vpop.f32.mrb[0].mxu0
    %1634 = vdwg.mxu0
    %v1635 = vmax.f32 %v1632, 0.0
    %1636 = vmatprep.subr.mxu0 %v57
    %1637 = vmatpush1.msra.mxu0 %v56
    %1638 = vmatprep.subr.mxu0 %v60
    %1639 = vmatpush1.msra.mxu0 %v59
    %1640 = vmatprep.subr.mxu0 %v63
    %1641 = vmatpush1.msra.mxu0 %v62
    %1642 = vmatprep.subr.mxu0 %v66
    %1643 = vmatpush1.msra.mxu0 %v65
    %1644 = vmatprep.subr.mxu0 %v69
    %1645 = vmatpush1.msra.mxu0 %v68
    %1646 = vmatprep.subr.mxu0 %v72
    %1647 = vmatpush1.msra.mxu0 %v71
    %1648 = vmatprep.subr.mxu0 %v75
    %1649 = vmatpush1.msra.mxu0 %v74
    %1650 = vmatprep.subr.mxu0 %v78
    %1651 = vmatpush1.msra.mxu0 %v77
    %1652 = vmatprep.subr.mxu0 %v81
    %1653 = vmatpush1.msra.mxu0 %v80
    %1654 = vmatprep.subr.mxu0 %v84
    %1655 = vmatpush1.msra.mxu0 %v83
    %1656 = vmatprep.subr.mxu0 %v87
    %1657 = vmatpush1.msra.mxu0 %v86
    %1658 = vmatprep.subr.mxu0 %v90
    %1659 = vmatpush1.msra.mxu0 %v89
    %1660 = vmatprep.subr.mxu0 %v93
    %1661 = vmatpush1.msra.mxu0 %v92
    %1662 = vmatprep.subr.mxu0 %v96
    %1663 = vmatpush1.msra.mxu0 %v95
    %1664 = vmatprep.subr.mxu0 %v99
    %1665 = vmatpush1.msra.mxu0 %v98
    %1666 = vmatprep.subr.mxu0 %v102
    %1667 = vmatpush1.msra.mxu0 %v101
    %1668 = vmatprep.subr.mxu0 0.0
    %1669 = vmatpush1.msra.mxu0 0.0
    %1670 = vmatprep.subr.mxu0 0.0
    %1671 = vmatpush1.msra.mxu0 0.0
    %1672 = vmatprep.subr.mxu0 0.0
    %1673 = vmatpush1.msra.mxu0 0.0
    %1674 = vmatprep.subr.mxu0 0.0
    %1675 = vmatpush1.msra.mxu0 0.0
    %1676 = vmatprep.subr.mxu0 0.0
    %1677 = vmatpush1.msra.mxu0 0.0
    %1678 = vmatprep.subr.mxu0 0.0
    %1679 = vmatpush1.msra.mxu0 0.0
    %1680 = vmatprep.subr.mxu0 0.0
    %1681 = vmatpush1.msra.mxu0 0.0
    %1682 = vmatprep.subr.mxu0 0.0
    %1683 = vmatpush1.msra.mxu0 0.0
    %1684 = vmatprep.subr.mxu0 0.0
    %1685 = vmatpush1.msra.mxu0 0.0
    %1686 = vmatprep.subr.mxu0 0.0
    %1687 = vmatpush1.msra.mxu0 0.0
    %1688 = vmatprep.subr.mxu0 0.0
    %1689 = vmatpush1.msra.mxu0 0.0
    %1690 = vmatprep.subr.mxu0 0.0
    %1691 = vmatpush1.msra.mxu0 0.0
    %1692 = vmatprep.subr.mxu0 0.0
    %1693 = vmatpush1.msra.mxu0 0.0
    %1694 = vmatprep.subr.mxu0 0.0
    %1695 = vmatpush1.msra.mxu0 0.0
    %1696 = vmatprep.subr.mxu0 0.0
    %1697 = vmatpush1.msra.mxu0 0.0
    %1698 = vmatprep.subr.mxu0 0.0
    %1699 = vmatpush1.msra.mxu0 0.0
    %1700 = vmatprep.mubr.f32.mxu0 0.0
    %1701 = vmatmul.mubr.f32.gmra.mrb[0].mxu0 %v1635
    %v1702 = vpop.f32.mrb[0].mxu0
    %v1703 = vadd.f32 %v191, %v1702
    %v1704 = vpop.f32.mrb[0].mxu0
    %v1705 = vadd.f32 %v195, %v1704
    %1706 = vdwg.mxu0
    %1707 = vmatprep.subr.mxu0 0.0
    %1708 = vmatpush1.msra.mxu0 %v58
    %1709 = vmatprep.subr.mxu0 0.0
    %1710 = vmatpush1.msra.mxu0 %v61
    %1711 = vmatprep.subr.mxu0 0.0
    %1712 = vmatpush1.msra.mxu0 %v64
    %1713 = vmatprep.subr.mxu0 0.0
    %1714 = vmatpush1.msra.mxu0 %v67
    %1715 = vmatprep.subr.mxu0 0.0
    %1716 = vmatpush1.msra.mxu0 %v70
    %1717 = vmatprep.subr.mxu0 0.0
    %1718 = vmatpush1.msra.mxu0 %v73
    %1719 = vmatprep.subr.mxu0 0.0
    %1720 = vmatpush1.msra.mxu0 %v76
    %1721 = vmatprep.subr.mxu0 0.0
    %1722 = vmatpush1.msra.mxu0 %v79
    %1723 = vmatprep.subr.mxu0 0.0
    %1724 = vmatpush1.msra.mxu0 %v82
    %1725 = vmatprep.subr.mxu0 0.0
    %1726 = vmatpush1.msra.mxu0 %v85
    %1727 = vmatprep.subr.mxu0 0.0
    %1728 = vmatpush1.msra.mxu0 %v88
    %1729 = vmatprep.subr.mxu0 0.0
    %1730 = vmatpush1.msra.mxu0 %v91
    %1731 = vmatprep.subr.mxu0 0.0
    %1732 = vmatpush1.msra.mxu0 %v94
    %1733 = vmatprep.subr.mxu0 0.0
    %1734 = vmatpush1.msra.mxu0 %v97
    %1735 = vmatprep.subr.mxu0 0.0
    %1736 = vmatpush1.msra.mxu0 %v100
    %1737 = vmatprep.subr.mxu0 0.0
    %1738 = vmatpush1.msra.mxu0 %v103
    %1739 = vmatprep.subr.mxu0 0.0
    %1740 = vmatpush1.msra.mxu0 0.0
    %1741 = vmatprep.subr.mxu0 0.0
    %1742 = vmatpush1.msra.mxu0 0.0
    %1743 = vmatprep.subr.mxu0 0.0
    %1744 = vmatpush1.msra.mxu0 0.0
    %1745 = vmatprep.subr.mxu0 0.0
    %1746 = vmatpush1.msra.mxu0 0.0
    %1747 = vmatprep.subr.mxu0 0.0
    %1748 = vmatpush1.msra.mxu0 0.0
    %1749 = vmatprep.subr.mxu0 0.0
    %1750 = vmatpush1.msra.mxu0 0.0
    %1751 = vmatprep.subr.mxu0 0.0
    %1752 = vmatpush1.msra.mxu0 0.0
    %1753 = vmatprep.subr.mxu0 0.0
    %1754 = vmatpush1.msra.mxu0 0.0
    %1755 = vmatprep.subr.mxu0 0.0
    %1756 = vmatpush1.msra.mxu0 0.0
    %1757 = vmatprep.subr.mxu0 0.0
    %1758 = vmatpush1.msra.mxu0 0.0
    %1759 = vmatprep.subr.mxu0 0.0
    %1760 = vmatpush1.msra.mxu0 0.0
    %1761 = vmatprep.subr.mxu0 0.0
    %1762 = vmatpush1.msra.mxu0 0.0
    %1763 = vmatprep.subr.mxu0 0.0
    %1764 = vmatpush1.msra.mxu0 0.0
    %1765 = vmatprep.subr.mxu0 0.0
    %1766 = vmatpush1.msra.mxu0 0.0
    %1767 = vmatprep.subr.mxu0 0.0
    %1768 = vmatpush1.msra.mxu0 0.0
    %1769 = vmatprep.subr.mxu0 0.0
    %1770 = vmatpush1.msra.mxu0 0.0
    %1771 = vmatprep.mubr.f32.mxu0 0.0
    %1772 = vmatmul.mubr.f32.gmra.mrb[0].mxu0 %v1635
    %v1773 = vpop.f32.mrb[0].mxu0
    %v1774 = vadd.f32 %v199, %v1773
    %v1775 = vpop.f32.mrb[0].mxu0
    %1776 = vdwg.mxu0
    %v1780 = vcombine.low %v1703, %v1705
    %v1782 = vunpack.c.l.s4 1983009808
    %v1783 = vunpack.c.0.s8 %v1782
    %v1784 = vlaneseq
    %v1785 = vshrl.u32 %v1784, 7
    %v1786 = vsub.s32 %v1783, %v1785
    %v1787 = vrot.slane %v1780, %v1786
    %v1789 = vunpack.c.l.s4 1983009808
    %v1790 = vunpack.c.0.s8 %v1789
    %v1791 = vlaneseq
    %v1792 = vshrl.u32 %v1791, 7
    %v1793 = vsub.s32 %v1790, %v1792
    %v1794 = vrot.slane %v1774, %v1793
    %v1795 = vcombine.low %v1787, %v1794
    %s1797 = scalar_lea.vmem [#allocation2], 36
    %1798 = vst [vmem:[%s1797] sm:$0x3f] %v1795
    %s1799 = scalar_lea.vmem %s0, 14
    %v1800 = vld [vmem:[%s1799] sm:$0x3]
    %v1802 = vsel %vm112, %v1800, 0
    %1804 = vmatprep.subr.mxu0 0.0
    %1805 = vmatpush1.msra.mxu0 %v53
    %1806 = vmatprep.subr.mxu0 0.0
    %1807 = vmatpush1.msra.mxu0 %v54
    %1808 = vmatprep.subr.mxu0 0.0
    %1809 = vmatpush1.msra.mxu0 0.0
    %1810 = vmatprep.subr.mxu0 0.0
    %1811 = vmatpush1.msra.mxu0 0.0
    %1812 = vmatprep.subr.mxu0 0.0
    %1813 = vmatpush1.msra.mxu0 0.0
    %1814 = vmatprep.subr.mxu0 0.0
    %1815 = vmatpush1.msra.mxu0 0.0
    %1816 = vmatprep.subr.mxu0 0.0
    %1817 = vmatpush1.msra.mxu0 0.0
    %1818 = vmatprep.subr.mxu0 0.0
    %1819 = vmatpush1.msra.mxu0 0.0
    %1820 = vmatprep.subr.mxu0 0.0
    %1821 = vmatpush1.msra.mxu0 0.0
    %1822 = vmatprep.subr.mxu0 0.0
    %1823 = vmatpush1.msra.mxu0 0.0
    %1824 = vmatprep.subr.mxu0 0.0
    %1825 = vmatpush1.msra.mxu0 0.0
    %1826 = vmatprep.subr.mxu0 0.0
    %1827 = vmatpush1.msra.mxu0 0.0
    %1828 = vmatprep.subr.mxu0 0.0
    %1829 = vmatpush1.msra.mxu0 0.0
    %1830 = vmatprep.subr.mxu0 0.0
    %1831 = vmatpush1.msra.mxu0 0.0
    %1832 = vmatprep.subr.mxu0 0.0
    %1833 = vmatpush1.msra.mxu0 0.0
    %1834 = vmatprep.subr.mxu0 0.0
    %1835 = vmatpush1.msra.mxu0 0.0
    %1836 = vmatprep.subr.mxu0 0.0
    %1837 = vmatpush1.msra.mxu0 0.0
    %1838 = vmatprep.subr.mxu0 0.0
    %1839 = vmatpush1.msra.mxu0 0.0
    %1840 = vmatprep.subr.mxu0 0.0
    %1841 = vmatpush1.msra.mxu0 0.0
    %1842 = vmatprep.subr.mxu0 0.0
    %1843 = vmatpush1.msra.mxu0 0.0
    %1844 = vmatprep.subr.mxu0 0.0
    %1845 = vmatpush1.msra.mxu0 0.0
    %1846 = vmatprep.subr.mxu0 0.0
    %1847 = vmatpush1.msra.mxu0 0.0
    %1848 = vmatprep.subr.mxu0 0.0
    %1849 = vmatpush1.msra.mxu0 0.0
    %1850 = vmatprep.subr.mxu0 0.0
    %1851 = vmatpush1.msra.mxu0 0.0
    %1852 = vmatprep.subr.mxu0 0.0
    %1853 = vmatpush1.msra.mxu0 0.0
    %1854 = vmatprep.subr.mxu0 0.0
    %1855 = vmatpush1.msra.mxu0 0.0
    %1856 = vmatprep.subr.mxu0 0.0
    %1857 = vmatpush1.msra.mxu0 0.0
    %1858 = vmatprep.subr.mxu0 0.0
    %1859 = vmatpush1.msra.mxu0 0.0
    %1860 = vmatprep.subr.mxu0 0.0
    %1861 = vmatpush1.msra.mxu0 0.0
    %1862 = vmatprep.subr.mxu0 0.0
    %1863 = vmatpush1.msra.mxu0 0.0
    %1864 = vmatprep.subr.mxu0 0.0
    %1865 = vmatpush1.msra.mxu0 0.0
    %1866 = vmatprep.subr.mxu0 0.0
    %1867 = vmatpush1.msra.mxu0 0.0
    %1868 = vmatprep.mubr.f32.mxu0 0.0
    %1869 = vmatmul.mubr.f32.gmra.mrb[0].mxu0 %v1802
    %v1870 = vpop.f32.mrb[0].mxu0
    %v1871 = vadd.f32 %v110, %v1870
    %v1872 = vpop.f32.mrb[0].mxu0
    %1873 = vdwg.mxu0
    %v1874 = vmax.f32 %v1871, 0.0
    %1875 = vmatprep.subr.mxu0 %v57
    %1876 = vmatpush1.msra.mxu0 %v56
    %1877 = vmatprep.subr.mxu0 %v60
    %1878 = vmatpush1.msra.mxu0 %v59
    %1879 = vmatprep.subr.mxu0 %v63
    %1880 = vmatpush1.msra.mxu0 %v62
    %1881 = vmatprep.subr.mxu0 %v66
    %1882 = vmatpush1.msra.mxu0 %v65
    %1883 = vmatprep.subr.mxu0 %v69
    %1884 = vmatpush1.msra.mxu0 %v68
    %1885 = vmatprep.subr.mxu0 %v72
    %1886 = vmatpush1.msra.mxu0 %v71
    %1887 = vmatprep.subr.mxu0 %v75
    %1888 = vmatpush1.msra.mxu0 %v74
    %1889 = vmatprep.subr.mxu0 %v78
    %1890 = vmatpush1.msra.mxu0 %v77
    %1891 = vmatprep.subr.mxu0 %v81
    %1892 = vmatpush1.msra.mxu0 %v80
    %1893 = vmatprep.subr.mxu0 %v84
    %1894 = vmatpush1.msra.mxu0 %v83
    %1895 = vmatprep.subr.mxu0 %v87
    %1896 = vmatpush1.msra.mxu0 %v86
    %1897 = vmatprep.subr.mxu0 %v90
    %1898 = vmatpush1.msra.mxu0 %v89
    %1899 = vmatprep.subr.mxu0 %v93
    %1900 = vmatpush1.msra.mxu0 %v92
    %1901 = vmatprep.subr.mxu0 %v96
    %1902 = vmatpush1.msra.mxu0 %v95
    %1903 = vmatprep.subr.mxu0 %v99
    %1904 = vmatpush1.msra.mxu0 %v98
    %1905 = vmatprep.subr.mxu0 %v102
    %1906 = vmatpush1.msra.mxu0 %v101
    %1907 = vmatprep.subr.mxu0 0.0
    %1908 = vmatpush1.msra.mxu0 0.0
    %1909 = vmatprep.subr.mxu0 0.0
    %1910 = vmatpush1.msra.mxu0 0.0
    %1911 = vmatprep.subr.mxu0 0.0
    %1912 = vmatpush1.msra.mxu0 0.0
    %1913 = vmatprep.subr.mxu0 0.0
    %1914 = vmatpush1.msra.mxu0 0.0
    %1915 = vmatprep.subr.mxu0 0.0
    %1916 = vmatpush1.msra.mxu0 0.0
    %1917 = vmatprep.subr.mxu0 0.0
    %1918 = vmatpush1.msra.mxu0 0.0
    %1919 = vmatprep.subr.mxu0 0.0
    %1920 = vmatpush1.msra.mxu0 0.0
    %1921 = vmatprep.subr.mxu0 0.0
    %1922 = vmatpush1.msra.mxu0 0.0
    %1923 = vmatprep.subr.mxu0 0.0
    %1924 = vmatpush1.msra.mxu0 0.0
    %1925 = vmatprep.subr.mxu0 0.0
    %1926 = vmatpush1.msra.mxu0 0.0
    %1927 = vmatprep.subr.mxu0 0.0
    %1928 = vmatpush1.msra.mxu0 0.0
    %1929 = vmatprep.subr.mxu0 0.0
    %1930 = vmatpush1.msra.mxu0 0.0
    %1931 = vmatprep.subr.mxu0 0.0
    %1932 = vmatpush1.msra.mxu0 0.0
    %1933 = vmatprep.subr.mxu0 0.0
    %1934 = vmatpush1.msra.mxu0 0.0
    %1935 = vmatprep.subr.mxu0 0.0
    %1936 = vmatpush1.msra.mxu0 0.0
    %1937 = vmatprep.subr.mxu0 0.0
    %1938 = vmatpush1.msra.mxu0 0.0
    %1939 = vmatprep.mubr.f32.mxu0 0.0
    %1940 = vmatmul.mubr.f32.gmra.mrb[0].mxu0 %v1874
    %v1941 = vpop.f32.mrb[0].mxu0
    %v1942 = vadd.f32 %v191, %v1941
    %v1943 = vpop.f32.mrb[0].mxu0
    %v1944 = vadd.f32 %v195, %v1943
    %1945 = vdwg.mxu0
    %1946 = vmatprep.subr.mxu0 0.0
    %1947 = vmatpush1.msra.mxu0 %v58
    %1948 = vmatprep.subr.mxu0 0.0
    %1949 = vmatpush1.msra.mxu0 %v61
    %1950 = vmatprep.subr.mxu0 0.0
    %1951 = vmatpush1.msra.mxu0 %v64
    %1952 = vmatprep.subr.mxu0 0.0
    %1953 = vmatpush1.msra.mxu0 %v67
    %1954 = vmatprep.subr.mxu0 0.0
    %1955 = vmatpush1.msra.mxu0 %v70
    %1956 = vmatprep.subr.mxu0 0.0
    %1957 = vmatpush1.msra.mxu0 %v73
    %1958 = vmatprep.subr.mxu0 0.0
    %1959 = vmatpush1.msra.mxu0 %v76
    %1960 = vmatprep.subr.mxu0 0.0
    %1961 = vmatpush1.msra.mxu0 %v79
    %1962 = vmatprep.subr.mxu0 0.0
    %1963 = vmatpush1.msra.mxu0 %v82
    %1964 = vmatprep.subr.mxu0 0.0
    %1965 = vmatpush1.msra.mxu0 %v85
    %1966 = vmatprep.subr.mxu0 0.0
    %1967 = vmatpush1.msra.mxu0 %v88
    %1968 = vmatprep.subr.mxu0 0.0
    %1969 = vmatpush1.msra.mxu0 %v91
    %1970 = vmatprep.subr.mxu0 0.0
    %1971 = vmatpush1.msra.mxu0 %v94
    %1972 = vmatprep.subr.mxu0 0.0
    %1973 = vmatpush1.msra.mxu0 %v97
    %1974 = vmatprep.subr.mxu0 0.0
    %1975 = vmatpush1.msra.mxu0 %v100
    %1976 = vmatprep.subr.mxu0 0.0
    %1977 = vmatpush1.msra.mxu0 %v103
    %1978 = vmatprep.subr.mxu0 0.0
    %1979 = vmatpush1.msra.mxu0 0.0
    %1980 = vmatprep.subr.mxu0 0.0
    %1981 = vmatpush1.msra.mxu0 0.0
    %1982 = vmatprep.subr.mxu0 0.0
    %1983 = vmatpush1.msra.mxu0 0.0
    %1984 = vmatprep.subr.mxu0 0.0
    %1985 = vmatpush1.msra.mxu0 0.0
    %1986 = vmatprep.subr.mxu0 0.0
    %1987 = vmatpush1.msra.mxu0 0.0
    %1988 = vmatprep.subr.mxu0 0.0
    %1989 = vmatpush1.msra.mxu0 0.0
    %1990 = vmatprep.subr.mxu0 0.0
    %1991 = vmatpush1.msra.mxu0 0.0
    %1992 = vmatprep.subr.mxu0 0.0
    %1993 = vmatpush1.msra.mxu0 0.0
    %1994 = vmatprep.subr.mxu0 0.0
    %1995 = vmatpush1.msra.mxu0 0.0
    %1996 = vmatprep.subr.mxu0 0.0
    %1997 = vmatpush1.msra.mxu0 0.0
    %1998 = vmatprep.subr.mxu0 0.0
    %1999 = vmatpush1.msra.mxu0 0.0
    %2000 = vmatprep.subr.mxu0 0.0
    %2001 = vmatpush1.msra.mxu0 0.0
    %2002 = vmatprep.subr.mxu0 0.0
    %2003 = vmatpush1.msra.mxu0 0.0
    %2004 = vmatprep.subr.mxu0 0.0
    %2005 = vmatpush1.msra.mxu0 0.0
    %2006 = vmatprep.subr.mxu0 0.0
    %2007 = vmatpush1.msra.mxu0 0.0
    %2008 = vmatprep.subr.mxu0 0.0
    %2009 = vmatpush1.msra.mxu0 0.0
    %2010 = vmatprep.mubr.f32.mxu0 0.0
    %2011 = vmatmul.mubr.f32.gmra.mrb[0].mxu0 %v1874
    %v2012 = vpop.f32.mrb[0].mxu0
    %v2013 = vadd.f32 %v199, %v2012
    %v2014 = vpop.f32.mrb[0].mxu0
    %2015 = vdwg.mxu0
    %v2019 = vcombine.low %v1942, %v1944
    %v2021 = vunpack.c.l.s4 1983009808
    %v2022 = vunpack.c.0.s8 %v2021
    %v2023 = vlaneseq
    %v2024 = vshrl.u32 %v2023, 7
    %v2025 = vsub.s32 %v2022, %v2024
    %v2026 = vrot.slane %v2019, %v2025
    %v2028 = vunpack.c.l.s4 1983009808
    %v2029 = vunpack.c.0.s8 %v2028
    %v2030 = vlaneseq
    %v2031 = vshrl.u32 %v2030, 7
    %v2032 = vsub.s32 %v2029, %v2031
    %v2033 = vrot.slane %v2013, %v2032
    %v2034 = vcombine.low %v2026, %v2033
    %s2036 = scalar_lea.vmem [#allocation2], 42
    %2037 = vst [vmem:[%s2036] sm:$0x3f] %v2034
    %v2038 = vld [vmem:[%s5] sm:$0xff]
    %v2039 = vld [vmem:[%s5 + $0x8] sm:$0xff]
    %v2040 = vld [vmem:[%s5 + $0x10] sm:$0xff]
    %v2041 = vld [vmem:[%s5 + $0x18] sm:$0xff]
    %v2042 = vld [vmem:[%s5 + $0x20] sm:$0xff]
    %v2043 = vld [vmem:[%s5 + $0x28] sm:$0xff]
    %v2044 = vld [vmem:[%s5 + $0x30] sm:$0xff]
    %v2045 = vld [vmem:[%s5 + $0x38] sm:$0xff]
    %v2046 = vld [vmem:[%s5 + $0x40] sm:$0xff]
    %v2047 = vld [vmem:[%s5 + $0x48] sm:$0xff]
    %v2048 = vld [vmem:[%s5 + $0x50] sm:$0xff]
    %v2049 = vld [vmem:[%s5 + $0x58] sm:$0xff]
    %v2050 = vld [vmem:[%s5 + $0x60] sm:$0xff]
    %v2051 = vld [vmem:[%s5 + $0x68] sm:$0xff]
    %v2052 = vld [vmem:[%s5 + $0x70] sm:$0xff]
    %v2053 = vld [vmem:[%s5 + $0x78] sm:$0xff]
    %v2054 = vld [vmem:[%s5 + $0x80] sm:$0xff]
    %v2055 = vld [vmem:[%s5 + $0x88] sm:$0xff]
    %v2056 = vld [vmem:[%s5 + $0x90] sm:$0xff]
    %v2057 = vld [vmem:[%s5 + $0x98] sm:$0xff]
    %v2058 = vld [vmem:[%s5 + $0xa0] sm:$0xff]
    %v2059 = vld [vmem:[%s5 + $0xa8] sm:$0xff]
    %v2060 = vld [vmem:[%s5 + $0xb0] sm:$0xff]
    %v2061 = vld [vmem:[%s5 + $0xb8] sm:$0xff]
    %v2062 = vld [vmem:[%s5 + $0xc0] sm:$0xff]
    %v2063 = vld [vmem:[%s5 + $0xc8] sm:$0xff]
    %v2064 = vld [vmem:[%s5 + $0xd0] sm:$0xff]
    %v2065 = vld [vmem:[%s5 + $0xd8] sm:$0xff]
    %v2066 = vld [vmem:[%s5 + $0xe0] sm:$0xff]
    %v2067 = vld [vmem:[%s5 + $0xe8] sm:$0xff]
    %v2068 = vld [vmem:[%s5 + $0xf0] sm:$0xff]
    %v2069 = vld [vmem:[%s5 + $0xf8] sm:$0xff]
    %v2070 = vld [vmem:[%s5 + $0x100] sm:$0xff]
    %v2071 = vld [vmem:[%s5 + $0x108] sm:$0xff]
    %v2072 = vld [vmem:[%s5 + $0x110] sm:$0xff]
    %v2073 = vld [vmem:[%s5 + $0x118] sm:$0xff]
    %v2074 = vld [vmem:[%s5 + $0x120] sm:$0xff]
    %v2075 = vld [vmem:[%s5 + $0x128] sm:$0xff]
    %v2076 = vld [vmem:[%s5 + $0x130] sm:$0xff]
    %v2077 = vld [vmem:[%s5 + $0x138] sm:$0xff]
    %v2078 = vld [vmem:[%s5 + $0x140] sm:$0xff]
    %v2079 = vld [vmem:[%s5 + $0x148] sm:$0xff]
    %v2080 = vld [vmem:[%s5 + $0x150] sm:$0xff]
    %v2081 = vld [vmem:[%s5 + $0x158] sm:$0xff]
    %v2082 = vld [vmem:[%s5 + $0x160] sm:$0xff]
    %v2083 = vld [vmem:[%s5 + $0x168] sm:$0xff]
    %v2084 = vld [vmem:[%s5 + $0x170] sm:$0xff]
    %v2085 = vld [vmem:[%s5 + $0x178] sm:$0xff]
    %v2086 = vld [vmem:[%s6] sm:$0x1]
    %v2087 = vld [vmem:[%s7] sm:$0x3]
    %2088 = vmatprep.subr.mxu0 %v2039
    %2089 = vmatpush1.msra.mxu0 %v2038
    %2090 = vmatprep.subr.mxu0 %v2042
    %2091 = vmatpush1.msra.mxu0 %v2041
    %2092 = vmatprep.subr.mxu0 %v2045
    %2093 = vmatpush1.msra.mxu0 %v2044
    %2094 = vmatprep.subr.mxu0 %v2048
    %2095 = vmatpush1.msra.mxu0 %v2047
    %2096 = vmatprep.subr.mxu0 %v2051
    %2097 = vmatpush1.msra.mxu0 %v2050
    %2098 = vmatprep.subr.mxu0 %v2054
    %2099 = vmatpush1.msra.mxu0 %v2053
    %2100 = vmatprep.subr.mxu0 %v2057
    %2101 = vmatpush1.msra.mxu0 %v2056
    %2102 = vmatprep.subr.mxu0 %v2060
    %2103 = vmatpush1.msra.mxu0 %v2059
    %2104 = vmatprep.subr.mxu0 %v2063
    %2105 = vmatpush1.msra.mxu0 %v2062
    %2106 = vmatprep.subr.mxu0 %v2066
    %2107 = vmatpush1.msra.mxu0 %v2065
    %2108 = vmatprep.subr.mxu0 %v2069
    %2109 = vmatpush1.msra.mxu0 %v2068
    %2110 = vmatprep.subr.mxu0 %v2072
    %2111 = vmatpush1.msra.mxu0 %v2071
    %2112 = vmatprep.subr.mxu0 %v2075
    %2113 = vmatpush1.msra.mxu0 %v2074
    %2114 = vmatprep.subr.mxu0 %v2078
    %2115 = vmatpush1.msra.mxu0 %v2077
    %2116 = vmatprep.subr.mxu0 %v2081
    %2117 = vmatpush1.msra.mxu0 %v2080
    %2118 = vmatprep.subr.mxu0 %v2084
    %2119 = vmatpush1.msra.mxu0 %v2083
    %2120 = vmatprep.subr.mxu0 0.0
    %2121 = vmatpush1.msra.mxu0 0.0
    %2122 = vmatprep.subr.mxu0 0.0
    %2123 = vmatpush1.msra.mxu0 0.0
    %2124 = vmatprep.subr.mxu0 0.0
    %2125 = vmatpush1.msra.mxu0 0.0
    %2126 = vmatprep.subr.mxu0 0.0
    %2127 = vmatpush1.msra.mxu0 0.0
    %2128 = vmatprep.subr.mxu0 0.0
    %2129 = vmatpush1.msra.mxu0 0.0
    %2130 = vmatprep.subr.mxu0 0.0
    %2131 = vmatpush1.msra.mxu0 0.0
    %2132 = vmatprep.subr.mxu0 0.0
    %2133 = vmatpush1.msra.mxu0 0.0
    %2134 = vmatprep.subr.mxu0 0.0
    %2135 = vmatpush1.msra.mxu0 0.0
    %2136 = vmatprep.subr.mxu0 0.0
    %2137 = vmatpush1.msra.mxu0 0.0
    %2138 = vmatprep.subr.mxu0 0.0
    %2139 = vmatpush1.msra.mxu0 0.0
    %2140 = vmatprep.subr.mxu0 0.0
    %2141 = vmatpush1.msra.mxu0 0.0
    %2142 = vmatprep.subr.mxu0 0.0
    %2143 = vmatpush1.msra.mxu0 0.0
    %2144 = vmatprep.subr.mxu0 0.0
    %2145 = vmatpush1.msra.mxu0 0.0
    %2146 = vmatprep.subr.mxu0 0.0
    %2147 = vmatpush1.msra.mxu0 0.0
    %2148 = vmatprep.subr.mxu0 0.0
    %2149 = vmatpush1.msra.mxu0 0.0
    %2150 = vmatprep.subr.mxu0 0.0
    %2151 = vmatpush1.msra.mxu0 0.0
    %2152 = vmatprep.mubr.f32.mxu0 0.0
    %2153 = vmatmul.mubr.f32.gmra.mrb[0].mxu0 %v2087
    %v2154 = vpop.f32.mrb[0].mxu0
    %v2155 = vadd.f32 0.0, %v2154
    %v2156 = vpop.f32.mrb[0].mxu0
    %v2157 = vadd.f32 0.0, %v2156
    %2158 = vdwg.mxu0
    %2159 = vmatprep.subr.mxu0 0.0
    %2160 = vmatpush1.msra.mxu0 %v2040
    %2161 = vmatprep.subr.mxu0 0.0
    %2162 = vmatpush1.msra.mxu0 %v2043
    %2163 = vmatprep.subr.mxu0 0.0
    %2164 = vmatpush1.msra.mxu0 %v2046
    %2165 = vmatprep.subr.mxu0 0.0
    %2166 = vmatpush1.msra.mxu0 %v2049
    %2167 = vmatprep.subr.mxu0 0.0
    %2168 = vmatpush1.msra.mxu0 %v2052
    %2169 = vmatprep.subr.mxu0 0.0
    %2170 = vmatpush1.msra.mxu0 %v2055
    %2171 = vmatprep.subr.mxu0 0.0
    %2172 = vmatpush1.msra.mxu0 %v2058
    %2173 = vmatprep.subr.mxu0 0.0
    %2174 = vmatpush1.msra.mxu0 %v2061
    %2175 = vmatprep.subr.mxu0 0.0
    %2176 = vmatpush1.msra.mxu0 %v2064
    %2177 = vmatprep.subr.mxu0 0.0
    %2178 = vmatpush1.msra.mxu0 %v2067
    %2179 = vmatprep.subr.mxu0 0.0
    %2180 = vmatpush1.msra.mxu0 %v2070
    %2181 = vmatprep.subr.mxu0 0.0
    %2182 = vmatpush1.msra.mxu0 %v2073
    %2183 = vmatprep.subr.mxu0 0.0
    %2184 = vmatpush1.msra.mxu0 %v2076
    %2185 = vmatprep.subr.mxu0 0.0
    %2186 = vmatpush1.msra.mxu0 %v2079
    %2187 = vmatprep.subr.mxu0 0.0
    %2188 = vmatpush1.msra.mxu0 %v2082
    %2189 = vmatprep.subr.mxu0 0.0
    %2190 = vmatpush1.msra.mxu0 %v2085
    %2191 = vmatprep.subr.mxu0 0.0
    %2192 = vmatpush1.msra.mxu0 0.0
    %2193 = vmatprep.subr.mxu0 0.0
    %2194 = vmatpush1.msra.mxu0 0.0
    %2195 = vmatprep.subr.mxu0 0.0
    %2196 = vmatpush1.msra.mxu0 0.0
    %2197 = vmatprep.subr.mxu0 0.0
    %2198 = vmatpush1.msra.mxu0 0.0
    %2199 = vmatprep.subr.mxu0 0.0
    %2200 = vmatpush1.msra.mxu0 0.0
    %2201 = vmatprep.subr.mxu0 0.0
    %2202 = vmatpush1.msra.mxu0 0.0
    %2203 = vmatprep.subr.mxu0 0.0
    %2204 = vmatpush1.msra.mxu0 0.0
    %2205 = vmatprep.subr.mxu0 0.0
    %2206 = vmatpush1.msra.mxu0 0.0
    %2207 = vmatprep.subr.mxu0 0.0
    %2208 = vmatpush1.msra.mxu0 0.0
    %2209 = vmatprep.subr.mxu0 0.0
    %2210 = vmatpush1.msra.mxu0 0.0
    %2211 = vmatprep.subr.mxu0 0.0
    %2212 = vmatpush1.msra.mxu0 0.0
    %2213 = vmatprep.subr.mxu0 0.0
    %2214 = vmatpush1.msra.mxu0 0.0
    %2215 = vmatprep.subr.mxu0 0.0
    %2216 = vmatpush1.msra.mxu0 0.0
    %2217 = vmatprep.subr.mxu0 0.0
    %2218 = vmatpush1.msra.mxu0 0.0
    %2219 = vmatprep.subr.mxu0 0.0
    %2220 = vmatpush1.msra.mxu0 0.0
    %2221 = vmatprep.subr.mxu0 0.0
    %2222 = vmatpush1.msra.mxu0 0.0
    %2223 = vmatprep.mubr.f32.mxu0 0.0
    %2224 = vmatmul.mubr.f32.gmra.mrb[0].mxu0 %v2087
    %v2225 = vpop.f32.mrb[0].mxu0
    %v2226 = vadd.f32 0.0, %v2225
    %v2227 = vpop.f32.mrb[0].mxu0
    %2228 = vdwg.mxu0
    %v2229 = vld [vmem:[#allocation2] sm:$0x3f]
    %v2230 = vadd.f32 %v2229, %v2155
    %v2231 = vxor.u32 %v2230, 2147483648
    %v2232 = vmul.f32 %v2231, 1.442695
    %v2233 = vpow.pop %v2232
    %v2234 = vadd.f32 %v2233, 1.0
    %v2235 = vrcp.pop %v2234
    %v2236 = vmul.f32 1.0, %v2235
    %v2238 = vrot.slane %v2229, 2
    %v2240 = vadd.f32 %v2238, %v2157
    %v2241 = vxor.u32 %v2240, 2147483648
    %v2242 = vmul.f32 %v2241, 1.442695
    %v2243 = vpow.pop %v2242
    %v2244 = vadd.f32 %v2243, 1.0
    %v2245 = vrcp.pop %v2244
    %v2246 = vmul.f32 1.0, %v2245
    %v2248 = vlaneseq
    %v2249 = vshrl.u32 %v2248, 7
    %v2250 = vsub.s32 0, %v2249
    %v2251 = vrot.slane %v2086, %v2250
    %v2253 = vadd.f32 %v2226, %v2251
    %v2254 = vmul.f32 %v2236, %v2253
    %v2255 = vrot.slane %v2229, 4
    %v2257 = vadd.f32 %v2255, %v2254
    %v2258 = vtanh.pop %v2257
    %v2259 = vsub.f32 1.0, %v2246
    %v2260 = vmul.f32 %v2259, %v2258
    %v2261 = vmul.f32 %v2246, %v2087
    %v2262 = vadd.f32 %v2260, %v2261
    %2263 = vst [vmem:[#allocation2] sm:$0x3] %v2262
    %2264 = vmatprep.subr.mxu0 %v2039
    %2265 = vmatpush1.msra.mxu0 %v2038
    %2266 = vmatprep.subr.mxu0 %v2042
    %2267 = vmatpush1.msra.mxu0 %v2041
    %2268 = vmatprep.subr.mxu0 %v2045
    %2269 = vmatpush1.msra.mxu0 %v2044
    %2270 = vmatprep.subr.mxu0 %v2048
    %2271 = vmatpush1.msra.mxu0 %v2047
    %2272 = vmatprep.subr.mxu0 %v2051
    %2273 = vmatpush1.msra.mxu0 %v2050
    %2274 = vmatprep.subr.mxu0 %v2054
    %2275 = vmatpush1.msra.mxu0 %v2053
    %2276 = vmatprep.subr.mxu0 %v2057
    %2277 = vmatpush1.msra.mxu0 %v2056
    %2278 = vmatprep.subr.mxu0 %v2060
    %2279 = vmatpush1.msra.mxu0 %v2059
    %2280 = vmatprep.subr.mxu0 %v2063
    %2281 = vmatpush1.msra.mxu0 %v2062
    %2282 = vmatprep.subr.mxu0 %v2066
    %2283 = vmatpush1.msra.mxu0 %v2065
    %2284 = vmatprep.subr.mxu0 %v2069
    %2285 = vmatpush1.msra.mxu0 %v2068
    %2286 = vmatprep.subr.mxu0 %v2072
    %2287 = vmatpush1.msra.mxu0 %v2071
    %2288 = vmatprep.subr.mxu0 %v2075
    %2289 = vmatpush1.msra.mxu0 %v2074
    %2290 = vmatprep.subr.mxu0 %v2078
    %2291 = vmatpush1.msra.mxu0 %v2077
    %2292 = vmatprep.subr.mxu0 %v2081
    %2293 = vmatpush1.msra.mxu0 %v2080
    %2294 = vmatprep.subr.mxu0 %v2084
    %2295 = vmatpush1.msra.mxu0 %v2083
    %2296 = vmatprep.subr.mxu0 0.0
    %2297 = vmatpush1.msra.mxu0 0.0
    %2298 = vmatprep.subr.mxu0 0.0
    %2299 = vmatpush1.msra.mxu0 0.0
    %2300 = vmatprep.subr.mxu0 0.0
    %2301 = vmatpush1.msra.mxu0 0.0
    %2302 = vmatprep.subr.mxu0 0.0
    %2303 = vmatpush1.msra.mxu0 0.0
    %2304 = vmatprep.subr.mxu0 0.0
    %2305 = vmatpush1.msra.mxu0 0.0
    %2306 = vmatprep.subr.mxu0 0.0
    %2307 = vmatpush1.msra.mxu0 0.0
    %2308 = vmatprep.subr.mxu0 0.0
    %2309 = vmatpush1.msra.mxu0 0.0
    %2310 = vmatprep.subr.mxu0 0.0
    %2311 = vmatpush1.msra.mxu0 0.0
    %2312 = vmatprep.subr.mxu0 0.0
    %2313 = vmatpush1.msra.mxu0 0.0
    %2314 = vmatprep.subr.mxu0 0.0
    %2315 = vmatpush1.msra.mxu0 0.0
    %2316 = vmatprep.subr.mxu0 0.0
    %2317 = vmatpush1.msra.mxu0 0.0
    %2318 = vmatprep.subr.mxu0 0.0
    %2319 = vmatpush1.msra.mxu0 0.0
    %2320 = vmatprep.subr.mxu0 0.0
    %2321 = vmatpush1.msra.mxu0 0.0
    %2322 = vmatprep.subr.mxu0 0.0
    %2323 = vmatpush1.msra.mxu0 0.0
    %2324 = vmatprep.subr.mxu0 0.0
    %2325 = vmatpush1.msra.mxu0 0.0
    %2326 = vmatprep.subr.mxu0 0.0
    %2327 = vmatpush1.msra.mxu0 0.0
    %2328 = vmatprep.mubr.f32.mxu0 0.0
    %2329 = vmatmul.mubr.f32.gmra.mrb[0].mxu0 %v2262
    %v2330 = vpop.f32.mrb[0].mxu0
    %v2331 = vadd.f32 0.0, %v2330
    %v2332 = vpop.f32.mrb[0].mxu0
    %v2333 = vadd.f32 0.0, %v2332
    %2334 = vdwg.mxu0
    %2335 = vmatprep.subr.mxu0 0.0
    %2336 = vmatpush1.msra.mxu0 %v2040
    %2337 = vmatprep.subr.mxu0 0.0
    %2338 = vmatpush1.msra.mxu0 %v2043
    %2339 = vmatprep.subr.mxu0 0.0
    %2340 = vmatpush1.msra.mxu0 %v2046
    %2341 = vmatprep.subr.mxu0 0.0
    %2342 = vmatpush1.msra.mxu0 %v2049
    %2343 = vmatprep.subr.mxu0 0.0
    %2344 = vmatpush1.msra.mxu0 %v2052
    %2345 = vmatprep.subr.mxu0 0.0
    %2346 = vmatpush1.msra.mxu0 %v2055
    %2347 = vmatprep.subr.mxu0 0.0
    %2348 = vmatpush1.msra.mxu0 %v2058
    %2349 = vmatprep.subr.mxu0 0.0
    %2350 = vmatpush1.msra.mxu0 %v2061
    %2351 = vmatprep.subr.mxu0 0.0
    %2352 = vmatpush1.msra.mxu0 %v2064
    %2353 = vmatprep.subr.mxu0 0.0
    %2354 = vmatpush1.msra.mxu0 %v2067
    %2355 = vmatprep.subr.mxu0 0.0
    %2356 = vmatpush1.msra.mxu0 %v2070
    %2357 = vmatprep.subr.mxu0 0.0
    %2358 = vmatpush1.msra.mxu0 %v2073
    %2359 = vmatprep.subr.mxu0 0.0
    %2360 = vmatpush1.msra.mxu0 %v2076
    %2361 = vmatprep.subr.mxu0 0.0
    %2362 = vmatpush1.msra.mxu0 %v2079
    %2363 = vmatprep.subr.mxu0 0.0
    %2364 = vmatpush1.msra.mxu0 %v2082
    %2365 = vmatprep.subr.mxu0 0.0
    %2366 = vmatpush1.msra.mxu0 %v2085
    %2367 = vmatprep.subr.mxu0 0.0
    %2368 = vmatpush1.msra.mxu0 0.0
    %2369 = vmatprep.subr.mxu0 0.0
    %2370 = vmatpush1.msra.mxu0 0.0
    %2371 = vmatprep.subr.mxu0 0.0
    %2372 = vmatpush1.msra.mxu0 0.0
    %2373 = vmatprep.subr.mxu0 0.0
    %2374 = vmatpush1.msra.mxu0 0.0
    %2375 = vmatprep.subr.mxu0 0.0
    %2376 = vmatpush1.msra.mxu0 0.0
    %2377 = vmatprep.subr.mxu0 0.0
    %2378 = vmatpush1.msra.mxu0 0.0
    %2379 = vmatprep.subr.mxu0 0.0
    %2380 = vmatpush1.msra.mxu0 0.0
    %2381 = vmatprep.subr.mxu0 0.0
    %2382 = vmatpush1.msra.mxu0 0.0
    %2383 = vmatprep.subr.mxu0 0.0
    %2384 = vmatpush1.msra.mxu0 0.0
    %2385 = vmatprep.subr.mxu0 0.0
    %2386 = vmatpush1.msra.mxu0 0.0
    %2387 = vmatprep.subr.mxu0 0.0
    %2388 = vmatpush1.msra.mxu0 0.0
    %2389 = vmatprep.subr.mxu0 0.0
    %2390 = vmatpush1.msra.mxu0 0.0
    %2391 = vmatprep.subr.mxu0 0.0
    %2392 = vmatpush1.msra.mxu0 0.0
    %2393 = vmatprep.subr.mxu0 0.0
    %2394 = vmatpush1.msra.mxu0 0.0
    %2395 = vmatprep.subr.mxu0 0.0
    %2396 = vmatpush1.msra.mxu0 0.0
    %2397 = vmatprep.subr.mxu0 0.0
    %2398 = vmatpush1.msra.mxu0 0.0
    %2399 = vmatprep.mubr.f32.mxu0 0.0
    %2400 = vmatmul.mubr.f32.gmra.mrb[0].mxu0 %v2262
    %v2401 = vpop.f32.mrb[0].mxu0
    %v2402 = vadd.f32 0.0, %v2401
    %v2403 = vpop.f32.mrb[0].mxu0
    %2404 = vdwg.mxu0
    %v2405 = vld [vmem:[%s602] sm:$0x3f]
    %v2406 = vadd.f32 %v2405, %v2331
    %v2407 = vxor.u32 %v2406, 2147483648
    %v2408 = vmul.f32 %v2407, 1.442695
    %v2409 = vpow.pop %v2408
    %v2410 = vadd.f32 %v2409, 1.0
    %v2411 = vrcp.pop %v2410
    %v2412 = vmul.f32 1.0, %v2411
    %v2414 = vrot.slane %v2405, 2
    %v2416 = vadd.f32 %v2414, %v2333
    %v2417 = vxor.u32 %v2416, 2147483648
    %v2418 = vmul.f32 %v2417, 1.442695
    %v2419 = vpow.pop %v2418
    %v2420 = vadd.f32 %v2419, 1.0
    %v2421 = vrcp.pop %v2420
    %v2422 = vmul.f32 1.0, %v2421
    %v2423 = vadd.f32 %v2402, %v2251
    %v2424 = vmul.f32 %v2412, %v2423
    %v2425 = vrot.slane %v2405, 4
    %v2427 = vadd.f32 %v2425, %v2424
    %v2428 = vtanh.pop %v2427
    %v2429 = vsub.f32 1.0, %v2422
    %v2430 = vmul.f32 %v2429, %v2428
    %v2431 = vmul.f32 %v2422, %v2262
    %v2432 = vadd.f32 %v2430, %v2431
    %2433 = vst [vmem:[%s602] sm:$0x3] %v2432
    %2434 = vmatprep.subr.mxu0 %v2039
    %2435 = vmatpush1.msra.mxu0 %v2038
    %2436 = vmatprep.subr.mxu0 %v2042
    %2437 = vmatpush1.msra.mxu0 %v2041
    %2438 = vmatprep.subr.mxu0 %v2045
    %2439 = vmatpush1.msra.mxu0 %v2044
    %2440 = vmatprep.subr.mxu0 %v2048
    %2441 = vmatpush1.msra.mxu0 %v2047
    %2442 = vmatprep.subr.mxu0 %v2051
    %2443 = vmatpush1.msra.mxu0 %v2050
    %2444 = vmatprep.subr.mxu0 %v2054
    %2445 = vmatpush1.msra.mxu0 %v2053
    %2446 = vmatprep.subr.mxu0 %v2057
    %2447 = vmatpush1.msra.mxu0 %v2056
    %2448 = vmatprep.subr.mxu0 %v2060
    %2449 = vmatpush1.msra.mxu0 %v2059
    %2450 = vmatprep.subr.mxu0 %v2063
    %2451 = vmatpush1.msra.mxu0 %v2062
    %2452 = vmatprep.subr.mxu0 %v2066
    %2453 = vmatpush1.msra.mxu0 %v2065
    %2454 = vmatprep.subr.mxu0 %v2069
    %2455 = vmatpush1.msra.mxu0 %v2068
    %2456 = vmatprep.subr.mxu0 %v2072
    %2457 = vmatpush1.msra.mxu0 %v2071
    %2458 = vmatprep.subr.mxu0 %v2075
    %2459 = vmatpush1.msra.mxu0 %v2074
    %2460 = vmatprep.subr.mxu0 %v2078
    %2461 = vmatpush1.msra.mxu0 %v2077
    %2462 = vmatprep.subr.mxu0 %v2081
    %2463 = vmatpush1.msra.mxu0 %v2080
    %2464 = vmatprep.subr.mxu0 %v2084
    %2465 = vmatpush1.msra.mxu0 %v2083
    %2466 = vmatprep.subr.mxu0 0.0
    %2467 = vmatpush1.msra.mxu0 0.0
    %2468 = vmatprep.subr.mxu0 0.0
    %2469 = vmatpush1.msra.mxu0 0.0
    %2470 = vmatprep.subr.mxu0 0.0
    %2471 = vmatpush1.msra.mxu0 0.0
    %2472 = vmatprep.subr.mxu0 0.0
    %2473 = vmatpush1.msra.mxu0 0.0
    %2474 = vmatprep.subr.mxu0 0.0
    %2475 = vmatpush1.msra.mxu0 0.0
    %2476 = vmatprep.subr.mxu0 0.0
    %2477 = vmatpush1.msra.mxu0 0.0
    %2478 = vmatprep.subr.mxu0 0.0
    %2479 = vmatpush1.msra.mxu0 0.0
    %2480 = vmatprep.subr.mxu0 0.0
    %2481 = vmatpush1.msra.mxu0 0.0
    %2482 = vmatprep.subr.mxu0 0.0
    %2483 = vmatpush1.msra.mxu0 0.0
    %2484 = vmatprep.subr.mxu0 0.0
    %2485 = vmatpush1.msra.mxu0 0.0
    %2486 = vmatprep.subr.mxu0 0.0
    %2487 = vmatpush1.msra.mxu0 0.0
    %2488 = vmatprep.subr.mxu0 0.0
    %2489 = vmatpush1.msra.mxu0 0.0
    %2490 = vmatprep.subr.mxu0 0.0
    %2491 = vmatpush1.msra.mxu0 0.0
    %2492 = vmatprep.subr.mxu0 0.0
    %2493 = vmatpush1.msra.mxu0 0.0
    %2494 = vmatprep.subr.mxu0 0.0
    %2495 = vmatpush1.msra.mxu0 0.0
    %2496 = vmatprep.subr.mxu0 0.0
    %2497 = vmatpush1.msra.mxu0 0.0
    %2498 = vmatprep.mubr.f32.mxu0 0.0
    %2499 = vmatmul.mubr.f32.gmra.mrb[0].mxu0 %v2432
    %v2500 = vpop.f32.mrb[0].mxu0
    %v2501 = vadd.f32 0.0, %v2500
    %v2502 = vpop.f32.mrb[0].mxu0
    %v2503 = vadd.f32 0.0, %v2502
    %2504 = vdwg.mxu0
    %2505 = vmatprep.subr.mxu0 0.0
    %2506 = vmatpush1.msra.mxu0 %v2040
    %2507 = vmatprep.subr.mxu0 0.0
    %2508 = vmatpush1.msra.mxu0 %v2043
    %2509 = vmatprep.subr.mxu0 0.0
    %2510 = vmatpush1.msra.mxu0 %v2046
    %2511 = vmatprep.subr.mxu0 0.0
    %2512 = vmatpush1.msra.mxu0 %v2049
    %2513 = vmatprep.subr.mxu0 0.0
    %2514 = vmatpush1.msra.mxu0 %v2052
    %2515 = vmatprep.subr.mxu0 0.0
    %2516 = vmatpush1.msra.mxu0 %v2055
    %2517 = vmatprep.subr.mxu0 0.0
    %2518 = vmatpush1.msra.mxu0 %v2058
    %2519 = vmatprep.subr.mxu0 0.0
    %2520 = vmatpush1.msra.mxu0 %v2061
    %2521 = vmatprep.subr.mxu0 0.0
    %2522 = vmatpush1.msra.mxu0 %v2064
    %2523 = vmatprep.subr.mxu0 0.0
    %2524 = vmatpush1.msra.mxu0 %v2067
    %2525 = vmatprep.subr.mxu0 0.0
    %2526 = vmatpush1.msra.mxu0 %v2070
    %2527 = vmatprep.subr.mxu0 0.0
    %2528 = vmatpush1.msra.mxu0 %v2073
    %2529 = vmatprep.subr.mxu0 0.0
    %2530 = vmatpush1.msra.mxu0 %v2076
    %2531 = vmatprep.subr.mxu0 0.0
    %2532 = vmatpush1.msra.mxu0 %v2079
    %2533 = vmatprep.subr.mxu0 0.0
    %2534 = vmatpush1.msra.mxu0 %v2082
    %2535 = vmatprep.subr.mxu0 0.0
    %2536 = vmatpush1.msra.mxu0 %v2085
    %2537 = vmatprep.subr.mxu0 0.0
    %2538 = vmatpush1.msra.mxu0 0.0
    %2539 = vmatprep.subr.mxu0 0.0
    %2540 = vmatpush1.msra.mxu0 0.0
    %2541 = vmatprep.subr.mxu0 0.0
    %2542 = vmatpush1.msra.mxu0 0.0
    %2543 = vmatprep.subr.mxu0 0.0
    %2544 = vmatpush1.msra.mxu0 0.0
    %2545 = vmatprep.subr.mxu0 0.0
    %2546 = vmatpush1.msra.mxu0 0.0
    %2547 = vmatprep.subr.mxu0 0.0
    %2548 = vmatpush1.msra.mxu0 0.0
    %2549 = vmatprep.subr.mxu0 0.0
    %2550 = vmatpush1.msra.mxu0 0.0
    %2551 = vmatprep.subr.mxu0 0.0
    %2552 = vmatpush1.msra.mxu0 0.0
    %2553 = vmatprep.subr.mxu0 0.0
    %2554 = vmatpush1.msra.mxu0 0.0
    %2555 = vmatprep.subr.mxu0 0.0
    %2556 = vmatpush1.msra.mxu0 0.0
    %2557 = vmatprep.subr.mxu0 0.0
    %2558 = vmatpush1.msra.mxu0 0.0
    %2559 = vmatprep.subr.mxu0 0.0
    %2560 = vmatpush1.msra.mxu0 0.0
    %2561 = vmatprep.subr.mxu0 0.0
    %2562 = vmatpush1.msra.mxu0 0.0
    %2563 = vmatprep.subr.mxu0 0.0
    %2564 = vmatpush1.msra.mxu0 0.0
    %2565 = vmatprep.subr.mxu0 0.0
    %2566 = vmatpush1.msra.mxu0 0.0
    %2567 = vmatprep.subr.mxu0 0.0
    %2568 = vmatpush1.msra.mxu0 0.0
    %2569 = vmatprep.mubr.f32.mxu0 0.0
    %2570 = vmatmul.mubr.f32.gmra.mrb[0].mxu0 %v2432
    %v2571 = vpop.f32.mrb[0].mxu0
    %v2572 = vadd.f32 0.0, %v2571
    %v2573 = vpop.f32.mrb[0].mxu0
    %2574 = vdwg.mxu0
    %v2575 = vld [vmem:[%s841] sm:$0x3f]
    %v2576 = vadd.f32 %v2575, %v2501
    %v2577 = vxor.u32 %v2576, 2147483648
    %v2578 = vmul.f32 %v2577, 1.442695
    %v2579 = vpow.pop %v2578
    %v2580 = vadd.f32 %v2579, 1.0
    %v2581 = vrcp.pop %v2580
    %v2582 = vmul.f32 1.0, %v2581
    %v2584 = vrot.slane %v2575, 2
    %v2586 = vadd.f32 %v2584, %v2503
    %v2587 = vxor.u32 %v2586, 2147483648
    %v2588 = vmul.f32 %v2587, 1.442695
    %v2589 = vpow.pop %v2588
    %v2590 = vadd.f32 %v2589, 1.0
    %v2591 = vrcp.pop %v2590
    %v2592 = vmul.f32 1.0, %v2591
    %v2593 = vadd.f32 %v2572, %v2251
    %v2594 = vmul.f32 %v2582, %v2593
    %v2595 = vrot.slane %v2575, 4
    %v2597 = vadd.f32 %v2595, %v2594
    %v2598 = vtanh.pop %v2597
    %v2599 = vsub.f32 1.0, %v2592
    %v2600 = vmul.f32 %v2599, %v2598
    %v2601 = vmul.f32 %v2592, %v2432
    %v2602 = vadd.f32 %v2600, %v2601
    %2603 = vst [vmem:[%s841] sm:$0x3] %v2602
    %2604 = vmatprep.subr.mxu0 %v2039
    %2605 = vmatpush1.msra.mxu0 %v2038
    %2606 = vmatprep.subr.mxu0 %v2042
    %2607 = vmatpush1.msra.mxu0 %v2041
    %2608 = vmatprep.subr.mxu0 %v2045
    %2609 = vmatpush1.msra.mxu0 %v2044
    %2610 = vmatprep.subr.mxu0 %v2048
    %2611 = vmatpush1.msra.mxu0 %v2047
    %2612 = vmatprep.subr.mxu0 %v2051
    %2613 = vmatpush1.msra.mxu0 %v2050
    %2614 = vmatprep.subr.mxu0 %v2054
    %2615 = vmatpush1.msra.mxu0 %v2053
    %2616 = vmatprep.subr.mxu0 %v2057
    %2617 = vmatpush1.msra.mxu0 %v2056
    %2618 = vmatprep.subr.mxu0 %v2060
    %2619 = vmatpush1.msra.mxu0 %v2059
    %2620 = vmatprep.subr.mxu0 %v2063
    %2621 = vmatpush1.msra.mxu0 %v2062
    %2622 = vmatprep.subr.mxu0 %v2066
    %2623 = vmatpush1.msra.mxu0 %v2065
    %2624 = vmatprep.subr.mxu0 %v2069
    %2625 = vmatpush1.msra.mxu0 %v2068
    %2626 = vmatprep.subr.mxu0 %v2072
    %2627 = vmatpush1.msra.mxu0 %v2071
    %2628 = vmatprep.subr.mxu0 %v2075
    %2629 = vmatpush1.msra.mxu0 %v2074
    %2630 = vmatprep.subr.mxu0 %v2078
    %2631 = vmatpush1.msra.mxu0 %v2077
    %2632 = vmatprep.subr.mxu0 %v2081
    %2633 = vmatpush1.msra.mxu0 %v2080
    %2634 = vmatprep.subr.mxu0 %v2084
    %2635 = vmatpush1.msra.mxu0 %v2083
    %2636 = vmatprep.subr.mxu0 0.0
    %2637 = vmatpush1.msra.mxu0 0.0
    %2638 = vmatprep.subr.mxu0 0.0
    %2639 = vmatpush1.msra.mxu0 0.0
    %2640 = vmatprep.subr.mxu0 0.0
    %2641 = vmatpush1.msra.mxu0 0.0
    %2642 = vmatprep.subr.mxu0 0.0
    %2643 = vmatpush1.msra.mxu0 0.0
    %2644 = vmatprep.subr.mxu0 0.0
    %2645 = vmatpush1.msra.mxu0 0.0
    %2646 = vmatprep.subr.mxu0 0.0
    %2647 = vmatpush1.msra.mxu0 0.0
    %2648 = vmatprep.subr.mxu0 0.0
    %2649 = vmatpush1.msra.mxu0 0.0
    %2650 = vmatprep.subr.mxu0 0.0
    %2651 = vmatpush1.msra.mxu0 0.0
    %2652 = vmatprep.subr.mxu0 0.0
    %2653 = vmatpush1.msra.mxu0 0.0
    %2654 = vmatprep.subr.mxu0 0.0
    %2655 = vmatpush1.msra.mxu0 0.0
    %2656 = vmatprep.subr.mxu0 0.0
    %2657 = vmatpush1.msra.mxu0 0.0
    %2658 = vmatprep.subr.mxu0 0.0
    %2659 = vmatpush1.msra.mxu0 0.0
    %2660 = vmatprep.subr.mxu0 0.0
    %2661 = vmatpush1.msra.mxu0 0.0
    %2662 = vmatprep.subr.mxu0 0.0
    %2663 = vmatpush1.msra.mxu0 0.0
    %2664 = vmatprep.subr.mxu0 0.0
    %2665 = vmatpush1.msra.mxu0 0.0
    %2666 = vmatprep.subr.mxu0 0.0
    %2667 = vmatpush1.msra.mxu0 0.0
    %2668 = vmatprep.mubr.f32.mxu0 0.0
    %2669 = vmatmul.mubr.f32.gmra.mrb[0].mxu0 %v2602
    %v2670 = vpop.f32.mrb[0].mxu0
    %v2671 = vadd.f32 0.0, %v2670
    %v2672 = vpop.f32.mrb[0].mxu0
    %v2673 = vadd.f32 0.0, %v2672
    %2674 = vdwg.mxu0
    %2675 = vmatprep.subr.mxu0 0.0
    %2676 = vmatpush1.msra.mxu0 %v2040
    %2677 = vmatprep.subr.mxu0 0.0
    %2678 = vmatpush1.msra.mxu0 %v2043
    %2679 = vmatprep.subr.mxu0 0.0
    %2680 = vmatpush1.msra.mxu0 %v2046
    %2681 = vmatprep.subr.mxu0 0.0
    %2682 = vmatpush1.msra.mxu0 %v2049
    %2683 = vmatprep.subr.mxu0 0.0
    %2684 = vmatpush1.msra.mxu0 %v2052
    %2685 = vmatprep.subr.mxu0 0.0
    %2686 = vmatpush1.msra.mxu0 %v2055
    %2687 = vmatprep.subr.mxu0 0.0
    %2688 = vmatpush1.msra.mxu0 %v2058
    %2689 = vmatprep.subr.mxu0 0.0
    %2690 = vmatpush1.msra.mxu0 %v2061
    %2691 = vmatprep.subr.mxu0 0.0
    %2692 = vmatpush1.msra.mxu0 %v2064
    %2693 = vmatprep.subr.mxu0 0.0
    %2694 = vmatpush1.msra.mxu0 %v2067
    %2695 = vmatprep.subr.mxu0 0.0
    %2696 = vmatpush1.msra.mxu0 %v2070
    %2697 = vmatprep.subr.mxu0 0.0
    %2698 = vmatpush1.msra.mxu0 %v2073
    %2699 = vmatprep.subr.mxu0 0.0
    %2700 = vmatpush1.msra.mxu0 %v2076
    %2701 = vmatprep.subr.mxu0 0.0
    %2702 = vmatpush1.msra.mxu0 %v2079
    %2703 = vmatprep.subr.mxu0 0.0
    %2704 = vmatpush1.msra.mxu0 %v2082
    %2705 = vmatprep.subr.mxu0 0.0
    %2706 = vmatpush1.msra.mxu0 %v2085
    %2707 = vmatprep.subr.mxu0 0.0
    %2708 = vmatpush1.msra.mxu0 0.0
    %2709 = vmatprep.subr.mxu0 0.0
    %2710 = vmatpush1.msra.mxu0 0.0
    %2711 = vmatprep.subr.mxu0 0.0
    %2712 = vmatpush1.msra.mxu0 0.0
    %2713 = vmatprep.subr.mxu0 0.0
    %2714 = vmatpush1.msra.mxu0 0.0
    %2715 = vmatprep.subr.mxu0 0.0
    %2716 = vmatpush1.msra.mxu0 0.0
    %2717 = vmatprep.subr.mxu0 0.0
    %2718 = vmatpush1.msra.mxu0 0.0
    %2719 = vmatprep.subr.mxu0 0.0
    %2720 = vmatpush1.msra.mxu0 0.0
    %2721 = vmatprep.subr.mxu0 0.0
    %2722 = vmatpush1.msra.mxu0 0.0
    %2723 = vmatprep.subr.mxu0 0.0
    %2724 = vmatpush1.msra.mxu0 0.0
    %2725 = vmatprep.subr.mxu0 0.0
    %2726 = vmatpush1.msra.mxu0 0.0
    %2727 = vmatprep.subr.mxu0 0.0
    %2728 = vmatpush1.msra.mxu0 0.0
    %2729 = vmatprep.subr.mxu0 0.0
    %2730 = vmatpush1.msra.mxu0 0.0
    %2731 = vmatprep.subr.mxu0 0.0
    %2732 = vmatpush1.msra.mxu0 0.0
    %2733 = vmatprep.subr.mxu0 0.0
    %2734 = vmatpush1.msra.mxu0 0.0
    %2735 = vmatprep.subr.mxu0 0.0
    %2736 = vmatpush1.msra.mxu0 0.0
    %2737 = vmatprep.subr.mxu0 0.0
    %2738 = vmatpush1.msra.mxu0 0.0
    %2739 = vmatprep.mubr.f32.mxu0 0.0
    %2740 = vmatmul.mubr.f32.gmra.mrb[0].mxu0 %v2602
    %v2741 = vpop.f32.mrb[0].mxu0
    %v2742 = vadd.f32 0.0, %v2741
    %v2743 = vpop.f32.mrb[0].mxu0
    %2744 = vdwg.mxu0
    %v2745 = vld [vmem:[%s1080] sm:$0x3f]
    %v2746 = vadd.f32 %v2745, %v2671
    %v2747 = vxor.u32 %v2746, 2147483648
    %v2748 = vmul.f32 %v2747, 1.442695
    %v2749 = vpow.pop %v2748
    %v2750 = vadd.f32 %v2749, 1.0
    %v2751 = vrcp.pop %v2750
    %v2752 = vmul.f32 1.0, %v2751
    %v2754 = vrot.slane %v2745, 2
    %v2756 = vadd.f32 %v2754, %v2673
    %v2757 = vxor.u32 %v2756, 2147483648
    %v2758 = vmul.f32 %v2757, 1.442695
    %v2759 = vpow.pop %v2758
    %v2760 = vadd.f32 %v2759, 1.0
    %v2761 = vrcp.pop %v2760
    %v2762 = vmul.f32 1.0, %v2761
    %v2763 = vadd.f32 %v2742, %v2251
    %v2764 = vmul.f32 %v2752, %v2763
    %v2765 = vrot.slane %v2745, 4
    %v2767 = vadd.f32 %v2765, %v2764
    %v2768 = vtanh.pop %v2767
    %v2769 = vsub.f32 1.0, %v2762
    %v2770 = vmul.f32 %v2769, %v2768
    %v2771 = vmul.f32 %v2762, %v2602
    %v2772 = vadd.f32 %v2770, %v2771
    %2773 = vst [vmem:[%s1080] sm:$0x3] %v2772
    %2774 = vmatprep.subr.mxu0 %v2039
    %2775 = vmatpush1.msra.mxu0 %v2038
    %2776 = vmatprep.subr.mxu0 %v2042
    %2777 = vmatpush1.msra.mxu0 %v2041
    %2778 = vmatprep.subr.mxu0 %v2045
    %2779 = vmatpush1.msra.mxu0 %v2044
    %2780 = vmatprep.subr.mxu0 %v2048
    %2781 = vmatpush1.msra.mxu0 %v2047
    %2782 = vmatprep.subr.mxu0 %v2051
    %2783 = vmatpush1.msra.mxu0 %v2050
    %2784 = vmatprep.subr.mxu0 %v2054
    %2785 = vmatpush1.msra.mxu0 %v2053
    %2786 = vmatprep.subr.mxu0 %v2057
    %2787 = vmatpush1.msra.mxu0 %v2056
    %2788 = vmatprep.subr.mxu0 %v2060
    %2789 = vmatpush1.msra.mxu0 %v2059
    %2790 = vmatprep.subr.mxu0 %v2063
    %2791 = vmatpush1.msra.mxu0 %v2062
    %2792 = vmatprep.subr.mxu0 %v2066
    %2793 = vmatpush1.msra.mxu0 %v2065
    %2794 = vmatprep.subr.mxu0 %v2069
    %2795 = vmatpush1.msra.mxu0 %v2068
    %2796 = vmatprep.subr.mxu0 %v2072
    %2797 = vmatpush1.msra.mxu0 %v2071
    %2798 = vmatprep.subr.mxu0 %v2075
    %2799 = vmatpush1.msra.mxu0 %v2074
    %2800 = vmatprep.subr.mxu0 %v2078
    %2801 = vmatpush1.msra.mxu0 %v2077
    %2802 = vmatprep.subr.mxu0 %v2081
    %2803 = vmatpush1.msra.mxu0 %v2080
    %2804 = vmatprep.subr.mxu0 %v2084
    %2805 = vmatpush1.msra.mxu0 %v2083
    %2806 = vmatprep.subr.mxu0 0.0
    %2807 = vmatpush1.msra.mxu0 0.0
    %2808 = vmatprep.subr.mxu0 0.0
    %2809 = vmatpush1.msra.mxu0 0.0
    %2810 = vmatprep.subr.mxu0 0.0
    %2811 = vmatpush1.msra.mxu0 0.0
    %2812 = vmatprep.subr.mxu0 0.0
    %2813 = vmatpush1.msra.mxu0 0.0
    %2814 = vmatprep.subr.mxu0 0.0
    %2815 = vmatpush1.msra.mxu0 0.0
    %2816 = vmatprep.subr.mxu0 0.0
    %2817 = vmatpush1.msra.mxu0 0.0
    %2818 = vmatprep.subr.mxu0 0.0
    %2819 = vmatpush1.msra.mxu0 0.0
    %2820 = vmatprep.subr.mxu0 0.0
    %2821 = vmatpush1.msra.mxu0 0.0
    %2822 = vmatprep.subr.mxu0 0.0
    %2823 = vmatpush1.msra.mxu0 0.0
    %2824 = vmatprep.subr.mxu0 0.0
    %2825 = vmatpush1.msra.mxu0 0.0
    %2826 = vmatprep.subr.mxu0 0.0
    %2827 = vmatpush1.msra.mxu0 0.0
    %2828 = vmatprep.subr.mxu0 0.0
    %2829 = vmatpush1.msra.mxu0 0.0
    %2830 = vmatprep.subr.mxu0 0.0
    %2831 = vmatpush1.msra.mxu0 0.0
    %2832 = vmatprep.subr.mxu0 0.0
    %2833 = vmatpush1.msra.mxu0 0.0
    %2834 = vmatprep.subr.mxu0 0.0
    %2835 = vmatpush1.msra.mxu0 0.0
    %2836 = vmatprep.subr.mxu0 0.0
    %2837 = vmatpush1.msra.mxu0 0.0
    %2838 = vmatprep.mubr.f32.mxu0 0.0
    %2839 = vmatmul.mubr.f32.gmra.mrb[0].mxu0 %v2772
    %v2840 = vpop.f32.mrb[0].mxu0
    %v2841 = vadd.f32 0.0, %v2840
    %v2842 = vpop.f32.mrb[0].mxu0
    %v2843 = vadd.f32 0.0, %v2842
    %2844 = vdwg.mxu0
    %2845 = vmatprep.subr.mxu0 0.0
    %2846 = vmatpush1.msra.mxu0 %v2040
    %2847 = vmatprep.subr.mxu0 0.0
    %2848 = vmatpush1.msra.mxu0 %v2043
    %2849 = vmatprep.subr.mxu0 0.0
    %2850 = vmatpush1.msra.mxu0 %v2046
    %2851 = vmatprep.subr.mxu0 0.0
    %2852 = vmatpush1.msra.mxu0 %v2049
    %2853 = vmatprep.subr.mxu0 0.0
    %2854 = vmatpush1.msra.mxu0 %v2052
    %2855 = vmatprep.subr.mxu0 0.0
    %2856 = vmatpush1.msra.mxu0 %v2055
    %2857 = vmatprep.subr.mxu0 0.0
    %2858 = vmatpush1.msra.mxu0 %v2058
    %2859 = vmatprep.subr.mxu0 0.0
    %2860 = vmatpush1.msra.mxu0 %v2061
    %2861 = vmatprep.subr.mxu0 0.0
    %2862 = vmatpush1.msra.mxu0 %v2064
    %2863 = vmatprep.subr.mxu0 0.0
    %2864 = vmatpush1.msra.mxu0 %v2067
    %2865 = vmatprep.subr.mxu0 0.0
    %2866 = vmatpush1.msra.mxu0 %v2070
    %2867 = vmatprep.subr.mxu0 0.0
    %2868 = vmatpush1.msra.mxu0 %v2073
    %2869 = vmatprep.subr.mxu0 0.0
    %2870 = vmatpush1.msra.mxu0 %v2076
    %2871 = vmatprep.subr.mxu0 0.0
    %2872 = vmatpush1.msra.mxu0 %v2079
    %2873 = vmatprep.subr.mxu0 0.0
    %2874 = vmatpush1.msra.mxu0 %v2082
    %2875 = vmatprep.subr.mxu0 0.0
    %2876 = vmatpush1.msra.mxu0 %v2085
    %2877 = vmatprep.subr.mxu0 0.0
    %2878 = vmatpush1.msra.mxu0 0.0
    %2879 = vmatprep.subr.mxu0 0.0
    %2880 = vmatpush1.msra.mxu0 0.0
    %2881 = vmatprep.subr.mxu0 0.0
    %2882 = vmatpush1.msra.mxu0 0.0
    %2883 = vmatprep.subr.mxu0 0.0
    %2884 = vmatpush1.msra.mxu0 0.0
    %2885 = vmatprep.subr.mxu0 0.0
    %2886 = vmatpush1.msra.mxu0 0.0
    %2887 = vmatprep.subr.mxu0 0.0
    %2888 = vmatpush1.msra.mxu0 0.0
    %2889 = vmatprep.subr.mxu0 0.0
    %2890 = vmatpush1.msra.mxu0 0.0
    %2891 = vmatprep.subr.mxu0 0.0
    %2892 = vmatpush1.msra.mxu0 0.0
    %2893 = vmatprep.subr.mxu0 0.0
    %2894 = vmatpush1.msra.mxu0 0.0
    %2895 = vmatprep.subr.mxu0 0.0
    %2896 = vmatpush1.msra.mxu0 0.0
    %2897 = vmatprep.subr.mxu0 0.0
    %2898 = vmatpush1.msra.mxu0 0.0
    %2899 = vmatprep.subr.mxu0 0.0
    %2900 = vmatpush1.msra.mxu0 0.0
    %2901 = vmatprep.subr.mxu0 0.0
    %2902 = vmatpush1.msra.mxu0 0.0
    %2903 = vmatprep.subr.mxu0 0.0
    %2904 = vmatpush1.msra.mxu0 0.0
    %2905 = vmatprep.subr.mxu0 0.0
    %2906 = vmatpush1.msra.mxu0 0.0
    %2907 = vmatprep.subr.mxu0 0.0
    %2908 = vmatpush1.msra.mxu0 0.0
    %2909 = vmatprep.mubr.f32.mxu0 0.0
    %2910 = vmatmul.mubr.f32.gmra.mrb[0].mxu0 %v2772
    %v2911 = vpop.f32.mrb[0].mxu0
    %v2912 = vadd.f32 0.0, %v2911
    %v2913 = vpop.f32.mrb[0].mxu0
    %2914 = vdwg.mxu0
    %v2915 = vld [vmem:[%s1319] sm:$0x3f]
    %v2916 = vadd.f32 %v2915, %v2841
    %v2917 = vxor.u32 %v2916, 2147483648
    %v2918 = vmul.f32 %v2917, 1.442695
    %v2919 = vpow.pop %v2918
    %v2920 = vadd.f32 %v2919, 1.0
    %v2921 = vrcp.pop %v2920
    %v2922 = vmul.f32 1.0, %v2921
    %v2924 = vrot.slane %v2915, 2
    %v2926 = vadd.f32 %v2924, %v2843
    %v2927 = vxor.u32 %v2926, 2147483648
    %v2928 = vmul.f32 %v2927, 1.442695
    %v2929 = vpow.pop %v2928
    %v2930 = vadd.f32 %v2929, 1.0
    %v2931 = vrcp.pop %v2930
    %v2932 = vmul.f32 1.0, %v2931
    %v2933 = vadd.f32 %v2912, %v2251
    %v2934 = vmul.f32 %v2922, %v2933
    %v2935 = vrot.slane %v2915, 4
    %v2937 = vadd.f32 %v2935, %v2934
    %v2938 = vtanh.pop %v2937
    %v2939 = vsub.f32 1.0, %v2932
    %v2940 = vmul.f32 %v2939, %v2938
    %v2941 = vmul.f32 %v2932, %v2772
    %v2942 = vadd.f32 %v2940, %v2941
    %2943 = vst [vmem:[%s1319] sm:$0x3] %v2942
    %2944 = vmatprep.subr.mxu0 %v2039
    %2945 = vmatpush1.msra.mxu0 %v2038
    %2946 = vmatprep.subr.mxu0 %v2042
    %2947 = vmatpush1.msra.mxu0 %v2041
    %2948 = vmatprep.subr.mxu0 %v2045
    %2949 = vmatpush1.msra.mxu0 %v2044
    %2950 = vmatprep.subr.mxu0 %v2048
    %2951 = vmatpush1.msra.mxu0 %v2047
    %2952 = vmatprep.subr.mxu0 %v2051
    %2953 = vmatpush1.msra.mxu0 %v2050
    %2954 = vmatprep.subr.mxu0 %v2054
    %2955 = vmatpush1.msra.mxu0 %v2053
    %2956 = vmatprep.subr.mxu0 %v2057
    %2957 = vmatpush1.msra.mxu0 %v2056
    %2958 = vmatprep.subr.mxu0 %v2060
    %2959 = vmatpush1.msra.mxu0 %v2059
    %2960 = vmatprep.subr.mxu0 %v2063
    %2961 = vmatpush1.msra.mxu0 %v2062
    %2962 = vmatprep.subr.mxu0 %v2066
    %2963 = vmatpush1.msra.mxu0 %v2065
    %2964 = vmatprep.subr.mxu0 %v2069
    %2965 = vmatpush1.msra.mxu0 %v2068
    %2966 = vmatprep.subr.mxu0 %v2072
    %2967 = vmatpush1.msra.mxu0 %v2071
    %2968 = vmatprep.subr.mxu0 %v2075
    %2969 = vmatpush1.msra.mxu0 %v2074
    %2970 = vmatprep.subr.mxu0 %v2078
    %2971 = vmatpush1.msra.mxu0 %v2077
    %2972 = vmatprep.subr.mxu0 %v2081
    %2973 = vmatpush1.msra.mxu0 %v2080
    %2974 = vmatprep.subr.mxu0 %v2084
    %2975 = vmatpush1.msra.mxu0 %v2083
    %2976 = vmatprep.subr.mxu0 0.0
    %2977 = vmatpush1.msra.mxu0 0.0
    %2978 = vmatprep.subr.mxu0 0.0
    %2979 = vmatpush1.msra.mxu0 0.0
    %2980 = vmatprep.subr.mxu0 0.0
    %2981 = vmatpush1.msra.mxu0 0.0
    %2982 = vmatprep.subr.mxu0 0.0
    %2983 = vmatpush1.msra.mxu0 0.0
    %2984 = vmatprep.subr.mxu0 0.0
    %2985 = vmatpush1.msra.mxu0 0.0
    %2986 = vmatprep.subr.mxu0 0.0
    %2987 = vmatpush1.msra.mxu0 0.0
    %2988 = vmatprep.subr.mxu0 0.0
    %2989 = vmatpush1.msra.mxu0 0.0
    %2990 = vmatprep.subr.mxu0 0.0
    %2991 = vmatpush1.msra.mxu0 0.0
    %2992 = vmatprep.subr.mxu0 0.0
    %2993 = vmatpush1.msra.mxu0 0.0
    %2994 = vmatprep.subr.mxu0 0.0
    %2995 = vmatpush1.msra.mxu0 0.0
    %2996 = vmatprep.subr.mxu0 0.0
    %2997 = vmatpush1.msra.mxu0 0.0
    %2998 = vmatprep.subr.mxu0 0.0
    %2999 = vmatpush1.msra.mxu0 0.0
    %3000 = vmatprep.subr.mxu0 0.0
    %3001 = vmatpush1.msra.mxu0 0.0
    %3002 = vmatprep.subr.mxu0 0.0
    %3003 = vmatpush1.msra.mxu0 0.0
    %3004 = vmatprep.subr.mxu0 0.0
    %3005 = vmatpush1.msra.mxu0 0.0
    %3006 = vmatprep.subr.mxu0 0.0
    %3007 = vmatpush1.msra.mxu0 0.0
    %3008 = vmatprep.mubr.f32.mxu0 0.0
    %3009 = vmatmul.mubr.f32.gmra.mrb[0].mxu0 %v2942
    %v3010 = vpop.f32.mrb[0].mxu0
    %v3011 = vadd.f32 0.0, %v3010
    %v3012 = vpop.f32.mrb[0].mxu0
    %v3013 = vadd.f32 0.0, %v3012
    %3014 = vdwg.mxu0
    %3015 = vmatprep.subr.mxu0 0.0
    %3016 = vmatpush1.msra.mxu0 %v2040
    %3017 = vmatprep.subr.mxu0 0.0
    %3018 = vmatpush1.msra.mxu0 %v2043
    %3019 = vmatprep.subr.mxu0 0.0
    %3020 = vmatpush1.msra.mxu0 %v2046
    %3021 = vmatprep.subr.mxu0 0.0
    %3022 = vmatpush1.msra.mxu0 %v2049
    %3023 = vmatprep.subr.mxu0 0.0
    %3024 = vmatpush1.msra.mxu0 %v2052
    %3025 = vmatprep.subr.mxu0 0.0
    %3026 = vmatpush1.msra.mxu0 %v2055
    %3027 = vmatprep.subr.mxu0 0.0
    %3028 = vmatpush1.msra.mxu0 %v2058
    %3029 = vmatprep.subr.mxu0 0.0
    %3030 = vmatpush1.msra.mxu0 %v2061
    %3031 = vmatprep.subr.mxu0 0.0
    %3032 = vmatpush1.msra.mxu0 %v2064
    %3033 = vmatprep.subr.mxu0 0.0
    %3034 = vmatpush1.msra.mxu0 %v2067
    %3035 = vmatprep.subr.mxu0 0.0
    %3036 = vmatpush1.msra.mxu0 %v2070
    %3037 = vmatprep.subr.mxu0 0.0
    %3038 = vmatpush1.msra.mxu0 %v2073
    %3039 = vmatprep.subr.mxu0 0.0
    %3040 = vmatpush1.msra.mxu0 %v2076
    %3041 = vmatprep.subr.mxu0 0.0
    %3042 = vmatpush1.msra.mxu0 %v2079
    %3043 = vmatprep.subr.mxu0 0.0
    %3044 = vmatpush1.msra.mxu0 %v2082
    %3045 = vmatprep.subr.mxu0 0.0
    %3046 = vmatpush1.msra.mxu0 %v2085
    %3047 = vmatprep.subr.mxu0 0.0
    %3048 = vmatpush1.msra.mxu0 0.0
    %3049 = vmatprep.subr.mxu0 0.0
    %3050 = vmatpush1.msra.mxu0 0.0
    %3051 = vmatprep.subr.mxu0 0.0
    %3052 = vmatpush1.msra.mxu0 0.0
    %3053 = vmatprep.subr.mxu0 0.0
    %3054 = vmatpush1.msra.mxu0 0.0
    %3055 = vmatprep.subr.mxu0 0.0
    %3056 = vmatpush1.msra.mxu0 0.0
    %3057 = vmatprep.subr.mxu0 0.0
    %3058 = vmatpush1.msra.mxu0 0.0
    %3059 = vmatprep.subr.mxu0 0.0
    %3060 = vmatpush1.msra.mxu0 0.0
    %3061 = vmatprep.subr.mxu0 0.0
    %3062 = vmatpush1.msra.mxu0 0.0
    %3063 = vmatprep.subr.mxu0 0.0
    %3064 = vmatpush1.msra.mxu0 0.0
    %3065 = vmatprep.subr.mxu0 0.0
    %3066 = vmatpush1.msra.mxu0 0.0
    %3067 = vmatprep.subr.mxu0 0.0
    %3068 = vmatpush1.msra.mxu0 0.0
    %3069 = vmatprep.subr.mxu0 0.0
    %3070 = vmatpush1.msra.mxu0 0.0
    %3071 = vmatprep.subr.mxu0 0.0
    %3072 = vmatpush1.msra.mxu0 0.0
    %3073 = vmatprep.subr.mxu0 0.0
    %3074 = vmatpush1.msra.mxu0 0.0
    %3075 = vmatprep.subr.mxu0 0.0
    %3076 = vmatpush1.msra.mxu0 0.0
    %3077 = vmatprep.subr.mxu0 0.0
    %3078 = vmatpush1.msra.mxu0 0.0
    %3079 = vmatprep.mubr.f32.mxu0 0.0
    %3080 = vmatmul.mubr.f32.gmra.mrb[0].mxu0 %v2942
    %v3081 = vpop.f32.mrb[0].mxu0
    %v3082 = vadd.f32 0.0, %v3081
    %v3083 = vpop.f32.mrb[0].mxu0
    %3084 = vdwg.mxu0
    %v3085 = vld [vmem:[%s1558] sm:$0x3f]
    %v3086 = vadd.f32 %v3085, %v3011
    %v3087 = vxor.u32 %v3086, 2147483648
    %v3088 = vmul.f32 %v3087, 1.442695
    %v3089 = vpow.pop %v3088
    %v3090 = vadd.f32 %v3089, 1.0
    %v3091 = vrcp.pop %v3090
    %v3092 = vmul.f32 1.0, %v3091
    %v3094 = vrot.slane %v3085, 2
    %v3096 = vadd.f32 %v3094, %v3013
    %v3097 = vxor.u32 %v3096, 2147483648
    %v3098 = vmul.f32 %v3097, 1.442695
    %v3099 = vpow.pop %v3098
    %v3100 = vadd.f32 %v3099, 1.0
    %v3101 = vrcp.pop %v3100
    %v3102 = vmul.f32 1.0, %v3101
    %v3103 = vadd.f32 %v3082, %v2251
    %v3104 = vmul.f32 %v3092, %v3103
    %v3105 = vrot.slane %v3085, 4
    %v3107 = vadd.f32 %v3105, %v3104
    %v3108 = vtanh.pop %v3107
    %v3109 = vsub.f32 1.0, %v3102
    %v3110 = vmul.f32 %v3109, %v3108
    %v3111 = vmul.f32 %v3102, %v2942
    %v3112 = vadd.f32 %v3110, %v3111
    %3113 = vst [vmem:[%s1558] sm:$0x3] %v3112
    %3114 = vmatprep.subr.mxu0 %v2039
    %3115 = vmatpush1.msra.mxu0 %v2038
    %3116 = vmatprep.subr.mxu0 %v2042
    %3117 = vmatpush1.msra.mxu0 %v2041
    %3118 = vmatprep.subr.mxu0 %v2045
    %3119 = vmatpush1.msra.mxu0 %v2044
    %3120 = vmatprep.subr.mxu0 %v2048
    %3121 = vmatpush1.msra.mxu0 %v2047
    %3122 = vmatprep.subr.mxu0 %v2051
    %3123 = vmatpush1.msra.mxu0 %v2050
    %3124 = vmatprep.subr.mxu0 %v2054
    %3125 = vmatpush1.msra.mxu0 %v2053
    %3126 = vmatprep.subr.mxu0 %v2057
    %3127 = vmatpush1.msra.mxu0 %v2056
    %3128 = vmatprep.subr.mxu0 %v2060
    %3129 = vmatpush1.msra.mxu0 %v2059
    %3130 = vmatprep.subr.mxu0 %v2063
    %3131 = vmatpush1.msra.mxu0 %v2062
    %3132 = vmatprep.subr.mxu0 %v2066
    %3133 = vmatpush1.msra.mxu0 %v2065
    %3134 = vmatprep.subr.mxu0 %v2069
    %3135 = vmatpush1.msra.mxu0 %v2068
    %3136 = vmatprep.subr.mxu0 %v2072
    %3137 = vmatpush1.msra.mxu0 %v2071
    %3138 = vmatprep.subr.mxu0 %v2075
    %3139 = vmatpush1.msra.mxu0 %v2074
    %3140 = vmatprep.subr.mxu0 %v2078
    %3141 = vmatpush1.msra.mxu0 %v2077
    %3142 = vmatprep.subr.mxu0 %v2081
    %3143 = vmatpush1.msra.mxu0 %v2080
    %3144 = vmatprep.subr.mxu0 %v2084
    %3145 = vmatpush1.msra.mxu0 %v2083
    %3146 = vmatprep.subr.mxu0 0.0
    %3147 = vmatpush1.msra.mxu0 0.0
    %3148 = vmatprep.subr.mxu0 0.0
    %3149 = vmatpush1.msra.mxu0 0.0
    %3150 = vmatprep.subr.mxu0 0.0
    %3151 = vmatpush1.msra.mxu0 0.0
    %3152 = vmatprep.subr.mxu0 0.0
    %3153 = vmatpush1.msra.mxu0 0.0
    %3154 = vmatprep.subr.mxu0 0.0
    %3155 = vmatpush1.msra.mxu0 0.0
    %3156 = vmatprep.subr.mxu0 0.0
    %3157 = vmatpush1.msra.mxu0 0.0
    %3158 = vmatprep.subr.mxu0 0.0
    %3159 = vmatpush1.msra.mxu0 0.0
    %3160 = vmatprep.subr.mxu0 0.0
    %3161 = vmatpush1.msra.mxu0 0.0
    %3162 = vmatprep.subr.mxu0 0.0
    %3163 = vmatpush1.msra.mxu0 0.0
    %3164 = vmatprep.subr.mxu0 0.0
    %3165 = vmatpush1.msra.mxu0 0.0
    %3166 = vmatprep.subr.mxu0 0.0
    %3167 = vmatpush1.msra.mxu0 0.0
    %3168 = vmatprep.subr.mxu0 0.0
    %3169 = vmatpush1.msra.mxu0 0.0
    %3170 = vmatprep.subr.mxu0 0.0
    %3171 = vmatpush1.msra.mxu0 0.0
    %3172 = vmatprep.subr.mxu0 0.0
    %3173 = vmatpush1.msra.mxu0 0.0
    %3174 = vmatprep.subr.mxu0 0.0
    %3175 = vmatpush1.msra.mxu0 0.0
    %3176 = vmatprep.subr.mxu0 0.0
    %3177 = vmatpush1.msra.mxu0 0.0
    %3178 = vmatprep.mubr.f32.mxu0 0.0
    %3179 = vmatmul.mubr.f32.gmra.mrb[0].mxu0 %v3112
    %v3180 = vpop.f32.mrb[0].mxu0
    %v3181 = vadd.f32 0.0, %v3180
    %v3182 = vpop.f32.mrb[0].mxu0
    %v3183 = vadd.f32 0.0, %v3182
    %3184 = vdwg.mxu0
    %3185 = vmatprep.subr.mxu0 0.0
    %3186 = vmatpush1.msra.mxu0 %v2040
    %3187 = vmatprep.subr.mxu0 0.0
    %3188 = vmatpush1.msra.mxu0 %v2043
    %3189 = vmatprep.subr.mxu0 0.0
    %3190 = vmatpush1.msra.mxu0 %v2046
    %3191 = vmatprep.subr.mxu0 0.0
    %3192 = vmatpush1.msra.mxu0 %v2049
    %3193 = vmatprep.subr.mxu0 0.0
    %3194 = vmatpush1.msra.mxu0 %v2052
    %3195 = vmatprep.subr.mxu0 0.0
    %3196 = vmatpush1.msra.mxu0 %v2055
    %3197 = vmatprep.subr.mxu0 0.0
    %3198 = vmatpush1.msra.mxu0 %v2058
    %3199 = vmatprep.subr.mxu0 0.0
    %3200 = vmatpush1.msra.mxu0 %v2061
    %3201 = vmatprep.subr.mxu0 0.0
    %3202 = vmatpush1.msra.mxu0 %v2064
    %3203 = vmatprep.subr.mxu0 0.0
    %3204 = vmatpush1.msra.mxu0 %v2067
    %3205 = vmatprep.subr.mxu0 0.0
    %3206 = vmatpush1.msra.mxu0 %v2070
    %3207 = vmatprep.subr.mxu0 0.0
    %3208 = vmatpush1.msra.mxu0 %v2073
    %3209 = vmatprep.subr.mxu0 0.0
    %3210 = vmatpush1.msra.mxu0 %v2076
    %3211 = vmatprep.subr.mxu0 0.0
    %3212 = vmatpush1.msra.mxu0 %v2079
    %3213 = vmatprep.subr.mxu0 0.0
    %3214 = vmatpush1.msra.mxu0 %v2082
    %3215 = vmatprep.subr.mxu0 0.0
    %3216 = vmatpush1.msra.mxu0 %v2085
    %3217 = vmatprep.subr.mxu0 0.0
    %3218 = vmatpush1.msra.mxu0 0.0
    %3219 = vmatprep.subr.mxu0 0.0
    %3220 = vmatpush1.msra.mxu0 0.0
    %3221 = vmatprep.subr.mxu0 0.0
    %3222 = vmatpush1.msra.mxu0 0.0
    %3223 = vmatprep.subr.mxu0 0.0
    %3224 = vmatpush1.msra.mxu0 0.0
    %3225 = vmatprep.subr.mxu0 0.0
    %3226 = vmatpush1.msra.mxu0 0.0
    %3227 = vmatprep.subr.mxu0 0.0
    %3228 = vmatpush1.msra.mxu0 0.0
    %3229 = vmatprep.subr.mxu0 0.0
    %3230 = vmatpush1.msra.mxu0 0.0
    %3231 = vmatprep.subr.mxu0 0.0
    %3232 = vmatpush1.msra.mxu0 0.0
    %3233 = vmatprep.subr.mxu0 0.0
    %3234 = vmatpush1.msra.mxu0 0.0
    %3235 = vmatprep.subr.mxu0 0.0
    %3236 = vmatpush1.msra.mxu0 0.0
    %3237 = vmatprep.subr.mxu0 0.0
    %3238 = vmatpush1.msra.mxu0 0.0
    %3239 = vmatprep.subr.mxu0 0.0
    %3240 = vmatpush1.msra.mxu0 0.0
    %3241 = vmatprep.subr.mxu0 0.0
    %3242 = vmatpush1.msra.mxu0 0.0
    %3243 = vmatprep.subr.mxu0 0.0
    %3244 = vmatpush1.msra.mxu0 0.0
    %3245 = vmatprep.subr.mxu0 0.0
    %3246 = vmatpush1.msra.mxu0 0.0
    %3247 = vmatprep.subr.mxu0 0.0
    %3248 = vmatpush1.msra.mxu0 0.0
    %3249 = vmatprep.mubr.f32.mxu0 0.0
    %3250 = vmatmul.mubr.f32.gmra.mrb[0].mxu0 %v3112
    %v3251 = vpop.f32.mrb[0].mxu0
    %v3252 = vadd.f32 0.0, %v3251
    %v3253 = vpop.f32.mrb[0].mxu0
    %3254 = vdwg.mxu0
    %v3255 = vld [vmem:[%s1797] sm:$0x3f]
    %v3256 = vadd.f32 %v3255, %v3181
    %v3257 = vxor.u32 %v3256, 2147483648
    %v3258 = vmul.f32 %v3257, 1.442695
    %v3259 = vpow.pop %v3258
    %v3260 = vadd.f32 %v3259, 1.0
    %v3261 = vrcp.pop %v3260
    %v3262 = vmul.f32 1.0, %v3261
    %v3264 = vrot.slane %v3255, 2
    %v3266 = vadd.f32 %v3264, %v3183
    %v3267 = vxor.u32 %v3266, 2147483648
    %v3268 = vmul.f32 %v3267, 1.442695
    %v3269 = vpow.pop %v3268
    %v3270 = vadd.f32 %v3269, 1.0
    %v3271 = vrcp.pop %v3270
    %v3272 = vmul.f32 1.0, %v3271
    %v3273 = vadd.f32 %v3252, %v2251
    %v3274 = vmul.f32 %v3262, %v3273
    %v3275 = vrot.slane %v3255, 4
    %v3277 = vadd.f32 %v3275, %v3274
    %v3278 = vtanh.pop %v3277
    %v3279 = vsub.f32 1.0, %v3272
    %v3280 = vmul.f32 %v3279, %v3278
    %v3281 = vmul.f32 %v3272, %v3112
    %v3282 = vadd.f32 %v3280, %v3281
    %3283 = vst [vmem:[%s1797] sm:$0x3] %v3282
    %3284 = vmatprep.subr.mxu0 %v2039
    %3285 = vmatpush1.msra.mxu0 %v2038
    %3286 = vmatprep.subr.mxu0 %v2042
    %3287 = vmatpush1.msra.mxu0 %v2041
    %3288 = vmatprep.subr.mxu0 %v2045
    %3289 = vmatpush1.msra.mxu0 %v2044
    %3290 = vmatprep.subr.mxu0 %v2048
    %3291 = vmatpush1.msra.mxu0 %v2047
    %3292 = vmatprep.subr.mxu0 %v2051
    %3293 = vmatpush1.msra.mxu0 %v2050
    %3294 = vmatprep.subr.mxu0 %v2054
    %3295 = vmatpush1.msra.mxu0 %v2053
    %3296 = vmatprep.subr.mxu0 %v2057
    %3297 = vmatpush1.msra.mxu0 %v2056
    %3298 = vmatprep.subr.mxu0 %v2060
    %3299 = vmatpush1.msra.mxu0 %v2059
    %3300 = vmatprep.subr.mxu0 %v2063
    %3301 = vmatpush1.msra.mxu0 %v2062
    %3302 = vmatprep.subr.mxu0 %v2066
    %3303 = vmatpush1.msra.mxu0 %v2065
    %3304 = vmatprep.subr.mxu0 %v2069
    %3305 = vmatpush1.msra.mxu0 %v2068
    %3306 = vmatprep.subr.mxu0 %v2072
    %3307 = vmatpush1.msra.mxu0 %v2071
    %3308 = vmatprep.subr.mxu0 %v2075
    %3309 = vmatpush1.msra.mxu0 %v2074
    %3310 = vmatprep.subr.mxu0 %v2078
    %3311 = vmatpush1.msra.mxu0 %v2077
    %3312 = vmatprep.subr.mxu0 %v2081
    %3313 = vmatpush1.msra.mxu0 %v2080
    %3314 = vmatprep.subr.mxu0 %v2084
    %3315 = vmatpush1.msra.mxu0 %v2083
    %3316 = vmatprep.subr.mxu0 0.0
    %3317 = vmatpush1.msra.mxu0 0.0
    %3318 = vmatprep.subr.mxu0 0.0
    %3319 = vmatpush1.msra.mxu0 0.0
    %3320 = vmatprep.subr.mxu0 0.0
    %3321 = vmatpush1.msra.mxu0 0.0
    %3322 = vmatprep.subr.mxu0 0.0
    %3323 = vmatpush1.msra.mxu0 0.0
    %3324 = vmatprep.subr.mxu0 0.0
    %3325 = vmatpush1.msra.mxu0 0.0
    %3326 = vmatprep.subr.mxu0 0.0
    %3327 = vmatpush1.msra.mxu0 0.0
    %3328 = vmatprep.subr.mxu0 0.0
    %3329 = vmatpush1.msra.mxu0 0.0
    %3330 = vmatprep.subr.mxu0 0.0
    %3331 = vmatpush1.msra.mxu0 0.0
    %3332 = vmatprep.subr.mxu0 0.0
    %3333 = vmatpush1.msra.mxu0 0.0
    %3334 = vmatprep.subr.mxu0 0.0
    %3335 = vmatpush1.msra.mxu0 0.0
    %3336 = vmatprep.subr.mxu0 0.0
    %3337 = vmatpush1.msra.mxu0 0.0
    %3338 = vmatprep.subr.mxu0 0.0
    %3339 = vmatpush1.msra.mxu0 0.0
    %3340 = vmatprep.subr.mxu0 0.0
    %3341 = vmatpush1.msra.mxu0 0.0
    %3342 = vmatprep.subr.mxu0 0.0
    %3343 = vmatpush1.msra.mxu0 0.0
    %3344 = vmatprep.subr.mxu0 0.0
    %3345 = vmatpush1.msra.mxu0 0.0
    %3346 = vmatprep.subr.mxu0 0.0
    %3347 = vmatpush1.msra.mxu0 0.0
    %3348 = vmatprep.mubr.f32.mxu0 0.0
    %3349 = vmatmul.mubr.f32.gmra.mrb[0].mxu0 %v3282
    %v3350 = vpop.f32.mrb[0].mxu0
    %v3351 = vadd.f32 0.0, %v3350
    %v3352 = vpop.f32.mrb[0].mxu0
    %v3353 = vadd.f32 0.0, %v3352
    %3354 = vdwg.mxu0
    %3355 = vmatprep.subr.mxu0 0.0
    %3356 = vmatpush1.msra.mxu0 %v2040
    %3357 = vmatprep.subr.mxu0 0.0
    %3358 = vmatpush1.msra.mxu0 %v2043
    %3359 = vmatprep.subr.mxu0 0.0
    %3360 = vmatpush1.msra.mxu0 %v2046
    %3361 = vmatprep.subr.mxu0 0.0
    %3362 = vmatpush1.msra.mxu0 %v2049
    %3363 = vmatprep.subr.mxu0 0.0
    %3364 = vmatpush1.msra.mxu0 %v2052
    %3365 = vmatprep.subr.mxu0 0.0
    %3366 = vmatpush1.msra.mxu0 %v2055
    %3367 = vmatprep.subr.mxu0 0.0
    %3368 = vmatpush1.msra.mxu0 %v2058
    %3369 = vmatprep.subr.mxu0 0.0
    %3370 = vmatpush1.msra.mxu0 %v2061
    %3371 = vmatprep.subr.mxu0 0.0
    %3372 = vmatpush1.msra.mxu0 %v2064
    %3373 = vmatprep.subr.mxu0 0.0
    %3374 = vmatpush1.msra.mxu0 %v2067
    %3375 = vmatprep.subr.mxu0 0.0
    %3376 = vmatpush1.msra.mxu0 %v2070
    %3377 = vmatprep.subr.mxu0 0.0
    %3378 = vmatpush1.msra.mxu0 %v2073
    %3379 = vmatprep.subr.mxu0 0.0
    %3380 = vmatpush1.msra.mxu0 %v2076
    %3381 = vmatprep.subr.mxu0 0.0
    %3382 = vmatpush1.msra.mxu0 %v2079
    %3383 = vmatprep.subr.mxu0 0.0
    %3384 = vmatpush1.msra.mxu0 %v2082
    %3385 = vmatprep.subr.mxu0 0.0
    %3386 = vmatpush1.msra.mxu0 %v2085
    %3387 = vmatprep.subr.mxu0 0.0
    %3388 = vmatpush1.msra.mxu0 0.0
    %3389 = vmatprep.subr.mxu0 0.0
    %3390 = vmatpush1.msra.mxu0 0.0
    %3391 = vmatprep.subr.mxu0 0.0
    %3392 = vmatpush1.msra.mxu0 0.0
    %3393 = vmatprep.subr.mxu0 0.0
    %3394 = vmatpush1.msra.mxu0 0.0
    %3395 = vmatprep.subr.mxu0 0.0
    %3396 = vmatpush1.msra.mxu0 0.0
    %3397 = vmatprep.subr.mxu0 0.0
    %3398 = vmatpush1.msra.mxu0 0.0
    %3399 = vmatprep.subr.mxu0 0.0
    %3400 = vmatpush1.msra.mxu0 0.0
    %3401 = vmatprep.subr.mxu0 0.0
    %3402 = vmatpush1.msra.mxu0 0.0
    %3403 = vmatprep.subr.mxu0 0.0
    %3404 = vmatpush1.msra.mxu0 0.0
    %3405 = vmatprep.subr.mxu0 0.0
    %3406 = vmatpush1.msra.mxu0 0.0
    %3407 = vmatprep.subr.mxu0 0.0
    %3408 = vmatpush1.msra.mxu0 0.0
    %3409 = vmatprep.subr.mxu0 0.0
    %3410 = vmatpush1.msra.mxu0 0.0
    %3411 = vmatprep.subr.mxu0 0.0
    %3412 = vmatpush1.msra.mxu0 0.0
    %3413 = vmatprep.subr.mxu0 0.0
    %3414 = vmatpush1.msra.mxu0 0.0
    %3415 = vmatprep.subr.mxu0 0.0
    %3416 = vmatpush1.msra.mxu0 0.0
    %3417 = vmatprep.subr.mxu0 0.0
    %3418 = vmatpush1.msra.mxu0 0.0
    %3419 = vmatprep.mubr.f32.mxu0 0.0
    %3420 = vmatmul.mubr.f32.gmra.mrb[0].mxu0 %v3282
    %v3421 = vpop.f32.mrb[0].mxu0
    %v3422 = vadd.f32 0.0, %v3421
    %v3423 = vpop.f32.mrb[0].mxu0
    %3424 = vdwg.mxu0
    %v3425 = vld [vmem:[%s2036] sm:$0x3f]
    %v3426 = vadd.f32 %v3425, %v3351
    %v3427 = vxor.u32 %v3426, 2147483648
    %v3428 = vmul.f32 %v3427, 1.442695
    %v3429 = vpow.pop %v3428
    %v3430 = vadd.f32 %v3429, 1.0
    %v3431 = vrcp.pop %v3430
    %v3432 = vmul.f32 1.0, %v3431
    %v3434 = vrot.slane %v3425, 2
    %v3436 = vadd.f32 %v3434, %v3353
    %v3437 = vxor.u32 %v3436, 2147483648
    %v3438 = vmul.f32 %v3437, 1.442695
    %v3439 = vpow.pop %v3438
    %v3440 = vadd.f32 %v3439, 1.0
    %v3441 = vrcp.pop %v3440
    %v3442 = vmul.f32 1.0, %v3441
    %v3443 = vadd.f32 %v3422, %v2251
    %v3444 = vmul.f32 %v3432, %v3443
    %v3445 = vrot.slane %v3425, 4
    %v3447 = vadd.f32 %v3445, %v3444
    %v3448 = vtanh.pop %v3447
    %v3449 = vsub.f32 1.0, %v3442
    %v3450 = vmul.f32 %v3449, %v3448
    %v3451 = vmul.f32 %v3442, %v3282
    %v3452 = vadd.f32 %v3450, %v3451
    %3453 = vst [vmem:[%s2036] sm:$0x3] %v3452
    %v3454 = vld [vmem:[#allocation2] sm:$0x3]
    %v3455 = vld [vmem:[#allocation2 + $0x6] sm:$0x3]
    %v3456 = vld [vmem:[#allocation2 + $0xc] sm:$0x3]
    %v3457 = vld [vmem:[#allocation2 + $0x12] sm:$0x3]
    %v3458 = vld [vmem:[#allocation2 + $0x18] sm:$0x3]
    %v3459 = vld [vmem:[#allocation2 + $0x1e] sm:$0x3]
    %v3460 = vld [vmem:[#allocation2 + $0x24] sm:$0x3]
    %v3461 = vld [vmem:[#allocation2 + $0x2a] sm:$0x3]
    %v3462 = vld [vmem:[%s8] sm:$0x1]
    %v3464 = vlaneseq
    %v3465 = vshrl.u32 %v3464, 7
    %v3466 = vsub.s32 0, %v3465
    %v3467 = vrot.slane %v3462, %v3466
    %v3469 = vmul.f32 %v3454, %v3467
    %v3470 = vmul.f32 %v3455, %v3467
    %v3471 = vmul.f32 %v3456, %v3467
    %v3472 = vmul.f32 %v3457, %v3467
    %v3473 = vmul.f32 %v3458, %v3467
    %v3474 = vmul.f32 %v3459, %v3467
    %v3475 = vmul.f32 %v3460, %v3467
    %v3476 = vmul.f32 %v3461, %v3467
    %vm3477 = vcmask 1041408
    %v3478 = vsel %vm3477, %v3469, 0.0
    %3479 = vadd.xlane.f32.xlu0 %v3478
    %v3480 = vpop.xlane.xlu0 %3479
    %v3481 = vsel %vm3477, %v3470, 0.0
    %3482 = vadd.xlane.f32.xlu0 %v3481
    %v3483 = vpop.xlane.xlu0 %3482
    %v3484 = vsel %vm3477, %v3471, 0.0
    %3485 = vadd.xlane.f32.xlu0 %v3484
    %v3486 = vpop.xlane.xlu0 %3485
    %v3487 = vsel %vm3477, %v3472, 0.0
    %3488 = vadd.xlane.f32.xlu0 %v3487
    %v3489 = vpop.xlane.xlu0 %3488
    %v3490 = vsel %vm3477, %v3473, 0.0
    %3491 = vadd.xlane.f32.xlu0 %v3490
    %v3492 = vpop.xlane.xlu0 %3491
    %v3493 = vsel %vm3477, %v3474, 0.0
    %3494 = vadd.xlane.f32.xlu0 %v3493
    %v3495 = vpop.xlane.xlu0 %3494
    %v3496 = vsel %vm3477, %v3475, 0.0
    %3497 = vadd.xlane.f32.xlu0 %v3496
    %v3498 = vpop.xlane.xlu0 %3497
    %v3499 = vsel %vm3477, %v3476, 0.0
    %3500 = vadd.xlane.f32.xlu0 %v3499
    %v3501 = vpop.xlane.xlu0 %3500
    %s3502 = sld [smem:[#allocation3]]
    %v3503 = vstv %s3502
    %v3504 = vadd.f32 %v3480, %v3503
    %v3505 = vadd.f32 %v3483, %v3503
    %v3506 = vadd.f32 %v3486, %v3503
    %v3507 = vadd.f32 %v3489, %v3503
    %v3508 = vadd.f32 %v3492, %v3503
    %v3509 = vadd.f32 %v3495, %v3503
    %v3510 = vadd.f32 %v3498, %v3503
    %v3511 = vadd.f32 %v3501, %v3503
    %v3520 = vlaneseq
    %v3521 = vand.u32 %v3520, 127
    %v3522 = vlaneseq
    %v3523 = vshrl.u32 %v3522, 7
    %v3524 = vsub.s32 %v3521, %v3523
    %v3525 = vrot.slane %v3504, %v3524
    %v3526 = vlaneseq
    %v3527 = vshrl.u32 %v3526, 7
    %v3528 = vsub.s32 %v3521, %v3527
    %v3529 = vrot.slane %v3505, %v3528
    %v3530 = vlaneseq
    %v3531 = vshrl.u32 %v3530, 7
    %v3532 = vsub.s32 %v3521, %v3531
    %v3533 = vrot.slane %v3506, %v3532
    %v3534 = vlaneseq
    %v3535 = vshrl.u32 %v3534, 7
    %v3536 = vsub.s32 %v3521, %v3535
    %v3537 = vrot.slane %v3507, %v3536
    %v3538 = vlaneseq
    %v3539 = vshrl.u32 %v3538, 7
    %v3540 = vsub.s32 %v3521, %v3539
    %v3541 = vrot.slane %v3508, %v3540
    %v3542 = vlaneseq
    %v3543 = vshrl.u32 %v3542, 7
    %v3544 = vsub.s32 %v3521, %v3543
    %v3545 = vrot.slane %v3509, %v3544
    %v3546 = vlaneseq
    %v3547 = vshrl.u32 %v3546, 7
    %v3548 = vsub.s32 %v3521, %v3547
    %v3549 = vrot.slane %v3510, %v3548
    %v3550 = vlaneseq
    %v3551 = vshrl.u32 %v3550, 7
    %v3552 = vsub.s32 %v3521, %v3551
    %v3553 = vrot.slane %v3511, %v3552
    %vm3554 = vcmask 1041409
    %v3555 = vsel %vm3554, %v3529, %v3525
    %vm3556 = vcmask 1042434
    %v3557 = vsel %vm3556, %v3533, %v3555
    %vm3558 = vcmask 1043459
    %v3559 = vsel %vm3558, %v3537, %v3557
    %vm3560 = vcmask 1044484
    %v3561 = vsel %vm3560, %v3541, %v3559
    %vm3562 = vcmask 1045509
    %v3563 = vsel %vm3562, %v3545, %v3561
    %vm3564 = vcmask 1046534
    %v3565 = vsel %vm3564, %v3549, %v3563
    %vm3566 = vcmask 1047559
    %v3567 = vsel %vm3566, %v3553, %v3565
    %vm3569 = vcmask 15360
    %3570 = vst.msk [vmem:[%s11] sm:$0xff] %vm3569, %v3567
    %v3571 = vld [vmem:[%s9] sm:$0x1]
    %v3573 = vlaneseq
    %v3574 = vshrl.u32 %v3573, 7
    %v3575 = vsub.s32 0, %v3574
    %v3576 = vrot.slane %v3571, %v3575
    %v3578 = vmul.f32 %v3454, %v3576
    %v3579 = vmul.f32 %v3455, %v3576
    %v3580 = vmul.f32 %v3456, %v3576
    %v3581 = vmul.f32 %v3457, %v3576
    %v3582 = vmul.f32 %v3458, %v3576
    %v3583 = vmul.f32 %v3459, %v3576
    %v3584 = vmul.f32 %v3460, %v3576
    %v3585 = vmul.f32 %v3461, %v3576
    %v3586 = vsel %vm3477, %v3578, 0.0
    %3587 = vadd.xlane.f32.xlu0 %v3586
    %v3588 = vpop.xlane.xlu0 %3587
    %v3589 = vsel %vm3477, %v3579, 0.0
    %3590 = vadd.xlane.f32.xlu0 %v3589
    %v3591 = vpop.xlane.xlu0 %3590
    %v3592 = vsel %vm3477, %v3580, 0.0
    %3593 = vadd.xlane.f32.xlu0 %v3592
    %v3594 = vpop.xlane.xlu0 %3593
    %v3595 = vsel %vm3477, %v3581, 0.0
    %3596 = vadd.xlane.f32.xlu0 %v3595
    %v3597 = vpop.xlane.xlu0 %3596
    %v3598 = vsel %vm3477, %v3582, 0.0
    %3599 = vadd.xlane.f32.xlu0 %v3598
    %v3600 = vpop.xlane.xlu0 %3599
    %v3601 = vsel %vm3477, %v3583, 0.0
    %3602 = vadd.xlane.f32.xlu0 %v3601
    %v3603 = vpop.xlane.xlu0 %3602
    %v3604 = vsel %vm3477, %v3584, 0.0
    %3605 = vadd.xlane.f32.xlu0 %v3604
    %v3606 = vpop.xlane.xlu0 %3605
    %v3607 = vsel %vm3477, %v3585, 0.0
    %3608 = vadd.xlane.f32.xlu0 %v3607
    %v3609 = vpop.xlane.xlu0 %3608
    %s3610 = sld [smem:[#allocation3 + $0x1]]
    %v3611 = vstv %s3610
    %v3612 = vadd.f32 %v3588, %v3611
    %v3613 = vadd.f32 %v3591, %v3611
    %v3614 = vadd.f32 %v3594, %v3611
    %v3615 = vadd.f32 %v3597, %v3611
    %v3616 = vadd.f32 %v3600, %v3611
    %v3617 = vadd.f32 %v3603, %v3611
    %v3618 = vadd.f32 %v3606, %v3611
    %v3619 = vadd.f32 %v3609, %v3611
    %v3628 = vlaneseq
    %v3629 = vshrl.u32 %v3628, 7
    %v3630 = vsub.s32 %v3521, %v3629
    %v3631 = vrot.slane %v3612, %v3630
    %v3632 = vlaneseq
    %v3633 = vshrl.u32 %v3632, 7
    %v3634 = vsub.s32 %v3521, %v3633
    %v3635 = vrot.slane %v3613, %v3634
    %v3636 = vlaneseq
    %v3637 = vshrl.u32 %v3636, 7
    %v3638 = vsub.s32 %v3521, %v3637
    %v3639 = vrot.slane %v3614, %v3638
    %v3640 = vlaneseq
    %v3641 = vshrl.u32 %v3640, 7
    %v3642 = vsub.s32 %v3521, %v3641
    %v3643 = vrot.slane %v3615, %v3642
    %v3644 = vlaneseq
    %v3645 = vshrl.u32 %v3644, 7
    %v3646 = vsub.s32 %v3521, %v3645
    %v3647 = vrot.slane %v3616, %v3646
    %v3648 = vlaneseq
    %v3649 = vshrl.u32 %v3648, 7
    %v3650 = vsub.s32 %v3521, %v3649
    %v3651 = vrot.slane %v3617, %v3650
    %v3652 = vlaneseq
    %v3653 = vshrl.u32 %v3652, 7
    %v3654 = vsub.s32 %v3521, %v3653
    %v3655 = vrot.slane %v3618, %v3654
    %v3656 = vlaneseq
    %v3657 = vshrl.u32 %v3656, 7
    %v3658 = vsub.s32 %v3521, %v3657
    %v3659 = vrot.slane %v3619, %v3658
    %v3660 = vsel %vm3554, %v3635, %v3631
    %v3661 = vsel %vm3556, %v3639, %v3660
    %v3662 = vsel %vm3558, %v3643, %v3661
    %v3663 = vsel %vm3560, %v3647, %v3662
    %v3664 = vsel %vm3562, %v3651, %v3663
    %v3665 = vsel %vm3564, %v3655, %v3664
    %v3666 = vsel %vm3566, %v3659, %v3665
    %3668 = vst.msk [vmem:[%s12] sm:$0xff] %vm3569, %v3666
    // Predicated region
    $region50: #{critic2_forward.1} parent=1 // pred_check
      _
    $region51: #{critic2_forward.1} parent=1 // pred_check_branch
      %3670 = sbr.rel (0) target = $region53
    $region52: #{critic2_forward.1} parent=1 // pred_region
      _
    $region53: #{critic2_forward.1} parent=1 // pred_fallthru
      _
    // Predicated region
    $region54: #{critic2_forward.1} parent=1 // pred_check
      _
    $region55: #{critic2_forward.1} parent=1 // pred_check_branch
      %3672 = sbr.rel (0) target = $region57
    $region56: #{critic2_forward.1} parent=1 // pred_region
      _
    $region57: #{critic2_forward.1} parent=1 // pred_fallthru
      _
    // Predicated region
    $region58: #{critic2_forward.1} parent=1 // pred_check
      _
    $region59: #{critic2_forward.1} parent=1 // pred_check_branch
      %3674 = sbr.rel (0) target = $region61
    $region60: #{critic2_forward.1} parent=1 // pred_region
      _
    $region61: #{critic2_forward.1} parent=1 // pred_fallthru
      _
    // Predicated region
    $region62: #{critic2_forward.1} parent=1 // pred_check
      _
    $region63: #{critic2_forward.1} parent=1 // pred_check_branch
      %3676 = sbr.rel (0) target = $region65
    $region64: #{critic2_forward.1} parent=1 // pred_region
      _
    $region65: #{critic2_forward.1} parent=1 // pred_fallthru
      _
    %3677 = vsyncpa [#allocation4], 1

</llo_original>
